<compile_context>
chip_gen: v5e
topology: v5e:2x2
jax: 0.10.0
libtpu: 0.0.40
codegen_flags: <defaults>
</compile_context>

<pallas_src>
import jax
import jax.numpy as jnp
from jax import lax
from jax.experimental import pallas as pl
from jax.experimental.pallas import tpu as pltpu

# ---- small synthetic config (N must be 6: proj_out = Linear(6*d_model, out)) ----
B, N, P, C = 2, 6, 4, 3
IN_DIM = P * C
D_MODEL = 32
NHEAD = 4
HEAD_DIM = D_MODEL // NHEAD
FF_DIM = 64
NUM_LAYERS = 2
OUT_DIM = 16
OUT_PAD = 128            # lane-dense kernel output width; sliced back in-jit
LN_EPS = 1e-5
R = B * N                # 12 flattened rows, token-major: row = n*B + b


def _layer_norm(x, gamma, beta):
    # var = E[x^2] - E[x]^2: the two cross-lane reductions are independent.
    mean = jnp.mean(x, axis=-1, keepdims=True)
    mean_sq = jnp.mean(x * x, axis=-1, keepdims=True)
    var = mean_sq - mean * mean
    return (x - mean) * lax.rsqrt(var + LN_EPS) * gamma + beta


def stickman_kernel(x_ref, w_in_ref, b_in_ref,
                    w_q_ref, b_q_ref, w_k_ref, b_k_ref, w_v_ref, b_v_ref,
                    w_ao_ref, b_ao_ref, ln1_g_ref, ln1_b_ref,
                    w_ff1_ref, b_ff1_ref, w_ff2_ref, b_ff2_ref,
                    ln2_g_ref, ln2_b_ref,
                    w_out_ref, b_out_ref,
                    o_ref):
    # Block-diagonal attention mask over the 12 token-major rows: query row i
    # may attend to key row j iff they belong to the same batch element
    # (i % B == j % B).  Built from 2-D iotas; hoisted out of the layer loop.
    row_b = lax.broadcasted_iota(jnp.int32, (R, R), 0) % B
    col_b = lax.broadcasted_iota(jnp.int32, (R, R), 1) % B
    attn_mask = jnp.where(row_b == col_b,
                          jnp.float32(0.0), jnp.float32(-1e9))

    # ---- proj_in on the flattened 12-row axis: one 2-D MXU matmul ----
    h = jnp.dot(x_ref[...], w_in_ref[...],
                preferred_element_type=jnp.float32) + b_in_ref[...]       # (12, D)

    for l in range(NUM_LAYERS):        # NUM_LAYERS == 2 -> static unroll is fine
        # ------------- self-attention block (post-LayerNorm) -------------
        attn = None
        for hh in range(NHEAD):
            # Per-head projections via per-head weights: outputs start at lane 0,
            # no lane-offset slicing.  1/sqrt(head_dim) is pre-folded into Q.
            q_h = jnp.dot(h, w_q_ref[l, hh],
                          preferred_element_type=jnp.float32) + b_q_ref[l, hh]
            k_h = jnp.dot(h, w_k_ref[l, hh],
                          preferred_element_type=jnp.float32) + b_k_ref[l, hh]
            v_h = jnp.dot(h, w_v_ref[l, hh],
                          preferred_element_type=jnp.float32) + b_v_ref[l, hh]
            # S = Q K^T over all 12 rows at once (contract last dims, trans_b form);
            # cross-batch pairs masked out additively.
            s = lax.dot_general(q_h, k_h, (((1,), (1,)), ((), ())),
                                preferred_element_type=jnp.float32)       # (12, 12)
            s = s + attn_mask
            s = s - jnp.max(s, axis=-1, keepdims=True)
            p = jnp.exp(s)
            p = p * pl.reciprocal(jnp.sum(p, axis=-1, keepdims=True), approx=True)
            o_h = jnp.dot(p, v_h, preferred_element_type=jnp.float32)     # (12, hd)
            # out_proj of the concatenated heads == sum of per-head projections
            contrib = jnp.dot(o_h, w_ao_ref[l, hh],
                              preferred_element_type=jnp.float32)         # (12, D)
            attn = contrib if attn is None else attn + contrib
        attn = attn + b_ao_ref[l]
        h = _layer_norm(h + attn, ln1_g_ref[l], ln1_b_ref[l])

        # ------------------------ feed-forward block ------------------------
        ff = jnp.dot(h, w_ff1_ref[l],
                     preferred_element_type=jnp.float32) + b_ff1_ref[l]   # (12, FF)
        ff = jnp.maximum(ff, 0.0)                                         # relu
        ff = jnp.dot(ff, w_ff2_ref[l],
                     preferred_element_type=jnp.float32) + b_ff2_ref[l]   # (12, D)
        h = _layer_norm(h + ff, ln2_g_ref[l], ln2_b_ref[l])

    # ---- proj_out: 'b n e -> b (n e)' folded into per-token matmuls.  With
    # token-major rows each token's B rows are a contiguous static slice, so no
    # 12 -> (2, 6) relayout.  Weight is lane-dense (N, D, 128) -> unmasked vst.
    out = jnp.dot(h[0:B, :], w_out_ref[0], preferred_element_type=jnp.float32)
    for n_i in range(1, N):
        out = out + jnp.dot(h[n_i * B:(n_i + 1) * B, :], w_out_ref[n_i],
                            preferred_element_type=jnp.float32)
    o_ref[...] = out + b_out_ref[...]


def init_params(key):
    ks = jax.random.split(key, 12)

    def w(k, shape, s=0.05):
        return jax.random.normal(k, shape, jnp.float32) * s

    return {
        # PyTorch Linear layout: weight = (out_features, in_features)
        'w_in':  w(ks[0], (D_MODEL, IN_DIM)),
        'b_in':  w(ks[1], (D_MODEL,)),
        'w_qkv': w(ks[2], (NUM_LAYERS, 3 * D_MODEL, D_MODEL)),     # in_proj_weight
        'b_qkv': w(ks[3], (NUM_LAYERS, 3 * D_MODEL)),
        'w_ao':  w(ks[4], (NUM_LAYERS, D_MODEL, D_MODEL)),         # out_proj
        'b_ao':  w(ks[5], (NUM_LAYERS, D_MODEL)),
        'ln1_g': jnp.ones((NUM_LAYERS, D_MODEL), jnp.float32),
        'ln1_b': jnp.zeros((NUM_LAYERS, D_MODEL), jnp.float32),
        'w_ff1': w(ks[6], (NUM_LAYERS, FF_DIM, D_MODEL)),
        'b_ff1': w(ks[7], (NUM_LAYERS, FF_DIM)),
        'w_ff2': w(ks[8], (NUM_LAYERS, D_MODEL, FF_DIM)),
        'b_ff2': w(ks[9], (NUM_LAYERS, D_MODEL)),
        'ln2_g': jnp.ones((NUM_LAYERS, D_MODEL), jnp.float32),
        'ln2_b': jnp.zeros((NUM_LAYERS, D_MODEL), jnp.float32),
        'w_out': w(ks[10], (OUT_DIM, N * D_MODEL)),
        'b_out': w(ks[11], (OUT_DIM,)),
    }


def prepare_params(p):
    """One-time host-side weight re-layout (hoisted out of the per-call path)."""
    L, D, H, hd = NUM_LAYERS, D_MODEL, NHEAD, HEAD_DIM
    scale = 1.0 / (hd ** 0.5)

    # PyTorch fused in_proj: rows [0,D)=Q, [D,2D)=K, [2D,3D)=V (out-major).
    w_q = p['w_qkv'][:, 0 * D:1 * D, :]
    w_k = p['w_qkv'][:, 1 * D:2 * D, :]
    w_v = p['w_qkv'][:, 2 * D:3 * D, :]
    b_q = p['b_qkv'][:, 0 * D:1 * D]
    b_k = p['b_qkv'][:, 1 * D:2 * D]
    b_v = p['b_qkv'][:, 2 * D:3 * D]

    def per_head_w(w, s=1.0):
        # (L, D_out, D_in) -> (L, H, D_in, hd) so q_h = x @ W[l, h]
        return jnp.transpose(w.reshape(L, H, hd, D), (0, 1, 3, 2)) * s

    def per_head_b(b, s=1.0):
        return b.reshape(L, H, 1, hd) * s

    # out_proj, per head: rows [h*hd,(h+1)*hd) of W_o^T -> (L, H, hd, D)
    w_ao_h = jnp.transpose(p['w_ao'], (0, 2, 1)).reshape(L, H, hd, D)

    # proj_out weight for 'b n e -> b (n e)' folding, padded lane-dense.
    w_out3 = jnp.transpose(p['w_out'].reshape(OUT_DIM, N, D), (1, 2, 0))
    w_out3 = jnp.pad(w_out3, ((0, 0), (0, 0), (0, OUT_PAD - OUT_DIM)))
    b_out = jnp.pad(p['b_out'], (0, OUT_PAD - OUT_DIM)).reshape(1, OUT_PAD)

    return (
        p['w_in'].T,                                   # (IN_DIM, D)
        p['b_in'].reshape(1, D),
        per_head_w(w_q, scale), per_head_b(b_q, scale),    # Q (scale pre-folded)
        per_head_w(w_k), per_head_b(b_k),
        per_head_w(w_v), per_head_b(b_v),
        w_ao_h,
        p['b_ao'].reshape(L, 1, D),
        p['ln1_g'].reshape(L, 1, D), p['ln1_b'].reshape(L, 1, D),
        jnp.transpose(p['w_ff1'], (0, 2, 1)),          # (L, D, FF)
        p['b_ff1'].reshape(L, 1, FF_DIM),
        jnp.transpose(p['w_ff2'], (0, 2, 1)),          # (L, FF, D)
        p['b_ff2'].reshape(L, 1, D),
        p['ln2_g'].reshape(L, 1, D), p['ln2_b'].reshape(L, 1, D),
        w_out3,                                        # (N, D, OUT_PAD)
        b_out,                                         # (1, OUT_PAD)
    )


@jax.jit
def stickman_forward(x, prepped):
    """x: (B, N, P, C) exactly like the PyTorch module's input."""
    # b n p c -> token-major flattened rows: row n*B + b = x[b, n] flattened.
    x_tm = jnp.transpose(x, (1, 0, 2, 3)).reshape(N * B, IN_DIM)
    args = (x_tm,) + tuple(prepped)
    vmem = pl.BlockSpec(memory_space=pltpu.MemorySpace.VMEM)
    out_pad = pl.pallas_call(
        stickman_kernel,
        out_shape=jax.ShapeDtypeStruct((B, OUT_PAD), jnp.float32),
        in_specs=[vmem] * len(args),
        out_specs=vmem,
    )(*args)
    return out_pad[:, :OUT_DIM]


def reference_forward(x, p):
    """Pure-JAX mirror of the PyTorch forward (eval mode) for validation."""
    head_dim = D_MODEL // NHEAD
    h = x.reshape(B, N, IN_DIM) @ p['w_in'].T + p['b_in']
    for l in range(NUM_LAYERS):
        qkv = h @ p['w_qkv'][l].T + p['b_qkv'][l]
        q, k, v = jnp.split(qkv, 3, axis=-1)
        q = q.reshape(B, N, NHEAD, head_dim).transpose(0, 2, 1, 3)
        k = k.reshape(B, N, NHEAD, head_dim).transpose(0, 2, 1, 3)
        v = v.reshape(B, N, NHEAD, head_dim).transpose(0, 2, 1, 3)
        s = (q / head_dim ** 0.5) @ jnp.swapaxes(k, -1, -2)
        a = jax.nn.softmax(s, axis=-1)
        o = (a @ v).transpose(0, 2, 1, 3).reshape(B, N, D_MODEL)
        o = o @ p['w_ao'][l].T + p['b_ao'][l]
        h = _layer_norm(h + o, p['ln1_g'][l], p['ln1_b'][l])
        ff = jnp.maximum(h @ p['w_ff1'][l].T + p['b_ff1'][l], 0.0)
        ff = ff @ p['w_ff2'][l].T + p['b_ff2'][l]
        h = _layer_norm(h + ff, p['ln2_g'][l], p['ln2_b'][l])
    return h.reshape(B, N * D_MODEL) @ p['w_out'].T + p['b_out']


if __name__ == "__main__":
    key = jax.random.PRNGKey(0)
    kx, kp = jax.random.split(key)
    x = jax.random.normal(kx, (B, N, P, C), jnp.float32)
    params = init_params(kp)

    # One-time weight re-layout; the per-call path is a single jitted function.
    prepped = prepare_params(params)

    out = jax.block_until_ready(stickman_forward(x, prepped))
    ref = reference_forward(x, params)

    assert out.shape == (B, OUT_DIM), out.shape
    # Tolerance 2e-3: approx-reciprocal softmax (EUP vrcp) + different summation
    # order vs the reference; structural errors would be O(0.1-1).
    assert jnp.allclose(out, ref, atol=2e-3, rtol=2e-3), (
        "max abs err = %g" % float(jnp.max(jnp.abs(out - ref))))
    print("KERNEL_OK")
</pallas_src>

<mosaic_0001>
module attributes {stable_mosaic.version = 11 : i64} {
  func.func @stickman_kernel(%arg0: memref<12x12xf32, #tpu.memory_space<vmem>>, %arg1: memref<12x32xf32, #tpu.memory_space<vmem>>, %arg2: memref<1x32xf32, #tpu.memory_space<vmem>>, %arg3: memref<2x4x32x8xf32, #tpu.memory_space<vmem>>, %arg4: memref<2x4x1x8xf32, #tpu.memory_space<vmem>>, %arg5: memref<2x4x32x8xf32, #tpu.memory_space<vmem>>, %arg6: memref<2x4x1x8xf32, #tpu.memory_space<vmem>>, %arg7: memref<2x4x32x8xf32, #tpu.memory_space<vmem>>, %arg8: memref<2x4x1x8xf32, #tpu.memory_space<vmem>>, %arg9: memref<2x4x8x32xf32, #tpu.memory_space<vmem>>, %arg10: memref<2x1x32xf32, #tpu.memory_space<vmem>>, %arg11: memref<2x1x32xf32, #tpu.memory_space<vmem>>, %arg12: memref<2x1x32xf32, #tpu.memory_space<vmem>>, %arg13: memref<2x32x64xf32, #tpu.memory_space<vmem>>, %arg14: memref<2x1x64xf32, #tpu.memory_space<vmem>>, %arg15: memref<2x64x32xf32, #tpu.memory_space<vmem>>, %arg16: memref<2x1x32xf32, #tpu.memory_space<vmem>>, %arg17: memref<2x1x32xf32, #tpu.memory_space<vmem>>, %arg18: memref<2x1x32xf32, #tpu.memory_space<vmem>>, %arg19: memref<6x32x128xf32, #tpu.memory_space<vmem>>, %arg20: memref<1x128xf32, #tpu.memory_space<vmem>>, %arg21: memref<2x128xf32, #tpu.memory_space<vmem>>) attributes {dimension_semantics = [], scalar_prefetch = 0 : i64, scratch_operands = 0 : i64, tpu.core_type = #tpu.core_type<tc>} {
    %0 = tpu.iota {dimensions = array<i32: 0>} : vector<12x12xi32>
    %c2_i32 = arith.constant 2 : i32
    %c0_i32 = arith.constant 0 : i32
    %1 = arith.cmpi eq, %c2_i32, %c0_i32 : i32
    %c1_i32 = arith.constant 1 : i32
    %2 = arith.select %1, %c1_i32, %c2_i32 : i32
    %3 = vector.broadcast %2 : i32 to vector<12x12xi32>
    %4 = arith.remsi %0, %3 : vector<12x12xi32>
    %c0_i32_0 = arith.constant 0 : i32
    %5 = vector.broadcast %c0_i32_0 : i32 to vector<12x12xi32>
    %6 = arith.cmpi ne, %4, %5 : vector<12x12xi32>
    %c0_i32_1 = arith.constant 0 : i32
    %7 = vector.broadcast %c0_i32_1 : i32 to vector<12x12xi32>
    %8 = arith.cmpi slt, %4, %7 : vector<12x12xi32>
    %c0_i32_2 = arith.constant 0 : i32
    %9 = arith.cmpi slt, %2, %c0_i32_2 : i32
    %10 = vector.broadcast %9 : i1 to vector<12x12xi1>
    %11 = vector.broadcast %10 : vector<12x12xi1> to vector<12x12xi1>
    %12 = arith.xori %8, %11 : vector<12x12xi1>
    %13 = arith.andi %12, %6 : vector<12x12xi1>
    %14 = vector.broadcast %2 : i32 to vector<12x12xi32>
    %15 = arith.addi %4, %14 : vector<12x12xi32>
    %16 = arith.select %13, %15, %4 : vector<12x12xi1>, vector<12x12xi32>
    %17 = tpu.iota {dimensions = array<i32: 1>} : vector<12x12xi32>
    %c2_i32_3 = arith.constant 2 : i32
    %c0_i32_4 = arith.constant 0 : i32
    %18 = arith.cmpi eq, %c2_i32_3, %c0_i32_4 : i32
    %c1_i32_5 = arith.constant 1 : i32
    %19 = arith.select %18, %c1_i32_5, %c2_i32_3 : i32
    %20 = vector.broadcast %19 : i32 to vector<12x12xi32>
    %21 = arith.remsi %17, %20 : vector<12x12xi32>
    %c0_i32_6 = arith.constant 0 : i32
    %22 = vector.broadcast %c0_i32_6 : i32 to vector<12x12xi32>
    %23 = arith.cmpi ne, %21, %22 : vector<12x12xi32>
    %c0_i32_7 = arith.constant 0 : i32
    %24 = vector.broadcast %c0_i32_7 : i32 to vector<12x12xi32>
    %25 = arith.cmpi slt, %21, %24 : vector<12x12xi32>
    %c0_i32_8 = arith.constant 0 : i32
    %26 = arith.cmpi slt, %19, %c0_i32_8 : i32
    %27 = vector.broadcast %26 : i1 to vector<12x12xi1>
    %28 = vector.broadcast %27 : vector<12x12xi1> to vector<12x12xi1>
    %29 = arith.xori %25, %28 : vector<12x12xi1>
    %30 = arith.andi %29, %23 : vector<12x12xi1>
    %31 = vector.broadcast %19 : i32 to vector<12x12xi32>
    %32 = arith.addi %21, %31 : vector<12x12xi32>
    %33 = arith.select %30, %32, %21 : vector<12x12xi1>, vector<12x12xi32>
    %34 = arith.cmpi eq, %16, %33 : vector<12x12xi32>
    %cst = arith.constant 0.000000e+00 : f32
    %cst_9 = arith.constant -1.000000e+09 : f32
    %35 = vector.broadcast %cst : f32 to vector<12x12xf32>
    %36 = vector.broadcast %cst_9 : f32 to vector<12x12xf32>
    %37 = arith.select %34, %35, %36 : vector<12x12xi1>, vector<12x12xf32>
    %c0 = arith.constant 0 : index
    %c0_10 = arith.constant 0 : index
    %38 = vector.load %arg0[%c0, %c0_10] : memref<12x12xf32, #tpu.memory_space<vmem>>, vector<12x12xf32>
    %c0_11 = arith.constant 0 : index
    %c0_12 = arith.constant 0 : index
    %39 = vector.load %arg1[%c0_11, %c0_12] : memref<12x32xf32, #tpu.memory_space<vmem>>, vector<12x32xf32>
    %cst_13 = arith.constant dense<0.000000e+00> : vector<12x32xf32>
    %40 = tpu.matmul %38, %39, %cst_13 {dimension_numbers = #tpu.dot_dimension_numbers<[1], [0], [0], [1], [0, 0, 1, 1], [], []>} : vector<12x12xf32>, vector<12x32xf32>, vector<12x32xf32> -> vector<12x32xf32>
    %c0_14 = arith.constant 0 : index
    %c0_15 = arith.constant 0 : index
    %41 = vector.load %arg2[%c0_14, %c0_15] : memref<1x32xf32, #tpu.memory_space<vmem>>, vector<1x32xf32>
    %42 = vector.broadcast %41 : vector<1x32xf32> to vector<12x32xf32>
    %43 = arith.addf %40, %42 : vector<12x32xf32>
    %c0_16 = arith.constant 0 : index
    %c0_17 = arith.constant 0 : index
    %c0_18 = arith.constant 0 : index
    %c0_19 = arith.constant 0 : index
    %44 = vector.load %arg3[%c0_16, %c0_17, %c0_18, %c0_19] : memref<2x4x32x8xf32, #tpu.memory_space<vmem>>, vector<1x1x32x8xf32>
    %45 = vector.shape_cast %44 : vector<1x1x32x8xf32> to vector<32x8xf32>
    %cst_20 = arith.constant dense<0.000000e+00> : vector<12x8xf32>
    %46 = tpu.matmul %43, %45, %cst_20 {dimension_numbers = #tpu.dot_dimension_numbers<[1], [0], [0], [1], [0, 0, 1, 1], [], []>} : vector<12x32xf32>, vector<32x8xf32>, vector<12x8xf32> -> vector<12x8xf32>
    %c0_21 = arith.constant 0 : index
    %c0_22 = arith.constant 0 : index
    %c0_23 = arith.constant 0 : index
    %c0_24 = arith.constant 0 : index
    %47 = vector.load %arg4[%c0_21, %c0_22, %c0_23, %c0_24] : memref<2x4x1x8xf32, #tpu.memory_space<vmem>>, vector<1x1x1x8xf32>
    %48 = vector.shape_cast %47 : vector<1x1x1x8xf32> to vector<1x8xf32>
    %49 = vector.broadcast %48 : vector<1x8xf32> to vector<12x8xf32>
    %50 = arith.addf %46, %49 : vector<12x8xf32>
    %c0_25 = arith.constant 0 : index
    %c0_26 = arith.constant 0 : index
    %c0_27 = arith.constant 0 : index
    %c0_28 = arith.constant 0 : index
    %51 = vector.load %arg5[%c0_25, %c0_26, %c0_27, %c0_28] : memref<2x4x32x8xf32, #tpu.memory_space<vmem>>, vector<1x1x32x8xf32>
    %52 = vector.shape_cast %51 : vector<1x1x32x8xf32> to vector<32x8xf32>
    %cst_29 = arith.constant dense<0.000000e+00> : vector<12x8xf32>
    %53 = tpu.matmul %43, %52, %cst_29 {dimension_numbers = #tpu.dot_dimension_numbers<[1], [0], [0], [1], [0, 0, 1, 1], [], []>} : vector<12x32xf32>, vector<32x8xf32>, vector<12x8xf32> -> vector<12x8xf32>
    %c0_30 = arith.constant 0 : index
    %c0_31 = arith.constant 0 : index
    %c0_32 = arith.constant 0 : index
    %c0_33 = arith.constant 0 : index
    %54 = vector.load %arg6[%c0_30, %c0_31, %c0_32, %c0_33] : memref<2x4x1x8xf32, #tpu.memory_space<vmem>>, vector<1x1x1x8xf32>
    %55 = vector.shape_cast %54 : vector<1x1x1x8xf32> to vector<1x8xf32>
    %56 = vector.broadcast %55 : vector<1x8xf32> to vector<12x8xf32>
    %57 = arith.addf %53, %56 : vector<12x8xf32>
    %c0_34 = arith.constant 0 : index
    %c0_35 = arith.constant 0 : index
    %c0_36 = arith.constant 0 : index
    %c0_37 = arith.constant 0 : index
    %58 = vector.load %arg7[%c0_34, %c0_35, %c0_36, %c0_37] : memref<2x4x32x8xf32, #tpu.memory_space<vmem>>, vector<1x1x32x8xf32>
    %59 = vector.shape_cast %58 : vector<1x1x32x8xf32> to vector<32x8xf32>
    %cst_38 = arith.constant dense<0.000000e+00> : vector<12x8xf32>
    %60 = tpu.matmul %43, %59, %cst_38 {dimension_numbers = #tpu.dot_dimension_numbers<[1], [0], [0], [1], [0, 0, 1, 1], [], []>} : vector<12x32xf32>, vector<32x8xf32>, vector<12x8xf32> -> vector<12x8xf32>
    %c0_39 = arith.constant 0 : index
    %c0_40 = arith.constant 0 : index
    %c0_41 = arith.constant 0 : index
    %c0_42 = arith.constant 0 : index
    %61 = vector.load %arg8[%c0_39, %c0_40, %c0_41, %c0_42] : memref<2x4x1x8xf32, #tpu.memory_space<vmem>>, vector<1x1x1x8xf32>
    %62 = vector.shape_cast %61 : vector<1x1x1x8xf32> to vector<1x8xf32>
    %63 = vector.broadcast %62 : vector<1x8xf32> to vector<12x8xf32>
    %64 = arith.addf %60, %63 : vector<12x8xf32>
    %cst_43 = arith.constant dense<0.000000e+00> : vector<12x12xf32>
    %65 = tpu.matmul %50, %57, %cst_43 {dimension_numbers = #tpu.dot_dimension_numbers<[1], [1], [0], [0], [0, 0, 1, 0], [], []>} : vector<12x8xf32>, vector<12x8xf32>, vector<12x12xf32> -> vector<12x12xf32>
    %66 = arith.addf %65, %37 : vector<12x12xf32>
    %cst_44 = arith.constant dense<0xFF800000> : vector<12xf32>
    %67 = vector.multi_reduction <maximumf>, %66, %cst_44 [1] : vector<12x12xf32> to vector<12xf32>
    %68 = vector.shape_cast %67 : vector<12xf32> to vector<12x1xf32>
    %69 = vector.broadcast %68 : vector<12x1xf32> to vector<12x12xf32>
    %70 = arith.subf %66, %69 : vector<12x12xf32>
    %71 = math.exp %70 : vector<12x12xf32>
    %cst_45 = arith.constant dense<0.000000e+00> : vector<12xf32>
    %72 = vector.multi_reduction <add>, %71, %cst_45 [1] : vector<12x12xf32> to vector<12xf32>
    %73 = vector.shape_cast %72 : vector<12xf32> to vector<12x1xf32>
    %74 = tpu.reciprocal %73 {approx = true} : vector<12x1xf32> -> vector<12x1xf32>
    %75 = vector.broadcast %74 : vector<12x1xf32> to vector<12x12xf32>
    %76 = arith.mulf %71, %75 : vector<12x12xf32>
    %cst_46 = arith.constant dense<0.000000e+00> : vector<12x8xf32>
    %77 = tpu.matmul %76, %64, %cst_46 {dimension_numbers = #tpu.dot_dimension_numbers<[1], [0], [0], [1], [0, 0, 1, 1], [], []>} : vector<12x12xf32>, vector<12x8xf32>, vector<12x8xf32> -> vector<12x8xf32>
    %c0_47 = arith.constant 0 : index
    %c0_48 = arith.constant 0 : index
    %c0_49 = arith.constant 0 : index
    %c0_50 = arith.constant 0 : index
    %78 = vector.load %arg9[%c0_47, %c0_48, %c0_49, %c0_50] : memref<2x4x8x32xf32, #tpu.memory_space<vmem>>, vector<1x1x8x32xf32>
    %79 = vector.shape_cast %78 : vector<1x1x8x32xf32> to vector<8x32xf32>
    %cst_51 = arith.constant dense<0.000000e+00> : vector<12x32xf32>
    %80 = tpu.matmul %77, %79, %cst_51 {dimension_numbers = #tpu.dot_dimension_numbers<[1], [0], [0], [1], [0, 0, 1, 1], [], []>} : vector<12x8xf32>, vector<8x32xf32>, vector<12x32xf32> -> vector<12x32xf32>
    %c0_52 = arith.constant 0 : index
    %c1 = arith.constant 1 : index
    %c0_53 = arith.constant 0 : index
    %c0_54 = arith.constant 0 : index
    %81 = vector.load %arg3[%c0_52, %c1, %c0_53, %c0_54] : memref<2x4x32x8xf32, #tpu.memory_space<vmem>>, vector<1x1x32x8xf32>
    %82 = vector.shape_cast %81 : vector<1x1x32x8xf32> to vector<32x8xf32>
    %cst_55 = arith.constant dense<0.000000e+00> : vector<12x8xf32>
    %83 = tpu.matmul %43, %82, %cst_55 {dimension_numbers = #tpu.dot_dimension_numbers<[1], [0], [0], [1], [0, 0, 1, 1], [], []>} : vector<12x32xf32>, vector<32x8xf32>, vector<12x8xf32> -> vector<12x8xf32>
    %c0_56 = arith.constant 0 : index
    %c1_57 = arith.constant 1 : index
    %c0_58 = arith.constant 0 : index
    %c0_59 = arith.constant 0 : index
    %84 = vector.load %arg4[%c0_56, %c1_57, %c0_58, %c0_59] : memref<2x4x1x8xf32, #tpu.memory_space<vmem>>, vector<1x1x1x8xf32>
    %85 = vector.shape_cast %84 : vector<1x1x1x8xf32> to vector<1x8xf32>
    %86 = vector.broadcast %85 : vector<1x8xf32> to vector<12x8xf32>
    %87 = arith.addf %83, %86 : vector<12x8xf32>
    %c0_60 = arith.constant 0 : index
    %c1_61 = arith.constant 1 : index
    %c0_62 = arith.constant 0 : index
    %c0_63 = arith.constant 0 : index
    %88 = vector.load %arg5[%c0_60, %c1_61, %c0_62, %c0_63] : memref<2x4x32x8xf32, #tpu.memory_space<vmem>>, vector<1x1x32x8xf32>
    %89 = vector.shape_cast %88 : vector<1x1x32x8xf32> to vector<32x8xf32>
    %cst_64 = arith.constant dense<0.000000e+00> : vector<12x8xf32>
    %90 = tpu.matmul %43, %89, %cst_64 {dimension_numbers = #tpu.dot_dimension_numbers<[1], [0], [0], [1], [0, 0, 1, 1], [], []>} : vector<12x32xf32>, vector<32x8xf32>, vector<12x8xf32> -> vector<12x8xf32>
    %c0_65 = arith.constant 0 : index
    %c1_66 = arith.constant 1 : index
    %c0_67 = arith.constant 0 : index
    %c0_68 = arith.constant 0 : index
    %91 = vector.load %arg6[%c0_65, %c1_66, %c0_67, %c0_68] : memref<2x4x1x8xf32, #tpu.memory_space<vmem>>, vector<1x1x1x8xf32>
    %92 = vector.shape_cast %91 : vector<1x1x1x8xf32> to vector<1x8xf32>
    %93 = vector.broadcast %92 : vector<1x8xf32> to vector<12x8xf32>
    %94 = arith.addf %90, %93 : vector<12x8xf32>
    %c0_69 = arith.constant 0 : index
    %c1_70 = arith.constant 1 : index
    %c0_71 = arith.constant 0 : index
    %c0_72 = arith.constant 0 : index
    %95 = vector.load %arg7[%c0_69, %c1_70, %c0_71, %c0_72] : memref<2x4x32x8xf32, #tpu.memory_space<vmem>>, vector<1x1x32x8xf32>
    %96 = vector.shape_cast %95 : vector<1x1x32x8xf32> to vector<32x8xf32>
    %cst_73 = arith.constant dense<0.000000e+00> : vector<12x8xf32>
    %97 = tpu.matmul %43, %96, %cst_73 {dimension_numbers = #tpu.dot_dimension_numbers<[1], [0], [0], [1], [0, 0, 1, 1], [], []>} : vector<12x32xf32>, vector<32x8xf32>, vector<12x8xf32> -> vector<12x8xf32>
    %c0_74 = arith.constant 0 : index
    %c1_75 = arith.constant 1 : index
    %c0_76 = arith.constant 0 : index
    %c0_77 = arith.constant 0 : index
    %98 = vector.load %arg8[%c0_74, %c1_75, %c0_76, %c0_77] : memref<2x4x1x8xf32, #tpu.memory_space<vmem>>, vector<1x1x1x8xf32>
    %99 = vector.shape_cast %98 : vector<1x1x1x8xf32> to vector<1x8xf32>
    %100 = vector.broadcast %99 : vector<1x8xf32> to vector<12x8xf32>
    %101 = arith.addf %97, %100 : vector<12x8xf32>
    %cst_78 = arith.constant dense<0.000000e+00> : vector<12x12xf32>
    %102 = tpu.matmul %87, %94, %cst_78 {dimension_numbers = #tpu.dot_dimension_numbers<[1], [1], [0], [0], [0, 0, 1, 0], [], []>} : vector<12x8xf32>, vector<12x8xf32>, vector<12x12xf32> -> vector<12x12xf32>
    %103 = arith.addf %102, %37 : vector<12x12xf32>
    %cst_79 = arith.constant dense<0xFF800000> : vector<12xf32>
    %104 = vector.multi_reduction <maximumf>, %103, %cst_79 [1] : vector<12x12xf32> to vector<12xf32>
    %105 = vector.shape_cast %104 : vector<12xf32> to vector<12x1xf32>
    %106 = vector.broadcast %105 : vector<12x1xf32> to vector<12x12xf32>
    %107 = arith.subf %103, %106 : vector<12x12xf32>
    %108 = math.exp %107 : vector<12x12xf32>
    %cst_80 = arith.constant dense<0.000000e+00> : vector<12xf32>
    %109 = vector.multi_reduction <add>, %108, %cst_80 [1] : vector<12x12xf32> to vector<12xf32>
    %110 = vector.shape_cast %109 : vector<12xf32> to vector<12x1xf32>
    %111 = tpu.reciprocal %110 {approx = true} : vector<12x1xf32> -> vector<12x1xf32>
    %112 = vector.broadcast %111 : vector<12x1xf32> to vector<12x12xf32>
    %113 = arith.mulf %108, %112 : vector<12x12xf32>
    %cst_81 = arith.constant dense<0.000000e+00> : vector<12x8xf32>
    %114 = tpu.matmul %113, %101, %cst_81 {dimension_numbers = #tpu.dot_dimension_numbers<[1], [0], [0], [1], [0, 0, 1, 1], [], []>} : vector<12x12xf32>, vector<12x8xf32>, vector<12x8xf32> -> vector<12x8xf32>
    %c0_82 = arith.constant 0 : index
    %c1_83 = arith.constant 1 : index
    %c0_84 = arith.constant 0 : index
    %c0_85 = arith.constant 0 : index
    %115 = vector.load %arg9[%c0_82, %c1_83, %c0_84, %c0_85] : memref<2x4x8x32xf32, #tpu.memory_space<vmem>>, vector<1x1x8x32xf32>
    %116 = vector.shape_cast %115 : vector<1x1x8x32xf32> to vector<8x32xf32>
    %cst_86 = arith.constant dense<0.000000e+00> : vector<12x32xf32>
    %117 = tpu.matmul %114, %116, %cst_86 {dimension_numbers = #tpu.dot_dimension_numbers<[1], [0], [0], [1], [0, 0, 1, 1], [], []>} : vector<12x8xf32>, vector<8x32xf32>, vector<12x32xf32> -> vector<12x32xf32>
    %118 = arith.addf %80, %117 : vector<12x32xf32>
    %c0_87 = arith.constant 0 : index
    %c2 = arith.constant 2 : index
    %c0_88 = arith.constant 0 : index
    %c0_89 = arith.constant 0 : index
    %119 = vector.load %arg3[%c0_87, %c2, %c0_88, %c0_89] : memref<2x4x32x8xf32, #tpu.memory_space<vmem>>, vector<1x1x32x8xf32>
    %120 = vector.shape_cast %119 : vector<1x1x32x8xf32> to vector<32x8xf32>
    %cst_90 = arith.constant dense<0.000000e+00> : vector<12x8xf32>
    %121 = tpu.matmul %43, %120, %cst_90 {dimension_numbers = #tpu.dot_dimension_numbers<[1], [0], [0], [1], [0, 0, 1, 1], [], []>} : vector<12x32xf32>, vector<32x8xf32>, vector<12x8xf32> -> vector<12x8xf32>
    %c0_91 = arith.constant 0 : index
    %c2_92 = arith.constant 2 : index
    %c0_93 = arith.constant 0 : index
    %c0_94 = arith.constant 0 : index
    %122 = vector.load %arg4[%c0_91, %c2_92, %c0_93, %c0_94] : memref<2x4x1x8xf32, #tpu.memory_space<vmem>>, vector<1x1x1x8xf32>
    %123 = vector.shape_cast %122 : vector<1x1x1x8xf32> to vector<1x8xf32>
    %124 = vector.broadcast %123 : vector<1x8xf32> to vector<12x8xf32>
    %125 = arith.addf %121, %124 : vector<12x8xf32>
    %c0_95 = arith.constant 0 : index
    %c2_96 = arith.constant 2 : index
    %c0_97 = arith.constant 0 : index
    %c0_98 = arith.constant 0 : index
    %126 = vector.load %arg5[%c0_95, %c2_96, %c0_97, %c0_98] : memref<2x4x32x8xf32, #tpu.memory_space<vmem>>, vector<1x1x32x8xf32>
    %127 = vector.shape_cast %126 : vector<1x1x32x8xf32> to vector<32x8xf32>
    %cst_99 = arith.constant dense<0.000000e+00> : vector<12x8xf32>
    %128 = tpu.matmul %43, %127, %cst_99 {dimension_numbers = #tpu.dot_dimension_numbers<[1], [0], [0], [1], [0, 0, 1, 1], [], []>} : vector<12x32xf32>, vector<32x8xf32>, vector<12x8xf32> -> vector<12x8xf32>
    %c0_100 = arith.constant 0 : index
    %c2_101 = arith.constant 2 : index
    %c0_102 = arith.constant 0 : index
    %c0_103 = arith.constant 0 : index
    %129 = vector.load %arg6[%c0_100, %c2_101, %c0_102, %c0_103] : memref<2x4x1x8xf32, #tpu.memory_space<vmem>>, vector<1x1x1x8xf32>
    %130 = vector.shape_cast %129 : vector<1x1x1x8xf32> to vector<1x8xf32>
    %131 = vector.broadcast %130 : vector<1x8xf32> to vector<12x8xf32>
    %132 = arith.addf %128, %131 : vector<12x8xf32>
    %c0_104 = arith.constant 0 : index
    %c2_105 = arith.constant 2 : index
    %c0_106 = arith.constant 0 : index
    %c0_107 = arith.constant 0 : index
    %133 = vector.load %arg7[%c0_104, %c2_105, %c0_106, %c0_107] : memref<2x4x32x8xf32, #tpu.memory_space<vmem>>, vector<1x1x32x8xf32>
    %134 = vector.shape_cast %133 : vector<1x1x32x8xf32> to vector<32x8xf32>
    %cst_108 = arith.constant dense<0.000000e+00> : vector<12x8xf32>
    %135 = tpu.matmul %43, %134, %cst_108 {dimension_numbers = #tpu.dot_dimension_numbers<[1], [0], [0], [1], [0, 0, 1, 1], [], []>} : vector<12x32xf32>, vector<32x8xf32>, vector<12x8xf32> -> vector<12x8xf32>
    %c0_109 = arith.constant 0 : index
    %c2_110 = arith.constant 2 : index
    %c0_111 = arith.constant 0 : index
    %c0_112 = arith.constant 0 : index
    %136 = vector.load %arg8[%c0_109, %c2_110, %c0_111, %c0_112] : memref<2x4x1x8xf32, #tpu.memory_space<vmem>>, vector<1x1x1x8xf32>
    %137 = vector.shape_cast %136 : vector<1x1x1x8xf32> to vector<1x8xf32>
    %138 = vector.broadcast %137 : vector<1x8xf32> to vector<12x8xf32>
    %139 = arith.addf %135, %138 : vector<12x8xf32>
    %cst_113 = arith.constant dense<0.000000e+00> : vector<12x12xf32>
    %140 = tpu.matmul %125, %132, %cst_113 {dimension_numbers = #tpu.dot_dimension_numbers<[1], [1], [0], [0], [0, 0, 1, 0], [], []>} : vector<12x8xf32>, vector<12x8xf32>, vector<12x12xf32> -> vector<12x12xf32>
    %141 = arith.addf %140, %37 : vector<12x12xf32>
    %cst_114 = arith.constant dense<0xFF800000> : vector<12xf32>
    %142 = vector.multi_reduction <maximumf>, %141, %cst_114 [1] : vector<12x12xf32> to vector<12xf32>
    %143 = vector.shape_cast %142 : vector<12xf32> to vector<12x1xf32>
    %144 = vector.broadcast %143 : vector<12x1xf32> to vector<12x12xf32>
    %145 = arith.subf %141, %144 : vector<12x12xf32>
    %146 = math.exp %145 : vector<12x12xf32>
    %cst_115 = arith.constant dense<0.000000e+00> : vector<12xf32>
    %147 = vector.multi_reduction <add>, %146, %cst_115 [1] : vector<12x12xf32> to vector<12xf32>
    %148 = vector.shape_cast %147 : vector<12xf32> to vector<12x1xf32>
    %149 = tpu.reciprocal %148 {approx = true} : vector<12x1xf32> -> vector<12x1xf32>
    %150 = vector.broadcast %149 : vector<12x1xf32> to vector<12x12xf32>
    %151 = arith.mulf %146, %150 : vector<12x12xf32>
    %cst_116 = arith.constant dense<0.000000e+00> : vector<12x8xf32>
    %152 = tpu.matmul %151, %139, %cst_116 {dimension_numbers = #tpu.dot_dimension_numbers<[1], [0], [0], [1], [0, 0, 1, 1], [], []>} : vector<12x12xf32>, vector<12x8xf32>, vector<12x8xf32> -> vector<12x8xf32>
    %c0_117 = arith.constant 0 : index
    %c2_118 = arith.constant 2 : index
    %c0_119 = arith.constant 0 : index
    %c0_120 = arith.constant 0 : index
    %153 = vector.load %arg9[%c0_117, %c2_118, %c0_119, %c0_120] : memref<2x4x8x32xf32, #tpu.memory_space<vmem>>, vector<1x1x8x32xf32>
    %154 = vector.shape_cast %153 : vector<1x1x8x32xf32> to vector<8x32xf32>
    %cst_121 = arith.constant dense<0.000000e+00> : vector<12x32xf32>
    %155 = tpu.matmul %152, %154, %cst_121 {dimension_numbers = #tpu.dot_dimension_numbers<[1], [0], [0], [1], [0, 0, 1, 1], [], []>} : vector<12x8xf32>, vector<8x32xf32>, vector<12x32xf32> -> vector<12x32xf32>
    %156 = arith.addf %118, %155 : vector<12x32xf32>
    %c0_122 = arith.constant 0 : index
    %c3 = arith.constant 3 : index
    %c0_123 = arith.constant 0 : index
    %c0_124 = arith.constant 0 : index
    %157 = vector.load %arg3[%c0_122, %c3, %c0_123, %c0_124] : memref<2x4x32x8xf32, #tpu.memory_space<vmem>>, vector<1x1x32x8xf32>
    %158 = vector.shape_cast %157 : vector<1x1x32x8xf32> to vector<32x8xf32>
    %cst_125 = arith.constant dense<0.000000e+00> : vector<12x8xf32>
    %159 = tpu.matmul %43, %158, %cst_125 {dimension_numbers = #tpu.dot_dimension_numbers<[1], [0], [0], [1], [0, 0, 1, 1], [], []>} : vector<12x32xf32>, vector<32x8xf32>, vector<12x8xf32> -> vector<12x8xf32>
    %c0_126 = arith.constant 0 : index
    %c3_127 = arith.constant 3 : index
    %c0_128 = arith.constant 0 : index
    %c0_129 = arith.constant 0 : index
    %160 = vector.load %arg4[%c0_126, %c3_127, %c0_128, %c0_129] : memref<2x4x1x8xf32, #tpu.memory_space<vmem>>, vector<1x1x1x8xf32>
    %161 = vector.shape_cast %160 : vector<1x1x1x8xf32> to vector<1x8xf32>
    %162 = vector.broadcast %161 : vector<1x8xf32> to vector<12x8xf32>
    %163 = arith.addf %159, %162 : vector<12x8xf32>
    %c0_130 = arith.constant 0 : index
    %c3_131 = arith.constant 3 : index
    %c0_132 = arith.constant 0 : index
    %c0_133 = arith.constant 0 : index
    %164 = vector.load %arg5[%c0_130, %c3_131, %c0_132, %c0_133] : memref<2x4x32x8xf32, #tpu.memory_space<vmem>>, vector<1x1x32x8xf32>
    %165 = vector.shape_cast %164 : vector<1x1x32x8xf32> to vector<32x8xf32>
    %cst_134 = arith.constant dense<0.000000e+00> : vector<12x8xf32>
    %166 = tpu.matmul %43, %165, %cst_134 {dimension_numbers = #tpu.dot_dimension_numbers<[1], [0], [0], [1], [0, 0, 1, 1], [], []>} : vector<12x32xf32>, vector<32x8xf32>, vector<12x8xf32> -> vector<12x8xf32>
    %c0_135 = arith.constant 0 : index
    %c3_136 = arith.constant 3 : index
    %c0_137 = arith.constant 0 : index
    %c0_138 = arith.constant 0 : index
    %167 = vector.load %arg6[%c0_135, %c3_136, %c0_137, %c0_138] : memref<2x4x1x8xf32, #tpu.memory_space<vmem>>, vector<1x1x1x8xf32>
    %168 = vector.shape_cast %167 : vector<1x1x1x8xf32> to vector<1x8xf32>
    %169 = vector.broadcast %168 : vector<1x8xf32> to vector<12x8xf32>
    %170 = arith.addf %166, %169 : vector<12x8xf32>
    %c0_139 = arith.constant 0 : index
    %c3_140 = arith.constant 3 : index
    %c0_141 = arith.constant 0 : index
    %c0_142 = arith.constant 0 : index
    %171 = vector.load %arg7[%c0_139, %c3_140, %c0_141, %c0_142] : memref<2x4x32x8xf32, #tpu.memory_space<vmem>>, vector<1x1x32x8xf32>
    %172 = vector.shape_cast %171 : vector<1x1x32x8xf32> to vector<32x8xf32>
    %cst_143 = arith.constant dense<0.000000e+00> : vector<12x8xf32>
    %173 = tpu.matmul %43, %172, %cst_143 {dimension_numbers = #tpu.dot_dimension_numbers<[1], [0], [0], [1], [0, 0, 1, 1], [], []>} : vector<12x32xf32>, vector<32x8xf32>, vector<12x8xf32> -> vector<12x8xf32>
    %c0_144 = arith.constant 0 : index
    %c3_145 = arith.constant 3 : index
    %c0_146 = arith.constant 0 : index
    %c0_147 = arith.constant 0 : index
    %174 = vector.load %arg8[%c0_144, %c3_145, %c0_146, %c0_147] : memref<2x4x1x8xf32, #tpu.memory_space<vmem>>, vector<1x1x1x8xf32>
    %175 = vector.shape_cast %174 : vector<1x1x1x8xf32> to vector<1x8xf32>
    %176 = vector.broadcast %175 : vector<1x8xf32> to vector<12x8xf32>
    %177 = arith.addf %173, %176 : vector<12x8xf32>
    %cst_148 = arith.constant dense<0.000000e+00> : vector<12x12xf32>
    %178 = tpu.matmul %163, %170, %cst_148 {dimension_numbers = #tpu.dot_dimension_numbers<[1], [1], [0], [0], [0, 0, 1, 0], [], []>} : vector<12x8xf32>, vector<12x8xf32>, vector<12x12xf32> -> vector<12x12xf32>
    %179 = arith.addf %178, %37 : vector<12x12xf32>
    %cst_149 = arith.constant dense<0xFF800000> : vector<12xf32>
    %180 = vector.multi_reduction <maximumf>, %179, %cst_149 [1] : vector<12x12xf32> to vector<12xf32>
    %181 = vector.shape_cast %180 : vector<12xf32> to vector<12x1xf32>
    %182 = vector.broadcast %181 : vector<12x1xf32> to vector<12x12xf32>
    %183 = arith.subf %179, %182 : vector<12x12xf32>
    %184 = math.exp %183 : vector<12x12xf32>
    %cst_150 = arith.constant dense<0.000000e+00> : vector<12xf32>
    %185 = vector.multi_reduction <add>, %184, %cst_150 [1] : vector<12x12xf32> to vector<12xf32>
    %186 = vector.shape_cast %185 : vector<12xf32> to vector<12x1xf32>
    %187 = tpu.reciprocal %186 {approx = true} : vector<12x1xf32> -> vector<12x1xf32>
    %188 = vector.broadcast %187 : vector<12x1xf32> to vector<12x12xf32>
    %189 = arith.mulf %184, %188 : vector<12x12xf32>
    %cst_151 = arith.constant dense<0.000000e+00> : vector<12x8xf32>
    %190 = tpu.matmul %189, %177, %cst_151 {dimension_numbers = #tpu.dot_dimension_numbers<[1], [0], [0], [1], [0, 0, 1, 1], [], []>} : vector<12x12xf32>, vector<12x8xf32>, vector<12x8xf32> -> vector<12x8xf32>
    %c0_152 = arith.constant 0 : index
    %c3_153 = arith.constant 3 : index
    %c0_154 = arith.constant 0 : index
    %c0_155 = arith.constant 0 : index
    %191 = vector.load %arg9[%c0_152, %c3_153, %c0_154, %c0_155] : memref<2x4x8x32xf32, #tpu.memory_space<vmem>>, vector<1x1x8x32xf32>
    %192 = vector.shape_cast %191 : vector<1x1x8x32xf32> to vector<8x32xf32>
    %cst_156 = arith.constant dense<0.000000e+00> : vector<12x32xf32>
    %193 = tpu.matmul %190, %192, %cst_156 {dimension_numbers = #tpu.dot_dimension_numbers<[1], [0], [0], [1], [0, 0, 1, 1], [], []>} : vector<12x8xf32>, vector<8x32xf32>, vector<12x32xf32> -> vector<12x32xf32>
    %194 = arith.addf %156, %193 : vector<12x32xf32>
    %c0_157 = arith.constant 0 : index
    %c0_158 = arith.constant 0 : index
    %c0_159 = arith.constant 0 : index
    %195 = vector.load %arg10[%c0_157, %c0_158, %c0_159] : memref<2x1x32xf32, #tpu.memory_space<vmem>>, vector<1x1x32xf32>
    %196 = vector.shape_cast %195 : vector<1x1x32xf32> to vector<1x32xf32>
    %197 = vector.broadcast %196 : vector<1x32xf32> to vector<12x32xf32>
    %198 = arith.addf %194, %197 : vector<12x32xf32>
    %199 = arith.addf %43, %198 : vector<12x32xf32>
    %c0_160 = arith.constant 0 : index
    %c0_161 = arith.constant 0 : index
    %c0_162 = arith.constant 0 : index
    %200 = vector.load %arg11[%c0_160, %c0_161, %c0_162] : memref<2x1x32xf32, #tpu.memory_space<vmem>>, vector<1x1x32xf32>
    %201 = vector.shape_cast %200 : vector<1x1x32xf32> to vector<1x32xf32>
    %c0_163 = arith.constant 0 : index
    %c0_164 = arith.constant 0 : index
    %c0_165 = arith.constant 0 : index
    %202 = vector.load %arg12[%c0_163, %c0_164, %c0_165] : memref<2x1x32xf32, #tpu.memory_space<vmem>>, vector<1x1x32xf32>
    %203 = vector.shape_cast %202 : vector<1x1x32xf32> to vector<1x32xf32>
    %cst_166 = arith.constant dense<0.000000e+00> : vector<12xf32>
    %204 = vector.multi_reduction <add>, %199, %cst_166 [1] : vector<12x32xf32> to vector<12xf32>
    %205 = vector.shape_cast %204 : vector<12xf32> to vector<12x1xf32>
    %cst_167 = arith.constant 3.200000e+01 : f32
    %206 = vector.broadcast %cst_167 : f32 to vector<12x1xf32>
    %207 = arith.divf %205, %206 : vector<12x1xf32>
    %208 = arith.mulf %199, %199 : vector<12x32xf32>
    %cst_168 = arith.constant dense<0.000000e+00> : vector<12xf32>
    %209 = vector.multi_reduction <add>, %208, %cst_168 [1] : vector<12x32xf32> to vector<12xf32>
    %210 = vector.shape_cast %209 : vector<12xf32> to vector<12x1xf32>
    %cst_169 = arith.constant 3.200000e+01 : f32
    %211 = vector.broadcast %cst_169 : f32 to vector<12x1xf32>
    %212 = arith.divf %210, %211 : vector<12x1xf32>
    %213 = arith.mulf %207, %207 : vector<12x1xf32>
    %214 = arith.subf %212, %213 : vector<12x1xf32>
    %215 = vector.broadcast %207 : vector<12x1xf32> to vector<12x32xf32>
    %216 = arith.subf %199, %215 : vector<12x32xf32>
    %cst_170 = arith.constant 9.99999974E-6 : f32
    %217 = vector.broadcast %cst_170 : f32 to vector<12x1xf32>
    %218 = arith.addf %214, %217 : vector<12x1xf32>
    %219 = math.rsqrt %218 : vector<12x1xf32>
    %220 = vector.broadcast %219 : vector<12x1xf32> to vector<12x32xf32>
    %221 = arith.mulf %216, %220 : vector<12x32xf32>
    %222 = vector.broadcast %201 : vector<1x32xf32> to vector<12x32xf32>
    %223 = arith.mulf %221, %222 : vector<12x32xf32>
    %224 = vector.broadcast %203 : vector<1x32xf32> to vector<12x32xf32>
    %225 = arith.addf %223, %224 : vector<12x32xf32>
    %c0_171 = arith.constant 0 : index
    %c0_172 = arith.constant 0 : index
    %c0_173 = arith.constant 0 : index
    %226 = vector.load %arg13[%c0_171, %c0_172, %c0_173] : memref<2x32x64xf32, #tpu.memory_space<vmem>>, vector<1x32x64xf32>
    %227 = vector.shape_cast %226 : vector<1x32x64xf32> to vector<32x64xf32>
    %cst_174 = arith.constant dense<0.000000e+00> : vector<12x64xf32>
    %228 = tpu.matmul %225, %227, %cst_174 {dimension_numbers = #tpu.dot_dimension_numbers<[1], [0], [0], [1], [0, 0, 1, 1], [], []>} : vector<12x32xf32>, vector<32x64xf32>, vector<12x64xf32> -> vector<12x64xf32>
    %c0_175 = arith.constant 0 : index
    %c0_176 = arith.constant 0 : index
    %c0_177 = arith.constant 0 : index
    %229 = vector.load %arg14[%c0_175, %c0_176, %c0_177] : memref<2x1x64xf32, #tpu.memory_space<vmem>>, vector<1x1x64xf32>
    %230 = vector.shape_cast %229 : vector<1x1x64xf32> to vector<1x64xf32>
    %231 = vector.broadcast %230 : vector<1x64xf32> to vector<12x64xf32>
    %232 = arith.addf %228, %231 : vector<12x64xf32>
    %cst_178 = arith.constant 0.000000e+00 : f32
    %233 = vector.broadcast %cst_178 : f32 to vector<12x64xf32>
    %234 = arith.maximumf %232, %233 : vector<12x64xf32>
    %c0_179 = arith.constant 0 : index
    %c0_180 = arith.constant 0 : index
    %c0_181 = arith.constant 0 : index
    %235 = vector.load %arg15[%c0_179, %c0_180, %c0_181] : memref<2x64x32xf32, #tpu.memory_space<vmem>>, vector<1x64x32xf32>
    %236 = vector.shape_cast %235 : vector<1x64x32xf32> to vector<64x32xf32>
    %cst_182 = arith.constant dense<0.000000e+00> : vector<12x32xf32>
    %237 = tpu.matmul %234, %236, %cst_182 {dimension_numbers = #tpu.dot_dimension_numbers<[1], [0], [0], [1], [0, 0, 1, 1], [], []>} : vector<12x64xf32>, vector<64x32xf32>, vector<12x32xf32> -> vector<12x32xf32>
    %c0_183 = arith.constant 0 : index
    %c0_184 = arith.constant 0 : index
    %c0_185 = arith.constant 0 : index
    %238 = vector.load %arg16[%c0_183, %c0_184, %c0_185] : memref<2x1x32xf32, #tpu.memory_space<vmem>>, vector<1x1x32xf32>
    %239 = vector.shape_cast %238 : vector<1x1x32xf32> to vector<1x32xf32>
    %240 = vector.broadcast %239 : vector<1x32xf32> to vector<12x32xf32>
    %241 = arith.addf %237, %240 : vector<12x32xf32>
    %242 = arith.addf %225, %241 : vector<12x32xf32>
    %c0_186 = arith.constant 0 : index
    %c0_187 = arith.constant 0 : index
    %c0_188 = arith.constant 0 : index
    %243 = vector.load %arg17[%c0_186, %c0_187, %c0_188] : memref<2x1x32xf32, #tpu.memory_space<vmem>>, vector<1x1x32xf32>
    %244 = vector.shape_cast %243 : vector<1x1x32xf32> to vector<1x32xf32>
    %c0_189 = arith.constant 0 : index
    %c0_190 = arith.constant 0 : index
    %c0_191 = arith.constant 0 : index
    %245 = vector.load %arg18[%c0_189, %c0_190, %c0_191] : memref<2x1x32xf32, #tpu.memory_space<vmem>>, vector<1x1x32xf32>
    %246 = vector.shape_cast %245 : vector<1x1x32xf32> to vector<1x32xf32>
    %cst_192 = arith.constant dense<0.000000e+00> : vector<12xf32>
    %247 = vector.multi_reduction <add>, %242, %cst_192 [1] : vector<12x32xf32> to vector<12xf32>
    %248 = vector.shape_cast %247 : vector<12xf32> to vector<12x1xf32>
    %cst_193 = arith.constant 3.200000e+01 : f32
    %249 = vector.broadcast %cst_193 : f32 to vector<12x1xf32>
    %250 = arith.divf %248, %249 : vector<12x1xf32>
    %251 = arith.mulf %242, %242 : vector<12x32xf32>
    %cst_194 = arith.constant dense<0.000000e+00> : vector<12xf32>
    %252 = vector.multi_reduction <add>, %251, %cst_194 [1] : vector<12x32xf32> to vector<12xf32>
    %253 = vector.shape_cast %252 : vector<12xf32> to vector<12x1xf32>
    %cst_195 = arith.constant 3.200000e+01 : f32
    %254 = vector.broadcast %cst_195 : f32 to vector<12x1xf32>
    %255 = arith.divf %253, %254 : vector<12x1xf32>
    %256 = arith.mulf %250, %250 : vector<12x1xf32>
    %257 = arith.subf %255, %256 : vector<12x1xf32>
    %258 = vector.broadcast %250 : vector<12x1xf32> to vector<12x32xf32>
    %259 = arith.subf %242, %258 : vector<12x32xf32>
    %cst_196 = arith.constant 9.99999974E-6 : f32
    %260 = vector.broadcast %cst_196 : f32 to vector<12x1xf32>
    %261 = arith.addf %257, %260 : vector<12x1xf32>
    %262 = math.rsqrt %261 : vector<12x1xf32>
    %263 = vector.broadcast %262 : vector<12x1xf32> to vector<12x32xf32>
    %264 = arith.mulf %259, %263 : vector<12x32xf32>
    %265 = vector.broadcast %244 : vector<1x32xf32> to vector<12x32xf32>
    %266 = arith.mulf %264, %265 : vector<12x32xf32>
    %267 = vector.broadcast %246 : vector<1x32xf32> to vector<12x32xf32>
    %268 = arith.addf %266, %267 : vector<12x32xf32>
    %c1_197 = arith.constant 1 : index
    %c0_198 = arith.constant 0 : index
    %c0_199 = arith.constant 0 : index
    %c0_200 = arith.constant 0 : index
    %269 = vector.load %arg3[%c1_197, %c0_198, %c0_199, %c0_200] : memref<2x4x32x8xf32, #tpu.memory_space<vmem>>, vector<1x1x32x8xf32>
    %270 = vector.shape_cast %269 : vector<1x1x32x8xf32> to vector<32x8xf32>
    %cst_201 = arith.constant dense<0.000000e+00> : vector<12x8xf32>
    %271 = tpu.matmul %268, %270, %cst_201 {dimension_numbers = #tpu.dot_dimension_numbers<[1], [0], [0], [1], [0, 0, 1, 1], [], []>} : vector<12x32xf32>, vector<32x8xf32>, vector<12x8xf32> -> vector<12x8xf32>
    %c1_202 = arith.constant 1 : index
    %c0_203 = arith.constant 0 : index
    %c0_204 = arith.constant 0 : index
    %c0_205 = arith.constant 0 : index
    %272 = vector.load %arg4[%c1_202, %c0_203, %c0_204, %c0_205] : memref<2x4x1x8xf32, #tpu.memory_space<vmem>>, vector<1x1x1x8xf32>
    %273 = vector.shape_cast %272 : vector<1x1x1x8xf32> to vector<1x8xf32>
    %274 = vector.broadcast %273 : vector<1x8xf32> to vector<12x8xf32>
    %275 = arith.addf %271, %274 : vector<12x8xf32>
    %c1_206 = arith.constant 1 : index
    %c0_207 = arith.constant 0 : index
    %c0_208 = arith.constant 0 : index
    %c0_209 = arith.constant 0 : index
    %276 = vector.load %arg5[%c1_206, %c0_207, %c0_208, %c0_209] : memref<2x4x32x8xf32, #tpu.memory_space<vmem>>, vector<1x1x32x8xf32>
    %277 = vector.shape_cast %276 : vector<1x1x32x8xf32> to vector<32x8xf32>
    %cst_210 = arith.constant dense<0.000000e+00> : vector<12x8xf32>
    %278 = tpu.matmul %268, %277, %cst_210 {dimension_numbers = #tpu.dot_dimension_numbers<[1], [0], [0], [1], [0, 0, 1, 1], [], []>} : vector<12x32xf32>, vector<32x8xf32>, vector<12x8xf32> -> vector<12x8xf32>
    %c1_211 = arith.constant 1 : index
    %c0_212 = arith.constant 0 : index
    %c0_213 = arith.constant 0 : index
    %c0_214 = arith.constant 0 : index
    %279 = vector.load %arg6[%c1_211, %c0_212, %c0_213, %c0_214] : memref<2x4x1x8xf32, #tpu.memory_space<vmem>>, vector<1x1x1x8xf32>
    %280 = vector.shape_cast %279 : vector<1x1x1x8xf32> to vector<1x8xf32>
    %281 = vector.broadcast %280 : vector<1x8xf32> to vector<12x8xf32>
    %282 = arith.addf %278, %281 : vector<12x8xf32>
    %c1_215 = arith.constant 1 : index
    %c0_216 = arith.constant 0 : index
    %c0_217 = arith.constant 0 : index
    %c0_218 = arith.constant 0 : index
    %283 = vector.load %arg7[%c1_215, %c0_216, %c0_217, %c0_218] : memref<2x4x32x8xf32, #tpu.memory_space<vmem>>, vector<1x1x32x8xf32>
    %284 = vector.shape_cast %283 : vector<1x1x32x8xf32> to vector<32x8xf32>
    %cst_219 = arith.constant dense<0.000000e+00> : vector<12x8xf32>
    %285 = tpu.matmul %268, %284, %cst_219 {dimension_numbers = #tpu.dot_dimension_numbers<[1], [0], [0], [1], [0, 0, 1, 1], [], []>} : vector<12x32xf32>, vector<32x8xf32>, vector<12x8xf32> -> vector<12x8xf32>
    %c1_220 = arith.constant 1 : index
    %c0_221 = arith.constant 0 : index
    %c0_222 = arith.constant 0 : index
    %c0_223 = arith.constant 0 : index
    %286 = vector.load %arg8[%c1_220, %c0_221, %c0_222, %c0_223] : memref<2x4x1x8xf32, #tpu.memory_space<vmem>>, vector<1x1x1x8xf32>
    %287 = vector.shape_cast %286 : vector<1x1x1x8xf32> to vector<1x8xf32>
    %288 = vector.broadcast %287 : vector<1x8xf32> to vector<12x8xf32>
    %289 = arith.addf %285, %288 : vector<12x8xf32>
    %cst_224 = arith.constant dense<0.000000e+00> : vector<12x12xf32>
    %290 = tpu.matmul %275, %282, %cst_224 {dimension_numbers = #tpu.dot_dimension_numbers<[1], [1], [0], [0], [0, 0, 1, 0], [], []>} : vector<12x8xf32>, vector<12x8xf32>, vector<12x12xf32> -> vector<12x12xf32>
    %291 = arith.addf %290, %37 : vector<12x12xf32>
    %cst_225 = arith.constant dense<0xFF800000> : vector<12xf32>
    %292 = vector.multi_reduction <maximumf>, %291, %cst_225 [1] : vector<12x12xf32> to vector<12xf32>
    %293 = vector.shape_cast %292 : vector<12xf32> to vector<12x1xf32>
    %294 = vector.broadcast %293 : vector<12x1xf32> to vector<12x12xf32>
    %295 = arith.subf %291, %294 : vector<12x12xf32>
    %296 = math.exp %295 : vector<12x12xf32>
    %cst_226 = arith.constant dense<0.000000e+00> : vector<12xf32>
    %297 = vector.multi_reduction <add>, %296, %cst_226 [1] : vector<12x12xf32> to vector<12xf32>
    %298 = vector.shape_cast %297 : vector<12xf32> to vector<12x1xf32>
    %299 = tpu.reciprocal %298 {approx = true} : vector<12x1xf32> -> vector<12x1xf32>
    %300 = vector.broadcast %299 : vector<12x1xf32> to vector<12x12xf32>
    %301 = arith.mulf %296, %300 : vector<12x12xf32>
    %cst_227 = arith.constant dense<0.000000e+00> : vector<12x8xf32>
    %302 = tpu.matmul %301, %289, %cst_227 {dimension_numbers = #tpu.dot_dimension_numbers<[1], [0], [0], [1], [0, 0, 1, 1], [], []>} : vector<12x12xf32>, vector<12x8xf32>, vector<12x8xf32> -> vector<12x8xf32>
    %c1_228 = arith.constant 1 : index
    %c0_229 = arith.constant 0 : index
    %c0_230 = arith.constant 0 : index
    %c0_231 = arith.constant 0 : index
    %303 = vector.load %arg9[%c1_228, %c0_229, %c0_230, %c0_231] : memref<2x4x8x32xf32, #tpu.memory_space<vmem>>, vector<1x1x8x32xf32>
    %304 = vector.shape_cast %303 : vector<1x1x8x32xf32> to vector<8x32xf32>
    %cst_232 = arith.constant dense<0.000000e+00> : vector<12x32xf32>
    %305 = tpu.matmul %302, %304, %cst_232 {dimension_numbers = #tpu.dot_dimension_numbers<[1], [0], [0], [1], [0, 0, 1, 1], [], []>} : vector<12x8xf32>, vector<8x32xf32>, vector<12x32xf32> -> vector<12x32xf32>
    %c1_233 = arith.constant 1 : index
    %c1_234 = arith.constant 1 : index
    %c0_235 = arith.constant 0 : index
    %c0_236 = arith.constant 0 : index
    %306 = vector.load %arg3[%c1_233, %c1_234, %c0_235, %c0_236] : memref<2x4x32x8xf32, #tpu.memory_space<vmem>>, vector<1x1x32x8xf32>
    %307 = vector.shape_cast %306 : vector<1x1x32x8xf32> to vector<32x8xf32>
    %cst_237 = arith.constant dense<0.000000e+00> : vector<12x8xf32>
    %308 = tpu.matmul %268, %307, %cst_237 {dimension_numbers = #tpu.dot_dimension_numbers<[1], [0], [0], [1], [0, 0, 1, 1], [], []>} : vector<12x32xf32>, vector<32x8xf32>, vector<12x8xf32> -> vector<12x8xf32>
    %c1_238 = arith.constant 1 : index
    %c1_239 = arith.constant 1 : index
    %c0_240 = arith.constant 0 : index
    %c0_241 = arith.constant 0 : index
    %309 = vector.load %arg4[%c1_238, %c1_239, %c0_240, %c0_241] : memref<2x4x1x8xf32, #tpu.memory_space<vmem>>, vector<1x1x1x8xf32>
    %310 = vector.shape_cast %309 : vector<1x1x1x8xf32> to vector<1x8xf32>
    %311 = vector.broadcast %310 : vector<1x8xf32> to vector<12x8xf32>
    %312 = arith.addf %308, %311 : vector<12x8xf32>
    %c1_242 = arith.constant 1 : index
    %c1_243 = arith.constant 1 : index
    %c0_244 = arith.constant 0 : index
    %c0_245 = arith.constant 0 : index
    %313 = vector.load %arg5[%c1_242, %c1_243, %c0_244, %c0_245] : memref<2x4x32x8xf32, #tpu.memory_space<vmem>>, vector<1x1x32x8xf32>
    %314 = vector.shape_cast %313 : vector<1x1x32x8xf32> to vector<32x8xf32>
    %cst_246 = arith.constant dense<0.000000e+00> : vector<12x8xf32>
    %315 = tpu.matmul %268, %314, %cst_246 {dimension_numbers = #tpu.dot_dimension_numbers<[1], [0], [0], [1], [0, 0, 1, 1], [], []>} : vector<12x32xf32>, vector<32x8xf32>, vector<12x8xf32> -> vector<12x8xf32>
    %c1_247 = arith.constant 1 : index
    %c1_248 = arith.constant 1 : index
    %c0_249 = arith.constant 0 : index
    %c0_250 = arith.constant 0 : index
    %316 = vector.load %arg6[%c1_247, %c1_248, %c0_249, %c0_250] : memref<2x4x1x8xf32, #tpu.memory_space<vmem>>, vector<1x1x1x8xf32>
    %317 = vector.shape_cast %316 : vector<1x1x1x8xf32> to vector<1x8xf32>
    %318 = vector.broadcast %317 : vector<1x8xf32> to vector<12x8xf32>
    %319 = arith.addf %315, %318 : vector<12x8xf32>
    %c1_251 = arith.constant 1 : index
    %c1_252 = arith.constant 1 : index
    %c0_253 = arith.constant 0 : index
    %c0_254 = arith.constant 0 : index
    %320 = vector.load %arg7[%c1_251, %c1_252, %c0_253, %c0_254] : memref<2x4x32x8xf32, #tpu.memory_space<vmem>>, vector<1x1x32x8xf32>
    %321 = vector.shape_cast %320 : vector<1x1x32x8xf32> to vector<32x8xf32>
    %cst_255 = arith.constant dense<0.000000e+00> : vector<12x8xf32>
    %322 = tpu.matmul %268, %321, %cst_255 {dimension_numbers = #tpu.dot_dimension_numbers<[1], [0], [0], [1], [0, 0, 1, 1], [], []>} : vector<12x32xf32>, vector<32x8xf32>, vector<12x8xf32> -> vector<12x8xf32>
    %c1_256 = arith.constant 1 : index
    %c1_257 = arith.constant 1 : index
    %c0_258 = arith.constant 0 : index
    %c0_259 = arith.constant 0 : index
    %323 = vector.load %arg8[%c1_256, %c1_257, %c0_258, %c0_259] : memref<2x4x1x8xf32, #tpu.memory_space<vmem>>, vector<1x1x1x8xf32>
    %324 = vector.shape_cast %323 : vector<1x1x1x8xf32> to vector<1x8xf32>
    %325 = vector.broadcast %324 : vector<1x8xf32> to vector<12x8xf32>
    %326 = arith.addf %322, %325 : vector<12x8xf32>
    %cst_260 = arith.constant dense<0.000000e+00> : vector<12x12xf32>
    %327 = tpu.matmul %312, %319, %cst_260 {dimension_numbers = #tpu.dot_dimension_numbers<[1], [1], [0], [0], [0, 0, 1, 0], [], []>} : vector<12x8xf32>, vector<12x8xf32>, vector<12x12xf32> -> vector<12x12xf32>
    %328 = arith.addf %327, %37 : vector<12x12xf32>
    %cst_261 = arith.constant dense<0xFF800000> : vector<12xf32>
    %329 = vector.multi_reduction <maximumf>, %328, %cst_261 [1] : vector<12x12xf32> to vector<12xf32>
    %330 = vector.shape_cast %329 : vector<12xf32> to vector<12x1xf32>
    %331 = vector.broadcast %330 : vector<12x1xf32> to vector<12x12xf32>
    %332 = arith.subf %328, %331 : vector<12x12xf32>
    %333 = math.exp %332 : vector<12x12xf32>
    %cst_262 = arith.constant dense<0.000000e+00> : vector<12xf32>
    %334 = vector.multi_reduction <add>, %333, %cst_262 [1] : vector<12x12xf32> to vector<12xf32>
    %335 = vector.shape_cast %334 : vector<12xf32> to vector<12x1xf32>
    %336 = tpu.reciprocal %335 {approx = true} : vector<12x1xf32> -> vector<12x1xf32>
    %337 = vector.broadcast %336 : vector<12x1xf32> to vector<12x12xf32>
    %338 = arith.mulf %333, %337 : vector<12x12xf32>
    %cst_263 = arith.constant dense<0.000000e+00> : vector<12x8xf32>
    %339 = tpu.matmul %338, %326, %cst_263 {dimension_numbers = #tpu.dot_dimension_numbers<[1], [0], [0], [1], [0, 0, 1, 1], [], []>} : vector<12x12xf32>, vector<12x8xf32>, vector<12x8xf32> -> vector<12x8xf32>
    %c1_264 = arith.constant 1 : index
    %c1_265 = arith.constant 1 : index
    %c0_266 = arith.constant 0 : index
    %c0_267 = arith.constant 0 : index
    %340 = vector.load %arg9[%c1_264, %c1_265, %c0_266, %c0_267] : memref<2x4x8x32xf32, #tpu.memory_space<vmem>>, vector<1x1x8x32xf32>
    %341 = vector.shape_cast %340 : vector<1x1x8x32xf32> to vector<8x32xf32>
    %cst_268 = arith.constant dense<0.000000e+00> : vector<12x32xf32>
    %342 = tpu.matmul %339, %341, %cst_268 {dimension_numbers = #tpu.dot_dimension_numbers<[1], [0], [0], [1], [0, 0, 1, 1], [], []>} : vector<12x8xf32>, vector<8x32xf32>, vector<12x32xf32> -> vector<12x32xf32>
    %343 = arith.addf %305, %342 : vector<12x32xf32>
    %c1_269 = arith.constant 1 : index
    %c2_270 = arith.constant 2 : index
    %c0_271 = arith.constant 0 : index
    %c0_272 = arith.constant 0 : index
    %344 = vector.load %arg3[%c1_269, %c2_270, %c0_271, %c0_272] : memref<2x4x32x8xf32, #tpu.memory_space<vmem>>, vector<1x1x32x8xf32>
    %345 = vector.shape_cast %344 : vector<1x1x32x8xf32> to vector<32x8xf32>
    %cst_273 = arith.constant dense<0.000000e+00> : vector<12x8xf32>
    %346 = tpu.matmul %268, %345, %cst_273 {dimension_numbers = #tpu.dot_dimension_numbers<[1], [0], [0], [1], [0, 0, 1, 1], [], []>} : vector<12x32xf32>, vector<32x8xf32>, vector<12x8xf32> -> vector<12x8xf32>
    %c1_274 = arith.constant 1 : index
    %c2_275 = arith.constant 2 : index
    %c0_276 = arith.constant 0 : index
    %c0_277 = arith.constant 0 : index
    %347 = vector.load %arg4[%c1_274, %c2_275, %c0_276, %c0_277] : memref<2x4x1x8xf32, #tpu.memory_space<vmem>>, vector<1x1x1x8xf32>
    %348 = vector.shape_cast %347 : vector<1x1x1x8xf32> to vector<1x8xf32>
    %349 = vector.broadcast %348 : vector<1x8xf32> to vector<12x8xf32>
    %350 = arith.addf %346, %349 : vector<12x8xf32>
    %c1_278 = arith.constant 1 : index
    %c2_279 = arith.constant 2 : index
    %c0_280 = arith.constant 0 : index
    %c0_281 = arith.constant 0 : index
    %351 = vector.load %arg5[%c1_278, %c2_279, %c0_280, %c0_281] : memref<2x4x32x8xf32, #tpu.memory_space<vmem>>, vector<1x1x32x8xf32>
    %352 = vector.shape_cast %351 : vector<1x1x32x8xf32> to vector<32x8xf32>
    %cst_282 = arith.constant dense<0.000000e+00> : vector<12x8xf32>
    %353 = tpu.matmul %268, %352, %cst_282 {dimension_numbers = #tpu.dot_dimension_numbers<[1], [0], [0], [1], [0, 0, 1, 1], [], []>} : vector<12x32xf32>, vector<32x8xf32>, vector<12x8xf32> -> vector<12x8xf32>
    %c1_283 = arith.constant 1 : index
    %c2_284 = arith.constant 2 : index
    %c0_285 = arith.constant 0 : index
    %c0_286 = arith.constant 0 : index
    %354 = vector.load %arg6[%c1_283, %c2_284, %c0_285, %c0_286] : memref<2x4x1x8xf32, #tpu.memory_space<vmem>>, vector<1x1x1x8xf32>
    %355 = vector.shape_cast %354 : vector<1x1x1x8xf32> to vector<1x8xf32>
    %356 = vector.broadcast %355 : vector<1x8xf32> to vector<12x8xf32>
    %357 = arith.addf %353, %356 : vector<12x8xf32>
    %c1_287 = arith.constant 1 : index
    %c2_288 = arith.constant 2 : index
    %c0_289 = arith.constant 0 : index
    %c0_290 = arith.constant 0 : index
    %358 = vector.load %arg7[%c1_287, %c2_288, %c0_289, %c0_290] : memref<2x4x32x8xf32, #tpu.memory_space<vmem>>, vector<1x1x32x8xf32>
    %359 = vector.shape_cast %358 : vector<1x1x32x8xf32> to vector<32x8xf32>
    %cst_291 = arith.constant dense<0.000000e+00> : vector<12x8xf32>
    %360 = tpu.matmul %268, %359, %cst_291 {dimension_numbers = #tpu.dot_dimension_numbers<[1], [0], [0], [1], [0, 0, 1, 1], [], []>} : vector<12x32xf32>, vector<32x8xf32>, vector<12x8xf32> -> vector<12x8xf32>
    %c1_292 = arith.constant 1 : index
    %c2_293 = arith.constant 2 : index
    %c0_294 = arith.constant 0 : index
    %c0_295 = arith.constant 0 : index
    %361 = vector.load %arg8[%c1_292, %c2_293, %c0_294, %c0_295] : memref<2x4x1x8xf32, #tpu.memory_space<vmem>>, vector<1x1x1x8xf32>
    %362 = vector.shape_cast %361 : vector<1x1x1x8xf32> to vector<1x8xf32>
    %363 = vector.broadcast %362 : vector<1x8xf32> to vector<12x8xf32>
    %364 = arith.addf %360, %363 : vector<12x8xf32>
    %cst_296 = arith.constant dense<0.000000e+00> : vector<12x12xf32>
    %365 = tpu.matmul %350, %357, %cst_296 {dimension_numbers = #tpu.dot_dimension_numbers<[1], [1], [0], [0], [0, 0, 1, 0], [], []>} : vector<12x8xf32>, vector<12x8xf32>, vector<12x12xf32> -> vector<12x12xf32>
    %366 = arith.addf %365, %37 : vector<12x12xf32>
    %cst_297 = arith.constant dense<0xFF800000> : vector<12xf32>
    %367 = vector.multi_reduction <maximumf>, %366, %cst_297 [1] : vector<12x12xf32> to vector<12xf32>
    %368 = vector.shape_cast %367 : vector<12xf32> to vector<12x1xf32>
    %369 = vector.broadcast %368 : vector<12x1xf32> to vector<12x12xf32>
    %370 = arith.subf %366, %369 : vector<12x12xf32>
    %371 = math.exp %370 : vector<12x12xf32>
    %cst_298 = arith.constant dense<0.000000e+00> : vector<12xf32>
    %372 = vector.multi_reduction <add>, %371, %cst_298 [1] : vector<12x12xf32> to vector<12xf32>
    %373 = vector.shape_cast %372 : vector<12xf32> to vector<12x1xf32>
    %374 = tpu.reciprocal %373 {approx = true} : vector<12x1xf32> -> vector<12x1xf32>
    %375 = vector.broadcast %374 : vector<12x1xf32> to vector<12x12xf32>
    %376 = arith.mulf %371, %375 : vector<12x12xf32>
    %cst_299 = arith.constant dense<0.000000e+00> : vector<12x8xf32>
    %377 = tpu.matmul %376, %364, %cst_299 {dimension_numbers = #tpu.dot_dimension_numbers<[1], [0], [0], [1], [0, 0, 1, 1], [], []>} : vector<12x12xf32>, vector<12x8xf32>, vector<12x8xf32> -> vector<12x8xf32>
    %c1_300 = arith.constant 1 : index
    %c2_301 = arith.constant 2 : index
    %c0_302 = arith.constant 0 : index
    %c0_303 = arith.constant 0 : index
    %378 = vector.load %arg9[%c1_300, %c2_301, %c0_302, %c0_303] : memref<2x4x8x32xf32, #tpu.memory_space<vmem>>, vector<1x1x8x32xf32>
    %379 = vector.shape_cast %378 : vector<1x1x8x32xf32> to vector<8x32xf32>
    %cst_304 = arith.constant dense<0.000000e+00> : vector<12x32xf32>
    %380 = tpu.matmul %377, %379, %cst_304 {dimension_numbers = #tpu.dot_dimension_numbers<[1], [0], [0], [1], [0, 0, 1, 1], [], []>} : vector<12x8xf32>, vector<8x32xf32>, vector<12x32xf32> -> vector<12x32xf32>
    %381 = arith.addf %343, %380 : vector<12x32xf32>
    %c1_305 = arith.constant 1 : index
    %c3_306 = arith.constant 3 : index
    %c0_307 = arith.constant 0 : index
    %c0_308 = arith.constant 0 : index
    %382 = vector.load %arg3[%c1_305, %c3_306, %c0_307, %c0_308] : memref<2x4x32x8xf32, #tpu.memory_space<vmem>>, vector<1x1x32x8xf32>
    %383 = vector.shape_cast %382 : vector<1x1x32x8xf32> to vector<32x8xf32>
    %cst_309 = arith.constant dense<0.000000e+00> : vector<12x8xf32>
    %384 = tpu.matmul %268, %383, %cst_309 {dimension_numbers = #tpu.dot_dimension_numbers<[1], [0], [0], [1], [0, 0, 1, 1], [], []>} : vector<12x32xf32>, vector<32x8xf32>, vector<12x8xf32> -> vector<12x8xf32>
    %c1_310 = arith.constant 1 : index
    %c3_311 = arith.constant 3 : index
    %c0_312 = arith.constant 0 : index
    %c0_313 = arith.constant 0 : index
    %385 = vector.load %arg4[%c1_310, %c3_311, %c0_312, %c0_313] : memref<2x4x1x8xf32, #tpu.memory_space<vmem>>, vector<1x1x1x8xf32>
    %386 = vector.shape_cast %385 : vector<1x1x1x8xf32> to vector<1x8xf32>
    %387 = vector.broadcast %386 : vector<1x8xf32> to vector<12x8xf32>
    %388 = arith.addf %384, %387 : vector<12x8xf32>
    %c1_314 = arith.constant 1 : index
    %c3_315 = arith.constant 3 : index
    %c0_316 = arith.constant 0 : index
    %c0_317 = arith.constant 0 : index
    %389 = vector.load %arg5[%c1_314, %c3_315, %c0_316, %c0_317] : memref<2x4x32x8xf32, #tpu.memory_space<vmem>>, vector<1x1x32x8xf32>
    %390 = vector.shape_cast %389 : vector<1x1x32x8xf32> to vector<32x8xf32>
    %cst_318 = arith.constant dense<0.000000e+00> : vector<12x8xf32>
    %391 = tpu.matmul %268, %390, %cst_318 {dimension_numbers = #tpu.dot_dimension_numbers<[1], [0], [0], [1], [0, 0, 1, 1], [], []>} : vector<12x32xf32>, vector<32x8xf32>, vector<12x8xf32> -> vector<12x8xf32>
    %c1_319 = arith.constant 1 : index
    %c3_320 = arith.constant 3 : index
    %c0_321 = arith.constant 0 : index
    %c0_322 = arith.constant 0 : index
    %392 = vector.load %arg6[%c1_319, %c3_320, %c0_321, %c0_322] : memref<2x4x1x8xf32, #tpu.memory_space<vmem>>, vector<1x1x1x8xf32>
    %393 = vector.shape_cast %392 : vector<1x1x1x8xf32> to vector<1x8xf32>
    %394 = vector.broadcast %393 : vector<1x8xf32> to vector<12x8xf32>
    %395 = arith.addf %391, %394 : vector<12x8xf32>
    %c1_323 = arith.constant 1 : index
    %c3_324 = arith.constant 3 : index
    %c0_325 = arith.constant 0 : index
    %c0_326 = arith.constant 0 : index
    %396 = vector.load %arg7[%c1_323, %c3_324, %c0_325, %c0_326] : memref<2x4x32x8xf32, #tpu.memory_space<vmem>>, vector<1x1x32x8xf32>
    %397 = vector.shape_cast %396 : vector<1x1x32x8xf32> to vector<32x8xf32>
    %cst_327 = arith.constant dense<0.000000e+00> : vector<12x8xf32>
    %398 = tpu.matmul %268, %397, %cst_327 {dimension_numbers = #tpu.dot_dimension_numbers<[1], [0], [0], [1], [0, 0, 1, 1], [], []>} : vector<12x32xf32>, vector<32x8xf32>, vector<12x8xf32> -> vector<12x8xf32>
    %c1_328 = arith.constant 1 : index
    %c3_329 = arith.constant 3 : index
    %c0_330 = arith.constant 0 : index
    %c0_331 = arith.constant 0 : index
    %399 = vector.load %arg8[%c1_328, %c3_329, %c0_330, %c0_331] : memref<2x4x1x8xf32, #tpu.memory_space<vmem>>, vector<1x1x1x8xf32>
    %400 = vector.shape_cast %399 : vector<1x1x1x8xf32> to vector<1x8xf32>
    %401 = vector.broadcast %400 : vector<1x8xf32> to vector<12x8xf32>
    %402 = arith.addf %398, %401 : vector<12x8xf32>
    %cst_332 = arith.constant dense<0.000000e+00> : vector<12x12xf32>
    %403 = tpu.matmul %388, %395, %cst_332 {dimension_numbers = #tpu.dot_dimension_numbers<[1], [1], [0], [0], [0, 0, 1, 0], [], []>} : vector<12x8xf32>, vector<12x8xf32>, vector<12x12xf32> -> vector<12x12xf32>
    %404 = arith.addf %403, %37 : vector<12x12xf32>
    %cst_333 = arith.constant dense<0xFF800000> : vector<12xf32>
    %405 = vector.multi_reduction <maximumf>, %404, %cst_333 [1] : vector<12x12xf32> to vector<12xf32>
    %406 = vector.shape_cast %405 : vector<12xf32> to vector<12x1xf32>
    %407 = vector.broadcast %406 : vector<12x1xf32> to vector<12x12xf32>
    %408 = arith.subf %404, %407 : vector<12x12xf32>
    %409 = math.exp %408 : vector<12x12xf32>
    %cst_334 = arith.constant dense<0.000000e+00> : vector<12xf32>
    %410 = vector.multi_reduction <add>, %409, %cst_334 [1] : vector<12x12xf32> to vector<12xf32>
    %411 = vector.shape_cast %410 : vector<12xf32> to vector<12x1xf32>
    %412 = tpu.reciprocal %411 {approx = true} : vector<12x1xf32> -> vector<12x1xf32>
    %413 = vector.broadcast %412 : vector<12x1xf32> to vector<12x12xf32>
    %414 = arith.mulf %409, %413 : vector<12x12xf32>
    %cst_335 = arith.constant dense<0.000000e+00> : vector<12x8xf32>
    %415 = tpu.matmul %414, %402, %cst_335 {dimension_numbers = #tpu.dot_dimension_numbers<[1], [0], [0], [1], [0, 0, 1, 1], [], []>} : vector<12x12xf32>, vector<12x8xf32>, vector<12x8xf32> -> vector<12x8xf32>
    %c1_336 = arith.constant 1 : index
    %c3_337 = arith.constant 3 : index
    %c0_338 = arith.constant 0 : index
    %c0_339 = arith.constant 0 : index
    %416 = vector.load %arg9[%c1_336, %c3_337, %c0_338, %c0_339] : memref<2x4x8x32xf32, #tpu.memory_space<vmem>>, vector<1x1x8x32xf32>
    %417 = vector.shape_cast %416 : vector<1x1x8x32xf32> to vector<8x32xf32>
    %cst_340 = arith.constant dense<0.000000e+00> : vector<12x32xf32>
    %418 = tpu.matmul %415, %417, %cst_340 {dimension_numbers = #tpu.dot_dimension_numbers<[1], [0], [0], [1], [0, 0, 1, 1], [], []>} : vector<12x8xf32>, vector<8x32xf32>, vector<12x32xf32> -> vector<12x32xf32>
    %419 = arith.addf %381, %418 : vector<12x32xf32>
    %c1_341 = arith.constant 1 : index
    %c0_342 = arith.constant 0 : index
    %c0_343 = arith.constant 0 : index
    %420 = vector.load %arg10[%c1_341, %c0_342, %c0_343] : memref<2x1x32xf32, #tpu.memory_space<vmem>>, vector<1x1x32xf32>
    %421 = vector.shape_cast %420 : vector<1x1x32xf32> to vector<1x32xf32>
    %422 = vector.broadcast %421 : vector<1x32xf32> to vector<12x32xf32>
    %423 = arith.addf %419, %422 : vector<12x32xf32>
    %424 = arith.addf %268, %423 : vector<12x32xf32>
    %c1_344 = arith.constant 1 : index
    %c0_345 = arith.constant 0 : index
    %c0_346 = arith.constant 0 : index
    %425 = vector.load %arg11[%c1_344, %c0_345, %c0_346] : memref<2x1x32xf32, #tpu.memory_space<vmem>>, vector<1x1x32xf32>
    %426 = vector.shape_cast %425 : vector<1x1x32xf32> to vector<1x32xf32>
    %c1_347 = arith.constant 1 : index
    %c0_348 = arith.constant 0 : index
    %c0_349 = arith.constant 0 : index
    %427 = vector.load %arg12[%c1_347, %c0_348, %c0_349] : memref<2x1x32xf32, #tpu.memory_space<vmem>>, vector<1x1x32xf32>
    %428 = vector.shape_cast %427 : vector<1x1x32xf32> to vector<1x32xf32>
    %cst_350 = arith.constant dense<0.000000e+00> : vector<12xf32>
    %429 = vector.multi_reduction <add>, %424, %cst_350 [1] : vector<12x32xf32> to vector<12xf32>
    %430 = vector.shape_cast %429 : vector<12xf32> to vector<12x1xf32>
    %cst_351 = arith.constant 3.200000e+01 : f32
    %431 = vector.broadcast %cst_351 : f32 to vector<12x1xf32>
    %432 = arith.divf %430, %431 : vector<12x1xf32>
    %433 = arith.mulf %424, %424 : vector<12x32xf32>
    %cst_352 = arith.constant dense<0.000000e+00> : vector<12xf32>
    %434 = vector.multi_reduction <add>, %433, %cst_352 [1] : vector<12x32xf32> to vector<12xf32>
    %435 = vector.shape_cast %434 : vector<12xf32> to vector<12x1xf32>
    %cst_353 = arith.constant 3.200000e+01 : f32
    %436 = vector.broadcast %cst_353 : f32 to vector<12x1xf32>
    %437 = arith.divf %435, %436 : vector<12x1xf32>
    %438 = arith.mulf %432, %432 : vector<12x1xf32>
    %439 = arith.subf %437, %438 : vector<12x1xf32>
    %440 = vector.broadcast %432 : vector<12x1xf32> to vector<12x32xf32>
    %441 = arith.subf %424, %440 : vector<12x32xf32>
    %cst_354 = arith.constant 9.99999974E-6 : f32
    %442 = vector.broadcast %cst_354 : f32 to vector<12x1xf32>
    %443 = arith.addf %439, %442 : vector<12x1xf32>
    %444 = math.rsqrt %443 : vector<12x1xf32>
    %445 = vector.broadcast %444 : vector<12x1xf32> to vector<12x32xf32>
    %446 = arith.mulf %441, %445 : vector<12x32xf32>
    %447 = vector.broadcast %426 : vector<1x32xf32> to vector<12x32xf32>
    %448 = arith.mulf %446, %447 : vector<12x32xf32>
    %449 = vector.broadcast %428 : vector<1x32xf32> to vector<12x32xf32>
    %450 = arith.addf %448, %449 : vector<12x32xf32>
    %c1_355 = arith.constant 1 : index
    %c0_356 = arith.constant 0 : index
    %c0_357 = arith.constant 0 : index
    %451 = vector.load %arg13[%c1_355, %c0_356, %c0_357] : memref<2x32x64xf32, #tpu.memory_space<vmem>>, vector<1x32x64xf32>
    %452 = vector.shape_cast %451 : vector<1x32x64xf32> to vector<32x64xf32>
    %cst_358 = arith.constant dense<0.000000e+00> : vector<12x64xf32>
    %453 = tpu.matmul %450, %452, %cst_358 {dimension_numbers = #tpu.dot_dimension_numbers<[1], [0], [0], [1], [0, 0, 1, 1], [], []>} : vector<12x32xf32>, vector<32x64xf32>, vector<12x64xf32> -> vector<12x64xf32>
    %c1_359 = arith.constant 1 : index
    %c0_360 = arith.constant 0 : index
    %c0_361 = arith.constant 0 : index
    %454 = vector.load %arg14[%c1_359, %c0_360, %c0_361] : memref<2x1x64xf32, #tpu.memory_space<vmem>>, vector<1x1x64xf32>
    %455 = vector.shape_cast %454 : vector<1x1x64xf32> to vector<1x64xf32>
    %456 = vector.broadcast %455 : vector<1x64xf32> to vector<12x64xf32>
    %457 = arith.addf %453, %456 : vector<12x64xf32>
    %cst_362 = arith.constant 0.000000e+00 : f32
    %458 = vector.broadcast %cst_362 : f32 to vector<12x64xf32>
    %459 = arith.maximumf %457, %458 : vector<12x64xf32>
    %c1_363 = arith.constant 1 : index
    %c0_364 = arith.constant 0 : index
    %c0_365 = arith.constant 0 : index
    %460 = vector.load %arg15[%c1_363, %c0_364, %c0_365] : memref<2x64x32xf32, #tpu.memory_space<vmem>>, vector<1x64x32xf32>
    %461 = vector.shape_cast %460 : vector<1x64x32xf32> to vector<64x32xf32>
    %cst_366 = arith.constant dense<0.000000e+00> : vector<12x32xf32>
    %462 = tpu.matmul %459, %461, %cst_366 {dimension_numbers = #tpu.dot_dimension_numbers<[1], [0], [0], [1], [0, 0, 1, 1], [], []>} : vector<12x64xf32>, vector<64x32xf32>, vector<12x32xf32> -> vector<12x32xf32>
    %c1_367 = arith.constant 1 : index
    %c0_368 = arith.constant 0 : index
    %c0_369 = arith.constant 0 : index
    %463 = vector.load %arg16[%c1_367, %c0_368, %c0_369] : memref<2x1x32xf32, #tpu.memory_space<vmem>>, vector<1x1x32xf32>
    %464 = vector.shape_cast %463 : vector<1x1x32xf32> to vector<1x32xf32>
    %465 = vector.broadcast %464 : vector<1x32xf32> to vector<12x32xf32>
    %466 = arith.addf %462, %465 : vector<12x32xf32>
    %467 = arith.addf %450, %466 : vector<12x32xf32>
    %c1_370 = arith.constant 1 : index
    %c0_371 = arith.constant 0 : index
    %c0_372 = arith.constant 0 : index
    %468 = vector.load %arg17[%c1_370, %c0_371, %c0_372] : memref<2x1x32xf32, #tpu.memory_space<vmem>>, vector<1x1x32xf32>
    %469 = vector.shape_cast %468 : vector<1x1x32xf32> to vector<1x32xf32>
    %c1_373 = arith.constant 1 : index
    %c0_374 = arith.constant 0 : index
    %c0_375 = arith.constant 0 : index
    %470 = vector.load %arg18[%c1_373, %c0_374, %c0_375] : memref<2x1x32xf32, #tpu.memory_space<vmem>>, vector<1x1x32xf32>
    %471 = vector.shape_cast %470 : vector<1x1x32xf32> to vector<1x32xf32>
    %cst_376 = arith.constant dense<0.000000e+00> : vector<12xf32>
    %472 = vector.multi_reduction <add>, %467, %cst_376 [1] : vector<12x32xf32> to vector<12xf32>
    %473 = vector.shape_cast %472 : vector<12xf32> to vector<12x1xf32>
    %cst_377 = arith.constant 3.200000e+01 : f32
    %474 = vector.broadcast %cst_377 : f32 to vector<12x1xf32>
    %475 = arith.divf %473, %474 : vector<12x1xf32>
    %476 = arith.mulf %467, %467 : vector<12x32xf32>
    %cst_378 = arith.constant dense<0.000000e+00> : vector<12xf32>
    %477 = vector.multi_reduction <add>, %476, %cst_378 [1] : vector<12x32xf32> to vector<12xf32>
    %478 = vector.shape_cast %477 : vector<12xf32> to vector<12x1xf32>
    %cst_379 = arith.constant 3.200000e+01 : f32
    %479 = vector.broadcast %cst_379 : f32 to vector<12x1xf32>
    %480 = arith.divf %478, %479 : vector<12x1xf32>
    %481 = arith.mulf %475, %475 : vector<12x1xf32>
    %482 = arith.subf %480, %481 : vector<12x1xf32>
    %483 = vector.broadcast %475 : vector<12x1xf32> to vector<12x32xf32>
    %484 = arith.subf %467, %483 : vector<12x32xf32>
    %cst_380 = arith.constant 9.99999974E-6 : f32
    %485 = vector.broadcast %cst_380 : f32 to vector<12x1xf32>
    %486 = arith.addf %482, %485 : vector<12x1xf32>
    %487 = math.rsqrt %486 : vector<12x1xf32>
    %488 = vector.broadcast %487 : vector<12x1xf32> to vector<12x32xf32>
    %489 = arith.mulf %484, %488 : vector<12x32xf32>
    %490 = vector.broadcast %469 : vector<1x32xf32> to vector<12x32xf32>
    %491 = arith.mulf %489, %490 : vector<12x32xf32>
    %492 = vector.broadcast %471 : vector<1x32xf32> to vector<12x32xf32>
    %493 = arith.addf %491, %492 : vector<12x32xf32>
    %494 = vector.extract_strided_slice %493 {offsets = [0, 0], sizes = [2, 32], strides = [1, 1]} : vector<12x32xf32> to vector<2x32xf32>
    %c0_381 = arith.constant 0 : index
    %c0_382 = arith.constant 0 : index
    %c0_383 = arith.constant 0 : index
    %495 = vector.load %arg19[%c0_381, %c0_382, %c0_383] : memref<6x32x128xf32, #tpu.memory_space<vmem>>, vector<1x32x128xf32>
    %496 = vector.shape_cast %495 : vector<1x32x128xf32> to vector<32x128xf32>
    %cst_384 = arith.constant dense<0.000000e+00> : vector<2x128xf32>
    %497 = tpu.matmul %494, %496, %cst_384 {dimension_numbers = #tpu.dot_dimension_numbers<[1], [0], [0], [1], [0, 0, 1, 1], [], []>} : vector<2x32xf32>, vector<32x128xf32>, vector<2x128xf32> -> vector<2x128xf32>
    %498 = vector.extract_strided_slice %493 {offsets = [2, 0], sizes = [2, 32], strides = [1, 1]} : vector<12x32xf32> to vector<2x32xf32>
    %c1_385 = arith.constant 1 : index
    %c0_386 = arith.constant 0 : index
    %c0_387 = arith.constant 0 : index
    %499 = vector.load %arg19[%c1_385, %c0_386, %c0_387] : memref<6x32x128xf32, #tpu.memory_space<vmem>>, vector<1x32x128xf32>
    %500 = vector.shape_cast %499 : vector<1x32x128xf32> to vector<32x128xf32>
    %cst_388 = arith.constant dense<0.000000e+00> : vector<2x128xf32>
    %501 = tpu.matmul %498, %500, %cst_388 {dimension_numbers = #tpu.dot_dimension_numbers<[1], [0], [0], [1], [0, 0, 1, 1], [], []>} : vector<2x32xf32>, vector<32x128xf32>, vector<2x128xf32> -> vector<2x128xf32>
    %502 = arith.addf %497, %501 : vector<2x128xf32>
    %503 = vector.extract_strided_slice %493 {offsets = [4, 0], sizes = [2, 32], strides = [1, 1]} : vector<12x32xf32> to vector<2x32xf32>
    %c2_389 = arith.constant 2 : index
    %c0_390 = arith.constant 0 : index
    %c0_391 = arith.constant 0 : index
    %504 = vector.load %arg19[%c2_389, %c0_390, %c0_391] : memref<6x32x128xf32, #tpu.memory_space<vmem>>, vector<1x32x128xf32>
    %505 = vector.shape_cast %504 : vector<1x32x128xf32> to vector<32x128xf32>
    %cst_392 = arith.constant dense<0.000000e+00> : vector<2x128xf32>
    %506 = tpu.matmul %503, %505, %cst_392 {dimension_numbers = #tpu.dot_dimension_numbers<[1], [0], [0], [1], [0, 0, 1, 1], [], []>} : vector<2x32xf32>, vector<32x128xf32>, vector<2x128xf32> -> vector<2x128xf32>
    %507 = arith.addf %502, %506 : vector<2x128xf32>
    %508 = vector.extract_strided_slice %493 {offsets = [6, 0], sizes = [2, 32], strides = [1, 1]} : vector<12x32xf32> to vector<2x32xf32>
    %c3_393 = arith.constant 3 : index
    %c0_394 = arith.constant 0 : index
    %c0_395 = arith.constant 0 : index
    %509 = vector.load %arg19[%c3_393, %c0_394, %c0_395] : memref<6x32x128xf32, #tpu.memory_space<vmem>>, vector<1x32x128xf32>
    %510 = vector.shape_cast %509 : vector<1x32x128xf32> to vector<32x128xf32>
    %cst_396 = arith.constant dense<0.000000e+00> : vector<2x128xf32>
    %511 = tpu.matmul %508, %510, %cst_396 {dimension_numbers = #tpu.dot_dimension_numbers<[1], [0], [0], [1], [0, 0, 1, 1], [], []>} : vector<2x32xf32>, vector<32x128xf32>, vector<2x128xf32> -> vector<2x128xf32>
    %512 = arith.addf %507, %511 : vector<2x128xf32>
    %513 = vector.extract_strided_slice %493 {offsets = [8, 0], sizes = [2, 32], strides = [1, 1]} : vector<12x32xf32> to vector<2x32xf32>
    %c4 = arith.constant 4 : index
    %c0_397 = arith.constant 0 : index
    %c0_398 = arith.constant 0 : index
    %514 = vector.load %arg19[%c4, %c0_397, %c0_398] : memref<6x32x128xf32, #tpu.memory_space<vmem>>, vector<1x32x128xf32>
    %515 = vector.shape_cast %514 : vector<1x32x128xf32> to vector<32x128xf32>
    %cst_399 = arith.constant dense<0.000000e+00> : vector<2x128xf32>
    %516 = tpu.matmul %513, %515, %cst_399 {dimension_numbers = #tpu.dot_dimension_numbers<[1], [0], [0], [1], [0, 0, 1, 1], [], []>} : vector<2x32xf32>, vector<32x128xf32>, vector<2x128xf32> -> vector<2x128xf32>
    %517 = arith.addf %512, %516 : vector<2x128xf32>
    %518 = vector.extract_strided_slice %493 {offsets = [10, 0], sizes = [2, 32], strides = [1, 1]} : vector<12x32xf32> to vector<2x32xf32>
    %c5 = arith.constant 5 : index
    %c0_400 = arith.constant 0 : index
    %c0_401 = arith.constant 0 : index
    %519 = vector.load %arg19[%c5, %c0_400, %c0_401] : memref<6x32x128xf32, #tpu.memory_space<vmem>>, vector<1x32x128xf32>
    %520 = vector.shape_cast %519 : vector<1x32x128xf32> to vector<32x128xf32>
    %cst_402 = arith.constant dense<0.000000e+00> : vector<2x128xf32>
    %521 = tpu.matmul %518, %520, %cst_402 {dimension_numbers = #tpu.dot_dimension_numbers<[1], [0], [0], [1], [0, 0, 1, 1], [], []>} : vector<2x32xf32>, vector<32x128xf32>, vector<2x128xf32> -> vector<2x128xf32>
    %522 = arith.addf %517, %521 : vector<2x128xf32>
    %c0_403 = arith.constant 0 : index
    %c0_404 = arith.constant 0 : index
    %523 = vector.load %arg20[%c0_403, %c0_404] : memref<1x128xf32, #tpu.memory_space<vmem>>, vector<1x128xf32>
    %524 = vector.broadcast %523 : vector<1x128xf32> to vector<2x128xf32>
    %525 = arith.addf %522, %524 : vector<2x128xf32>
    %c0_405 = arith.constant 0 : index
    %c0_406 = arith.constant 0 : index
    %526 = vector.load %arg21[%c0_405, %c0_406] : memref<2x128xf32, #tpu.memory_space<vmem>>, vector<2x128xf32>
    tpu.vector_store %arg21[%c0_405, %c0_406], %525 {strides = array<i32>} : memref<2x128xf32, #tpu.memory_space<vmem>>, vector<2x128xf32>,
    return
  }
}

</mosaic_0001>

<llo_original>
// kernel: stickman_forward.1
$region0: #{stickman_forward.1}
  #allocation0 [shape = 'u32[]', space=smem, size = 0x4, offset = 0x4, fixed_abs, tag = 'smem constant byte address 0x4 - core index']
  #allocation1 [shape = 'u32[72,128]{1,0:T(1,128)}', space=vmem, size = 0x9000, scoped, tag = 'internal scratch']
  %s0 = inlined_call_operand.vmem [shape: f32[12,12], index: 0, kind: input, shape index: {}]
  %s1 = inlined_call_operand.vmem [shape: f32[12,32], index: 1, kind: input, shape index: {}]
  %s2 = inlined_call_operand.vmem [shape: f32[1,32], index: 2, kind: input, shape index: {}]
  %s3 = inlined_call_operand.vmem [shape: f32[2,4,32,8], index: 3, kind: input, shape index: {}]
  %s4 = inlined_call_operand.vmem [shape: f32[2,4,1,8], index: 4, kind: input, shape index: {}]
  %s5 = inlined_call_operand.vmem [shape: f32[2,4,32,8], index: 5, kind: input, shape index: {}]
  %s6 = inlined_call_operand.vmem [shape: f32[2,4,1,8], index: 6, kind: input, shape index: {}]
  %s7 = inlined_call_operand.vmem [shape: f32[2,4,32,8], index: 7, kind: input, shape index: {}]
  %s8 = inlined_call_operand.vmem [shape: f32[2,4,1,8], index: 8, kind: input, shape index: {}]
  %s9 = inlined_call_operand.vmem [shape: f32[2,4,8,32], index: 9, kind: input, shape index: {}]
  %s10 = inlined_call_operand.vmem [shape: f32[2,1,32], index: 10, kind: input, shape index: {}]
  %s11 = inlined_call_operand.vmem [shape: f32[2,1,32], index: 11, kind: input, shape index: {}]
  %s12 = inlined_call_operand.vmem [shape: f32[2,1,32], index: 12, kind: input, shape index: {}]
  %s13 = inlined_call_operand.vmem [shape: f32[2,32,64], index: 13, kind: input, shape index: {}]
  %s14 = inlined_call_operand.vmem [shape: f32[2,1,64], index: 14, kind: input, shape index: {}]
  %s15 = inlined_call_operand.vmem [shape: f32[2,64,32], index: 15, kind: input, shape index: {}]
  %s16 = inlined_call_operand.vmem [shape: f32[2,1,32], index: 16, kind: input, shape index: {}]
  %s17 = inlined_call_operand.vmem [shape: f32[2,1,32], index: 17, kind: input, shape index: {}]
  %s18 = inlined_call_operand.vmem [shape: f32[2,1,32], index: 18, kind: input, shape index: {}]
  %s19 = inlined_call_operand.vmem [shape: f32[6,32,128], index: 19, kind: input, shape index: {}]
  %s20 = inlined_call_operand.vmem [shape: f32[1,128], index: 20, kind: input, shape index: {}]
  %s21 = inlined_call_operand.hbm [shape: f32[2,128], index: 21, kind: output, shape index: {}]
  %s22 = sld [smem:[#allocation0]]
  $region94: #{stickman_forward.1} parent=0
    _
  %s24 = ssub.s32 1, %s22
  %s25 = scalar_select 0, %s24, %s22
  $region1: #{stickman_forward.1} parent=0
    #allocation2 [shape = 'u8[1024]{0}', space=vmem, size = 0x400, scoped, tag = 'output window, operand 0, single buffered']
    #allocation3 [shape = 's32[1]{0}', space=sflag, size = 0x4, scoped, tag = 'scoped memory for stickman_forward.1']
    %26 = vsyncpa [#allocation3], 0
    // Predicated region
    $region2: #{stickman_forward.1} parent=1 // pred_check
      _
    $region3: #{stickman_forward.1} parent=1 // pred_check_branch
      %28 = sbr.rel (0) target = $region5
    $region4: #{stickman_forward.1} parent=1 // pred_region
      _
    $region5: #{stickman_forward.1} parent=1 // pred_fallthru
      _
    // Predicated region
    $region6: #{stickman_forward.1} parent=1 // pred_check
      _
    $region7: #{stickman_forward.1} parent=1 // pred_check_branch
      %30 = sbr.rel (0) target = $region9
    $region8: #{stickman_forward.1} parent=1 // pred_region
      _
    $region9: #{stickman_forward.1} parent=1 // pred_fallthru
      _
    // Predicated region
    $region10: #{stickman_forward.1} parent=1 // pred_check
      _
    $region11: #{stickman_forward.1} parent=1 // pred_check_branch
      %32 = sbr.rel (0) target = $region13
    $region12: #{stickman_forward.1} parent=1 // pred_region
      _
    $region13: #{stickman_forward.1} parent=1 // pred_fallthru
      _
    // Predicated region
    $region14: #{stickman_forward.1} parent=1 // pred_check
      _
    $region15: #{stickman_forward.1} parent=1 // pred_check_branch
      %34 = sbr.rel (0) target = $region17
    $region16: #{stickman_forward.1} parent=1 // pred_region
      _
    $region17: #{stickman_forward.1} parent=1 // pred_fallthru
      _
    // Predicated region
    $region18: #{stickman_forward.1} parent=1 // pred_check
      _
    $region19: #{stickman_forward.1} parent=1 // pred_check_branch
      %36 = sbr.rel (0) target = $region21
    $region20: #{stickman_forward.1} parent=1 // pred_region
      _
    $region21: #{stickman_forward.1} parent=1 // pred_fallthru
      _
    // Predicated region
    $region22: #{stickman_forward.1} parent=1 // pred_check
      _
    $region23: #{stickman_forward.1} parent=1 // pred_check_branch
      %38 = sbr.rel (0) target = $region25
    $region24: #{stickman_forward.1} parent=1 // pred_region
      _
    $region25: #{stickman_forward.1} parent=1 // pred_fallthru
      _
    // Predicated region
    $region26: #{stickman_forward.1} parent=1 // pred_check
      _
    $region27: #{stickman_forward.1} parent=1 // pred_check_branch
      %40 = sbr.rel (0) target = $region29
    $region28: #{stickman_forward.1} parent=1 // pred_region
      _
    $region29: #{stickman_forward.1} parent=1 // pred_fallthru
      _
    // Predicated region
    $region30: #{stickman_forward.1} parent=1 // pred_check
      _
    $region31: #{stickman_forward.1} parent=1 // pred_check_branch
      %42 = sbr.rel (0) target = $region33
    $region32: #{stickman_forward.1} parent=1 // pred_region
      _
    $region33: #{stickman_forward.1} parent=1 // pred_fallthru
      _
    // Predicated region
    $region34: #{stickman_forward.1} parent=1 // pred_check
      _
    $region35: #{stickman_forward.1} parent=1 // pred_check_branch
      %44 = sbr.rel (0) target = $region37
    $region36: #{stickman_forward.1} parent=1 // pred_region
      _
    $region37: #{stickman_forward.1} parent=1 // pred_fallthru
      _
    // Predicated region
    $region38: #{stickman_forward.1} parent=1 // pred_check
      _
    $region39: #{stickman_forward.1} parent=1 // pred_check_branch
      %46 = sbr.rel (0) target = $region41
    $region40: #{stickman_forward.1} parent=1 // pred_region
      _
    $region41: #{stickman_forward.1} parent=1 // pred_fallthru
      _
    // Predicated region
    $region42: #{stickman_forward.1} parent=1 // pred_check
      _
    $region43: #{stickman_forward.1} parent=1 // pred_check_branch
      %48 = sbr.rel (0) target = $region45
    $region44: #{stickman_forward.1} parent=1 // pred_region
      _
    $region45: #{stickman_forward.1} parent=1 // pred_fallthru
      _
    // Predicated region
    $region46: #{stickman_forward.1} parent=1 // pred_check
      _
    $region47: #{stickman_forward.1} parent=1 // pred_check_branch
      %50 = sbr.rel (0) target = $region49
    $region48: #{stickman_forward.1} parent=1 // pred_region
      _
    $region49: #{stickman_forward.1} parent=1 // pred_fallthru
      _
    // Predicated region
    $region50: #{stickman_forward.1} parent=1 // pred_check
      _
    $region51: #{stickman_forward.1} parent=1 // pred_check_branch
      %52 = sbr.rel (0) target = $region53
    $region52: #{stickman_forward.1} parent=1 // pred_region
      _
    $region53: #{stickman_forward.1} parent=1 // pred_fallthru
      _
    // Predicated region
    $region54: #{stickman_forward.1} parent=1 // pred_check
      _
    $region55: #{stickman_forward.1} parent=1 // pred_check_branch
      %54 = sbr.rel (0) target = $region57
    $region56: #{stickman_forward.1} parent=1 // pred_region
      _
    $region57: #{stickman_forward.1} parent=1 // pred_fallthru
      _
    // Predicated region
    $region58: #{stickman_forward.1} parent=1 // pred_check
      _
    $region59: #{stickman_forward.1} parent=1 // pred_check_branch
      %56 = sbr.rel (0) target = $region61
    $region60: #{stickman_forward.1} parent=1 // pred_region
      _
    $region61: #{stickman_forward.1} parent=1 // pred_fallthru
      _
    // Predicated region
    $region62: #{stickman_forward.1} parent=1 // pred_check
      _
    $region63: #{stickman_forward.1} parent=1 // pred_check_branch
      %58 = sbr.rel (0) target = $region65
    $region64: #{stickman_forward.1} parent=1 // pred_region
      _
    $region65: #{stickman_forward.1} parent=1 // pred_fallthru
      _
    // Predicated region
    $region66: #{stickman_forward.1} parent=1 // pred_check
      _
    $region67: #{stickman_forward.1} parent=1 // pred_check_branch
      %60 = sbr.rel (0) target = $region69
    $region68: #{stickman_forward.1} parent=1 // pred_region
      _
    $region69: #{stickman_forward.1} parent=1 // pred_fallthru
      _
    // Predicated region
    $region70: #{stickman_forward.1} parent=1 // pred_check
      _
    $region71: #{stickman_forward.1} parent=1 // pred_check_branch
      %62 = sbr.rel (0) target = $region73
    $region72: #{stickman_forward.1} parent=1 // pred_region
      _
    $region73: #{stickman_forward.1} parent=1 // pred_fallthru
      _
    // Predicated region
    $region74: #{stickman_forward.1} parent=1 // pred_check
      _
    $region75: #{stickman_forward.1} parent=1 // pred_check_branch
      %64 = sbr.rel (0) target = $region77
    $region76: #{stickman_forward.1} parent=1 // pred_region
      _
    $region77: #{stickman_forward.1} parent=1 // pred_fallthru
      _
    // Predicated region
    $region78: #{stickman_forward.1} parent=1 // pred_check
      _
    $region79: #{stickman_forward.1} parent=1 // pred_check_branch
      %66 = sbr.rel (0) target = $region81
    $region80: #{stickman_forward.1} parent=1 // pred_region
      _
    $region81: #{stickman_forward.1} parent=1 // pred_fallthru
      _
    // Predicated region
    $region82: #{stickman_forward.1} parent=1 // pred_check
      _
    $region83: #{stickman_forward.1} parent=1 // pred_check_branch
      %68 = sbr.rel (0) target = $region85
    $region84: #{stickman_forward.1} parent=1 // pred_region
      _
    $region85: #{stickman_forward.1} parent=1 // pred_fallthru
      _
    %v69 = vlaneseq
    %v70 = vshrl.u32 %v69, 7
    %v71 = vadd.s32 %v70, 8
    %vm72 = vcmp.lt.s32.totalorder %v70, 0
    %v73 = vsub.s32 0, %v70
    %v74 = vsel %vm72, %v73, %v70
    %v75 = vshrl.u32 %v74, 1
    %v76 = vand.u32 %v74, 1
    %v77 = vsub.s32 0, %v76
    %v78 = vsel %vm72, %v77, %v76
    %vm79 = vcmp.lt.s32.totalorder %v71, 0
    %v80 = vsub.s32 0, %v71
    %v81 = vsel %vm79, %v80, %v71
    %v82 = vshrl.u32 %v81, 1
    %v83 = vand.u32 %v81, 1
    %v84 = vsub.s32 0, %v83
    %v85 = vsel %vm79, %v84, %v83
    %vm86 = vcmp.ne.s32.totalorder %v78, 0
    %vm87 = vcmp.ne.s32.totalorder %v85, 0
    %vm88 = vcmp.lt.s32.totalorder %v78, 0
    %vm89 = vcmp.lt.s32.totalorder %v85, 0
    %vm90 = vmand %vm88, %vm86
    %vm91 = vmand %vm89, %vm87
    %v92 = vadd.s32 %v78, 2
    %v93 = vadd.s32 %v85, 2
    %v94 = vsel %vm90, %v92, %v78
    %v95 = vsel %vm91, %v93, %v85
    %v96 = vlaneseq
    %v97 = vand.u32 %v96, 127
    %vm98 = vcmp.lt.s32.totalorder %v97, 0
    %v99 = vsub.s32 0, %v97
    %v100 = vsel %vm98, %v99, %v97
    %v101 = vshrl.u32 %v100, 1
    %v102 = vand.u32 %v100, 1
    %v103 = vsub.s32 0, %v102
    %v104 = vsel %vm98, %v103, %v102
    %vm105 = vcmp.ne.s32.totalorder %v104, 0
    %vm106 = vcmp.lt.s32.totalorder %v104, 0
    %vm107 = vmand %vm106, %vm105
    %v108 = vadd.s32 %v104, 2
    %v109 = vsel %vm107, %v108, %v104
    %vm110 = vcmp.eq.s32.totalorder %v94, %v109
    %vm111 = vcmp.eq.s32.totalorder %v95, %v109
    %v112 = vsel %vm110, 0.0, -1e+09
    %v113 = vsel %vm111, 0.0, -1e+09
    %v114 = vld [vmem:[%s0] sm:$0xff]
    %v115 = vld [vmem:[%s0 + $0x8] sm:$0xf]
    %v116 = vld [vmem:[%s1] sm:$0xff]
    %v117 = vld [vmem:[%s1 + $0x8] sm:$0xf]
    %v118 = vld [vmem:[%s2] sm:$0x1]
    %v120 = vperm.slane %v118, 0
    %vm122 = vcmask 97280
    %v124 = vsel %vm122, %v114, 0
    %v127 = vsel %vm122, %v115, 0
    %vm129 = vcmask 1043456
    %v131 = vsel %vm129, %v117, 0
    %133 = vmatpush.msra.mxu0 0.0
    %134 = vmatpush.msra.mxu0 0.0
    %135 = vmatpush.msra.mxu0 0.0
    %136 = vmatpush.msra.mxu0 0.0
    %137 = vmatpush.msra.mxu0 0.0
    %138 = vmatpush.msra.mxu0 0.0
    %139 = vmatpush.msra.mxu0 0.0
    %140 = vmatpush.msra.mxu0 0.0
    %141 = vmatpush.msra.mxu0 0.0
    %142 = vmatpush.msra.mxu0 0.0
    %143 = vmatpush.msra.mxu0 0.0
    %144 = vmatpush.msra.mxu0 0.0
    %145 = vmatpush.msra.mxu0 0.0
    %146 = vmatpush.msra.mxu0 0.0
    %147 = vmatpush.msra.mxu0 %v131
    %148 = vmatpush.msra.mxu0 %v116
    %149 = vmatmul.f32.gmra.mxu0 %v124
    %v150 = vpop.f32.mrf.mxu0
    %v151 = vadd.f32 %v120, %v150
    %152 = vmatmul.f32.gmra.mxu0 %v127
    %v153 = vpop.f32.mrf.mxu0
    %v154 = vadd.f32 %v120, %v153
    %155 = vdwg.mxu0
    %v156 = vld [vmem:[%s3] sm:$0xff]
    %v157 = vld [vmem:[%s3 + $0x8] sm:$0xff]
    %v158 = vld [vmem:[%s3 + $0x10] sm:$0xff]
    %v159 = vld [vmem:[%s3 + $0x18] sm:$0xff]
    %v160 = vld [vmem:[%s4] sm:$0x1]
    %v162 = vperm.slane %v160, 0
    %vm164 = vcmask 261120
    %v166 = vsel %vm164, %v151, 0
    %v169 = vsel %vm164, %v154, 0
    %171 = vmatpush.msra.mxu0 0.0
    %172 = vmatpush.msra.mxu0 0.0
    %173 = vmatpush.msra.mxu0 0.0
    %174 = vmatpush.msra.mxu0 0.0
    %175 = vmatpush.msra.mxu0 0.0
    %176 = vmatpush.msra.mxu0 0.0
    %177 = vmatpush.msra.mxu0 0.0
    %178 = vmatpush.msra.mxu0 0.0
    %179 = vmatpush.msra.mxu0 0.0
    %180 = vmatpush.msra.mxu0 0.0
    %181 = vmatpush.msra.mxu0 0.0
    %182 = vmatpush.msra.mxu0 0.0
    %183 = vmatpush.msra.mxu0 %v159
    %184 = vmatpush.msra.mxu0 %v158
    %185 = vmatpush.msra.mxu0 %v157
    %186 = vmatpush.msra.mxu0 %v156
    %187 = vmatmul.f32.gmra.mxu0 %v166
    %v188 = vpop.f32.mrf.mxu0
    %v189 = vadd.f32 %v162, %v188
    %190 = vmatmul.f32.gmra.mxu0 %v169
    %v191 = vpop.f32.mrf.mxu0
    %v192 = vadd.f32 %v162, %v191
    %193 = vdwg.mxu0
    %v194 = vld [vmem:[%s5] sm:$0xff]
    %v195 = vld [vmem:[%s5 + $0x8] sm:$0xff]
    %v196 = vld [vmem:[%s5 + $0x10] sm:$0xff]
    %v197 = vld [vmem:[%s5 + $0x18] sm:$0xff]
    %v198 = vld [vmem:[%s6] sm:$0x1]
    %v200 = vperm.slane %v198, 0
    %202 = vmatpush.msra.mxu0 0.0
    %203 = vmatpush.msra.mxu0 0.0
    %204 = vmatpush.msra.mxu0 0.0
    %205 = vmatpush.msra.mxu0 0.0
    %206 = vmatpush.msra.mxu0 0.0
    %207 = vmatpush.msra.mxu0 0.0
    %208 = vmatpush.msra.mxu0 0.0
    %209 = vmatpush.msra.mxu0 0.0
    %210 = vmatpush.msra.mxu0 0.0
    %211 = vmatpush.msra.mxu0 0.0
    %212 = vmatpush.msra.mxu0 0.0
    %213 = vmatpush.msra.mxu0 0.0
    %214 = vmatpush.msra.mxu0 %v197
    %215 = vmatpush.msra.mxu0 %v196
    %216 = vmatpush.msra.mxu0 %v195
    %217 = vmatpush.msra.mxu0 %v194
    %218 = vmatmul.f32.gmra.mxu0 %v166
    %v219 = vpop.f32.mrf.mxu0
    %v220 = vadd.f32 %v200, %v219
    %221 = vmatmul.f32.gmra.mxu0 %v169
    %v222 = vpop.f32.mrf.mxu0
    %v223 = vadd.f32 %v200, %v222
    %224 = vdwg.mxu0
    %v225 = vld [vmem:[%s7] sm:$0xff]
    %v226 = vld [vmem:[%s7 + $0x8] sm:$0xff]
    %v227 = vld [vmem:[%s7 + $0x10] sm:$0xff]
    %v228 = vld [vmem:[%s7 + $0x18] sm:$0xff]
    %v229 = vld [vmem:[%s8] sm:$0x1]
    %v231 = vperm.slane %v229, 0
    %233 = vmatpush.msra.mxu0 0.0
    %234 = vmatpush.msra.mxu0 0.0
    %235 = vmatpush.msra.mxu0 0.0
    %236 = vmatpush.msra.mxu0 0.0
    %237 = vmatpush.msra.mxu0 0.0
    %238 = vmatpush.msra.mxu0 0.0
    %239 = vmatpush.msra.mxu0 0.0
    %240 = vmatpush.msra.mxu0 0.0
    %241 = vmatpush.msra.mxu0 0.0
    %242 = vmatpush.msra.mxu0 0.0
    %243 = vmatpush.msra.mxu0 0.0
    %244 = vmatpush.msra.mxu0 0.0
    %245 = vmatpush.msra.mxu0 %v228
    %246 = vmatpush.msra.mxu0 %v227
    %247 = vmatpush.msra.mxu0 %v226
    %248 = vmatpush.msra.mxu0 %v225
    %249 = vmatmul.f32.gmra.mxu0 %v166
    %v250 = vpop.f32.mrf.mxu0
    %v251 = vadd.f32 %v231, %v250
    %252 = vmatmul.f32.gmra.mxu0 %v169
    %v253 = vpop.f32.mrf.mxu0
    %v254 = vadd.f32 %v231, %v253
    %255 = vdwg.mxu0
    %vm256 = vcmask 64512
    %v258 = vsel %vm256, %v189, 0
    %v261 = vsel %vm256, %v192, 0
    %v264 = vsel %vm256, %v220, 0
    %v267 = vsel %vm256, %v223, 0
    %269 = vmatpush.xpose.msra.mxu0 0.0
    %270 = vmatpush.xpose.msra.mxu0 0.0
    %271 = vmatpush.xpose.msra.mxu0 0.0
    %272 = vmatpush.xpose.msra.mxu0 0.0
    %273 = vmatpush.xpose.msra.mxu0 0.0
    %274 = vmatpush.xpose.msra.mxu0 0.0
    %275 = vmatpush.xpose.msra.mxu0 0.0
    %276 = vmatpush.xpose.msra.mxu0 0.0
    %277 = vmatpush.xpose.msra.mxu0 0.0
    %278 = vmatpush.xpose.msra.mxu0 0.0
    %279 = vmatpush.xpose.msra.mxu0 0.0
    %280 = vmatpush.xpose.msra.mxu0 0.0
    %281 = vmatpush.xpose.msra.mxu0 0.0
    %282 = vmatpush.xpose.msra.mxu0 0.0
    %283 = vmatpush.xpose.msra.mxu0 %v267
    %284 = vmatpush.xpose.msra.mxu0 %v264
    %285 = vmatmul.f32.gmra.mxu0 %v258
    %v286 = vpop.f32.mrf.mxu0
    %v287 = vadd.f32 %v112, %v286
    %288 = vmatmul.f32.gmra.mxu0 %v261
    %v289 = vpop.f32.mrf.mxu0
    %v290 = vadd.f32 %v113, %v289
    %291 = vdwg.mxu0
    %v292 = vsel %vm122, %v287, -inf
    %293 = vmax.xlane.f32.xlu0 %v292
    %v294 = vpop.xlane.xlu0 %293
    %vm295 = vcmask 93184
    %v296 = vsel %vm295, %v290, -inf
    %297 = vmax.xlane.f32.xlu0 %v296
    %v298 = vpop.xlane.xlu0 %297
    %v299 = vsub.f32 %v287, %v294
    %v300 = vsub.f32 %v290, %v298
    %v301 = vmul.f32 %v299, 1.442695
    %v302 = vpow.pop %v301
    %v303 = vmul.f32 %v300, 1.442695
    %v304 = vpow.pop %v303
    %v305 = vsel %vm122, %v302, 0.0
    %306 = vadd.xlane.f32.xlu0 %v305
    %v307 = vpop.xlane.xlu0 %306
    %v308 = vsel %vm295, %v304, 0.0
    %309 = vadd.xlane.f32.xlu0 %v308
    %v310 = vpop.xlane.xlu0 %309
    %v311 = vrcp.pop %v307
    %v312 = vrcp.pop %v310
    %v313 = vmul.f32 %v302, %v311
    %v314 = vmul.f32 %v304, %v312
    %v316 = vsel %vm122, %v313, 0
    %v319 = vsel %vm122, %v314, 0
    %v322 = vsel %vm129, %v254, 0
    %324 = vmatpush.msra.mxu0 0.0
    %325 = vmatpush.msra.mxu0 0.0
    %326 = vmatpush.msra.mxu0 0.0
    %327 = vmatpush.msra.mxu0 0.0
    %328 = vmatpush.msra.mxu0 0.0
    %329 = vmatpush.msra.mxu0 0.0
    %330 = vmatpush.msra.mxu0 0.0
    %331 = vmatpush.msra.mxu0 0.0
    %332 = vmatpush.msra.mxu0 0.0
    %333 = vmatpush.msra.mxu0 0.0
    %334 = vmatpush.msra.mxu0 0.0
    %335 = vmatpush.msra.mxu0 0.0
    %336 = vmatpush.msra.mxu0 0.0
    %337 = vmatpush.msra.mxu0 0.0
    %338 = vmatpush.msra.mxu0 %v322
    %339 = vmatpush.msra.mxu0 %v251
    %340 = vmatmul.f32.gmra.mxu0 %v316
    %v341 = vpop.f32.mrf.mxu0
    %v342 = vadd.f32 0.0, %v341
    %343 = vmatmul.f32.gmra.mxu0 %v319
    %v344 = vpop.f32.mrf.mxu0
    %v345 = vadd.f32 0.0, %v344
    %346 = vdwg.mxu0
    %v347 = vld [vmem:[%s9] sm:$0xff]
    %s348 = scalar_lea.vmem %s3, 32
    %v349 = vld [vmem:[%s348] sm:$0xff]
    %v350 = vld [vmem:[%s348 + $0x8] sm:$0xff]
    %v351 = vld [vmem:[%s348 + $0x10] sm:$0xff]
    %v352 = vld [vmem:[%s348 + $0x18] sm:$0xff]
    %s353 = scalar_lea.vmem %s4, 1
    %v354 = vld [vmem:[%s353] sm:$0x1]
    %v356 = vperm.slane %v354, 0
    %358 = vmatpush.msra.mxu0 0.0
    %359 = vmatpush.msra.mxu0 0.0
    %360 = vmatpush.msra.mxu0 0.0
    %361 = vmatpush.msra.mxu0 0.0
    %362 = vmatpush.msra.mxu0 0.0
    %363 = vmatpush.msra.mxu0 0.0
    %364 = vmatpush.msra.mxu0 0.0
    %365 = vmatpush.msra.mxu0 0.0
    %366 = vmatpush.msra.mxu0 0.0
    %367 = vmatpush.msra.mxu0 0.0
    %368 = vmatpush.msra.mxu0 0.0
    %369 = vmatpush.msra.mxu0 0.0
    %370 = vmatpush.msra.mxu0 %v352
    %371 = vmatpush.msra.mxu0 %v351
    %372 = vmatpush.msra.mxu0 %v350
    %373 = vmatpush.msra.mxu0 %v349
    %374 = vmatmul.f32.gmra.mxu0 %v166
    %v375 = vpop.f32.mrf.mxu0
    %v376 = vadd.f32 %v356, %v375
    %377 = vmatmul.f32.gmra.mxu0 %v169
    %v378 = vpop.f32.mrf.mxu0
    %v379 = vadd.f32 %v356, %v378
    %380 = vdwg.mxu0
    %s381 = scalar_lea.vmem %s5, 32
    %v382 = vld [vmem:[%s381] sm:$0xff]
    %v383 = vld [vmem:[%s381 + $0x8] sm:$0xff]
    %v384 = vld [vmem:[%s381 + $0x10] sm:$0xff]
    %v385 = vld [vmem:[%s381 + $0x18] sm:$0xff]
    %s386 = scalar_lea.vmem %s6, 1
    %v387 = vld [vmem:[%s386] sm:$0x1]
    %v389 = vperm.slane %v387, 0
    %391 = vmatpush.msra.mxu0 0.0
    %392 = vmatpush.msra.mxu0 0.0
    %393 = vmatpush.msra.mxu0 0.0
    %394 = vmatpush.msra.mxu0 0.0
    %395 = vmatpush.msra.mxu0 0.0
    %396 = vmatpush.msra.mxu0 0.0
    %397 = vmatpush.msra.mxu0 0.0
    %398 = vmatpush.msra.mxu0 0.0
    %399 = vmatpush.msra.mxu0 0.0
    %400 = vmatpush.msra.mxu0 0.0
    %401 = vmatpush.msra.mxu0 0.0
    %402 = vmatpush.msra.mxu0 0.0
    %403 = vmatpush.msra.mxu0 %v385
    %404 = vmatpush.msra.mxu0 %v384
    %405 = vmatpush.msra.mxu0 %v383
    %406 = vmatpush.msra.mxu0 %v382
    %407 = vmatmul.f32.gmra.mxu0 %v166
    %v408 = vpop.f32.mrf.mxu0
    %v409 = vadd.f32 %v389, %v408
    %410 = vmatmul.f32.gmra.mxu0 %v169
    %v411 = vpop.f32.mrf.mxu0
    %v412 = vadd.f32 %v389, %v411
    %413 = vdwg.mxu0
    %s414 = scalar_lea.vmem %s7, 32
    %v415 = vld [vmem:[%s414] sm:$0xff]
    %v416 = vld [vmem:[%s414 + $0x8] sm:$0xff]
    %v417 = vld [vmem:[%s414 + $0x10] sm:$0xff]
    %v418 = vld [vmem:[%s414 + $0x18] sm:$0xff]
    %s419 = scalar_lea.vmem %s8, 1
    %v420 = vld [vmem:[%s419] sm:$0x1]
    %v422 = vperm.slane %v420, 0
    %424 = vmatpush.msra.mxu0 0.0
    %425 = vmatpush.msra.mxu0 0.0
    %426 = vmatpush.msra.mxu0 0.0
    %427 = vmatpush.msra.mxu0 0.0
    %428 = vmatpush.msra.mxu0 0.0
    %429 = vmatpush.msra.mxu0 0.0
    %430 = vmatpush.msra.mxu0 0.0
    %431 = vmatpush.msra.mxu0 0.0
    %432 = vmatpush.msra.mxu0 0.0
    %433 = vmatpush.msra.mxu0 0.0
    %434 = vmatpush.msra.mxu0 0.0
    %435 = vmatpush.msra.mxu0 0.0
    %436 = vmatpush.msra.mxu0 %v418
    %437 = vmatpush.msra.mxu0 %v417
    %438 = vmatpush.msra.mxu0 %v416
    %439 = vmatpush.msra.mxu0 %v415
    %440 = vmatmul.f32.gmra.mxu0 %v166
    %v441 = vpop.f32.mrf.mxu0
    %v442 = vadd.f32 %v422, %v441
    %443 = vmatmul.f32.gmra.mxu0 %v169
    %v444 = vpop.f32.mrf.mxu0
    %v445 = vadd.f32 %v422, %v444
    %446 = vdwg.mxu0
    %v448 = vsel %vm256, %v376, 0
    %v451 = vsel %vm256, %v379, 0
    %v454 = vsel %vm256, %v409, 0
    %v457 = vsel %vm256, %v412, 0
    %459 = vmatpush.xpose.msra.mxu0 0.0
    %460 = vmatpush.xpose.msra.mxu0 0.0
    %461 = vmatpush.xpose.msra.mxu0 0.0
    %462 = vmatpush.xpose.msra.mxu0 0.0
    %463 = vmatpush.xpose.msra.mxu0 0.0
    %464 = vmatpush.xpose.msra.mxu0 0.0
    %465 = vmatpush.xpose.msra.mxu0 0.0
    %466 = vmatpush.xpose.msra.mxu0 0.0
    %467 = vmatpush.xpose.msra.mxu0 0.0
    %468 = vmatpush.xpose.msra.mxu0 0.0
    %469 = vmatpush.xpose.msra.mxu0 0.0
    %470 = vmatpush.xpose.msra.mxu0 0.0
    %471 = vmatpush.xpose.msra.mxu0 0.0
    %472 = vmatpush.xpose.msra.mxu0 0.0
    %473 = vmatpush.xpose.msra.mxu0 %v457
    %474 = vmatpush.xpose.msra.mxu0 %v454
    %475 = vmatmul.f32.gmra.mxu0 %v448
    %v476 = vpop.f32.mrf.mxu0
    %v477 = vadd.f32 %v112, %v476
    %478 = vmatmul.f32.gmra.mxu0 %v451
    %v479 = vpop.f32.mrf.mxu0
    %v480 = vadd.f32 %v113, %v479
    %481 = vdwg.mxu0
    %v482 = vsel %vm122, %v477, -inf
    %483 = vmax.xlane.f32.xlu0 %v482
    %v484 = vpop.xlane.xlu0 %483
    %v485 = vsel %vm295, %v480, -inf
    %486 = vmax.xlane.f32.xlu0 %v485
    %v487 = vpop.xlane.xlu0 %486
    %v488 = vsub.f32 %v477, %v484
    %v489 = vsub.f32 %v480, %v487
    %v490 = vmul.f32 %v488, 1.442695
    %v491 = vpow.pop %v490
    %v492 = vmul.f32 %v489, 1.442695
    %v493 = vpow.pop %v492
    %v494 = vsel %vm122, %v491, 0.0
    %495 = vadd.xlane.f32.xlu0 %v494
    %v496 = vpop.xlane.xlu0 %495
    %v497 = vsel %vm295, %v493, 0.0
    %498 = vadd.xlane.f32.xlu0 %v497
    %v499 = vpop.xlane.xlu0 %498
    %v500 = vrcp.pop %v496
    %v501 = vrcp.pop %v499
    %v502 = vmul.f32 %v491, %v500
    %v503 = vmul.f32 %v493, %v501
    %v505 = vsel %vm122, %v502, 0
    %v508 = vsel %vm122, %v503, 0
    %v511 = vsel %vm129, %v445, 0
    %513 = vmatpush.msra.mxu0 0.0
    %514 = vmatpush.msra.mxu0 0.0
    %515 = vmatpush.msra.mxu0 0.0
    %516 = vmatpush.msra.mxu0 0.0
    %517 = vmatpush.msra.mxu0 0.0
    %518 = vmatpush.msra.mxu0 0.0
    %519 = vmatpush.msra.mxu0 0.0
    %520 = vmatpush.msra.mxu0 0.0
    %521 = vmatpush.msra.mxu0 0.0
    %522 = vmatpush.msra.mxu0 0.0
    %523 = vmatpush.msra.mxu0 0.0
    %524 = vmatpush.msra.mxu0 0.0
    %525 = vmatpush.msra.mxu0 0.0
    %526 = vmatpush.msra.mxu0 0.0
    %527 = vmatpush.msra.mxu0 %v511
    %528 = vmatpush.msra.mxu0 %v442
    %529 = vmatmul.f32.gmra.mxu0 %v505
    %v530 = vpop.f32.mrf.mxu0
    %v531 = vadd.f32 0.0, %v530
    %532 = vmatmul.f32.gmra.mxu0 %v508
    %v533 = vpop.f32.mrf.mxu0
    %v534 = vadd.f32 0.0, %v533
    %535 = vdwg.mxu0
    %s536 = scalar_lea.vmem %s9, 8
    %v537 = vld [vmem:[%s536] sm:$0xff]
    %v539 = vsel %vm256, %v531, 0
    %v542 = vsel %vm256, %v534, 0
    %544 = vmatpush.msra.mxu0 0.0
    %545 = vmatpush.msra.mxu0 0.0
    %546 = vmatpush.msra.mxu0 0.0
    %547 = vmatpush.msra.mxu0 0.0
    %548 = vmatpush.msra.mxu0 0.0
    %549 = vmatpush.msra.mxu0 0.0
    %550 = vmatpush.msra.mxu0 0.0
    %551 = vmatpush.msra.mxu0 0.0
    %552 = vmatpush.msra.mxu0 0.0
    %553 = vmatpush.msra.mxu0 0.0
    %554 = vmatpush.msra.mxu0 0.0
    %555 = vmatpush.msra.mxu0 0.0
    %556 = vmatpush.msra.mxu0 0.0
    %557 = vmatpush.msra.mxu0 0.0
    %558 = vmatpush.msra.mxu0 0.0
    %559 = vmatpush.msra.mxu0 %v537
    %560 = vmatmul.f32.gmra.mxu0 %v539
    %v561 = vpop.f32.mrf.mxu0
    %v562 = vadd.f32 0.0, %v561
    %563 = vmatmul.f32.gmra.mxu0 %v542
    %v564 = vpop.f32.mrf.mxu0
    %v565 = vadd.f32 0.0, %v564
    %566 = vdwg.mxu0
    %v568 = vsel %vm256, %v342, 0
    %v571 = vsel %vm256, %v345, 0
    %573 = vmatpush.msra.mxu0 0.0
    %574 = vmatpush.msra.mxu0 0.0
    %575 = vmatpush.msra.mxu0 0.0
    %576 = vmatpush.msra.mxu0 0.0
    %577 = vmatpush.msra.mxu0 0.0
    %578 = vmatpush.msra.mxu0 0.0
    %579 = vmatpush.msra.mxu0 0.0
    %580 = vmatpush.msra.mxu0 0.0
    %581 = vmatpush.msra.mxu0 0.0
    %582 = vmatpush.msra.mxu0 0.0
    %583 = vmatpush.msra.mxu0 0.0
    %584 = vmatpush.msra.mxu0 0.0
    %585 = vmatpush.msra.mxu0 0.0
    %586 = vmatpush.msra.mxu0 0.0
    %587 = vmatpush.msra.mxu0 0.0
    %588 = vmatpush.msra.mxu0 %v347
    %589 = vmatmul.f32.gmra.mxu0 %v568
    %v590 = vpop.f32.mrf.mxu0
    %v591 = vadd.f32 %v562, %v590
    %592 = vmatmul.f32.gmra.mxu0 %v571
    %v593 = vpop.f32.mrf.mxu0
    %v594 = vadd.f32 %v565, %v593
    %595 = vdwg.mxu0
    %s596 = scalar_lea.vmem %s3, 64
    %v597 = vld [vmem:[%s596] sm:$0xff]
    %v598 = vld [vmem:[%s596 + $0x8] sm:$0xff]
    %v599 = vld [vmem:[%s596 + $0x10] sm:$0xff]
    %v600 = vld [vmem:[%s596 + $0x18] sm:$0xff]
    %s601 = scalar_lea.vmem %s4, 2
    %v602 = vld [vmem:[%s601] sm:$0x1]
    %v604 = vperm.slane %v602, 0
    %606 = vmatpush.msra.mxu0 0.0
    %607 = vmatpush.msra.mxu0 0.0
    %608 = vmatpush.msra.mxu0 0.0
    %609 = vmatpush.msra.mxu0 0.0
    %610 = vmatpush.msra.mxu0 0.0
    %611 = vmatpush.msra.mxu0 0.0
    %612 = vmatpush.msra.mxu0 0.0
    %613 = vmatpush.msra.mxu0 0.0
    %614 = vmatpush.msra.mxu0 0.0
    %615 = vmatpush.msra.mxu0 0.0
    %616 = vmatpush.msra.mxu0 0.0
    %617 = vmatpush.msra.mxu0 0.0
    %618 = vmatpush.msra.mxu0 %v600
    %619 = vmatpush.msra.mxu0 %v599
    %620 = vmatpush.msra.mxu0 %v598
    %621 = vmatpush.msra.mxu0 %v597
    %622 = vmatmul.f32.gmra.mxu0 %v166
    %v623 = vpop.f32.mrf.mxu0
    %v624 = vadd.f32 %v604, %v623
    %625 = vmatmul.f32.gmra.mxu0 %v169
    %v626 = vpop.f32.mrf.mxu0
    %v627 = vadd.f32 %v604, %v626
    %628 = vdwg.mxu0
    %s629 = scalar_lea.vmem %s5, 64
    %v630 = vld [vmem:[%s629] sm:$0xff]
    %v631 = vld [vmem:[%s629 + $0x8] sm:$0xff]
    %v632 = vld [vmem:[%s629 + $0x10] sm:$0xff]
    %v633 = vld [vmem:[%s629 + $0x18] sm:$0xff]
    %s634 = scalar_lea.vmem %s6, 2
    %v635 = vld [vmem:[%s634] sm:$0x1]
    %v637 = vperm.slane %v635, 0
    %639 = vmatpush.msra.mxu0 0.0
    %640 = vmatpush.msra.mxu0 0.0
    %641 = vmatpush.msra.mxu0 0.0
    %642 = vmatpush.msra.mxu0 0.0
    %643 = vmatpush.msra.mxu0 0.0
    %644 = vmatpush.msra.mxu0 0.0
    %645 = vmatpush.msra.mxu0 0.0
    %646 = vmatpush.msra.mxu0 0.0
    %647 = vmatpush.msra.mxu0 0.0
    %648 = vmatpush.msra.mxu0 0.0
    %649 = vmatpush.msra.mxu0 0.0
    %650 = vmatpush.msra.mxu0 0.0
    %651 = vmatpush.msra.mxu0 %v633
    %652 = vmatpush.msra.mxu0 %v632
    %653 = vmatpush.msra.mxu0 %v631
    %654 = vmatpush.msra.mxu0 %v630
    %655 = vmatmul.f32.gmra.mxu0 %v166
    %v656 = vpop.f32.mrf.mxu0
    %v657 = vadd.f32 %v637, %v656
    %658 = vmatmul.f32.gmra.mxu0 %v169
    %v659 = vpop.f32.mrf.mxu0
    %v660 = vadd.f32 %v637, %v659
    %661 = vdwg.mxu0
    %s662 = scalar_lea.vmem %s7, 64
    %v663 = vld [vmem:[%s662] sm:$0xff]
    %v664 = vld [vmem:[%s662 + $0x8] sm:$0xff]
    %v665 = vld [vmem:[%s662 + $0x10] sm:$0xff]
    %v666 = vld [vmem:[%s662 + $0x18] sm:$0xff]
    %s667 = scalar_lea.vmem %s8, 2
    %v668 = vld [vmem:[%s667] sm:$0x1]
    %v670 = vperm.slane %v668, 0
    %672 = vmatpush.msra.mxu0 0.0
    %673 = vmatpush.msra.mxu0 0.0
    %674 = vmatpush.msra.mxu0 0.0
    %675 = vmatpush.msra.mxu0 0.0
    %676 = vmatpush.msra.mxu0 0.0
    %677 = vmatpush.msra.mxu0 0.0
    %678 = vmatpush.msra.mxu0 0.0
    %679 = vmatpush.msra.mxu0 0.0
    %680 = vmatpush.msra.mxu0 0.0
    %681 = vmatpush.msra.mxu0 0.0
    %682 = vmatpush.msra.mxu0 0.0
    %683 = vmatpush.msra.mxu0 0.0
    %684 = vmatpush.msra.mxu0 %v666
    %685 = vmatpush.msra.mxu0 %v665
    %686 = vmatpush.msra.mxu0 %v664
    %687 = vmatpush.msra.mxu0 %v663
    %688 = vmatmul.f32.gmra.mxu0 %v166
    %v689 = vpop.f32.mrf.mxu0
    %v690 = vadd.f32 %v670, %v689
    %691 = vmatmul.f32.gmra.mxu0 %v169
    %v692 = vpop.f32.mrf.mxu0
    %v693 = vadd.f32 %v670, %v692
    %694 = vdwg.mxu0
    %v696 = vsel %vm256, %v624, 0
    %v699 = vsel %vm256, %v627, 0
    %v702 = vsel %vm256, %v657, 0
    %v705 = vsel %vm256, %v660, 0
    %707 = vmatpush.xpose.msra.mxu0 0.0
    %708 = vmatpush.xpose.msra.mxu0 0.0
    %709 = vmatpush.xpose.msra.mxu0 0.0
    %710 = vmatpush.xpose.msra.mxu0 0.0
    %711 = vmatpush.xpose.msra.mxu0 0.0
    %712 = vmatpush.xpose.msra.mxu0 0.0
    %713 = vmatpush.xpose.msra.mxu0 0.0
    %714 = vmatpush.xpose.msra.mxu0 0.0
    %715 = vmatpush.xpose.msra.mxu0 0.0
    %716 = vmatpush.xpose.msra.mxu0 0.0
    %717 = vmatpush.xpose.msra.mxu0 0.0
    %718 = vmatpush.xpose.msra.mxu0 0.0
    %719 = vmatpush.xpose.msra.mxu0 0.0
    %720 = vmatpush.xpose.msra.mxu0 0.0
    %721 = vmatpush.xpose.msra.mxu0 %v705
    %722 = vmatpush.xpose.msra.mxu0 %v702
    %723 = vmatmul.f32.gmra.mxu0 %v696
    %v724 = vpop.f32.mrf.mxu0
    %v725 = vadd.f32 %v112, %v724
    %726 = vmatmul.f32.gmra.mxu0 %v699
    %v727 = vpop.f32.mrf.mxu0
    %v728 = vadd.f32 %v113, %v727
    %729 = vdwg.mxu0
    %v730 = vsel %vm122, %v725, -inf
    %731 = vmax.xlane.f32.xlu0 %v730
    %v732 = vpop.xlane.xlu0 %731
    %v733 = vsel %vm295, %v728, -inf
    %734 = vmax.xlane.f32.xlu0 %v733
    %v735 = vpop.xlane.xlu0 %734
    %v736 = vsub.f32 %v725, %v732
    %v737 = vsub.f32 %v728, %v735
    %v738 = vmul.f32 %v736, 1.442695
    %v739 = vpow.pop %v738
    %v740 = vmul.f32 %v737, 1.442695
    %v741 = vpow.pop %v740
    %v742 = vsel %vm122, %v739, 0.0
    %743 = vadd.xlane.f32.xlu0 %v742
    %v744 = vpop.xlane.xlu0 %743
    %v745 = vsel %vm295, %v741, 0.0
    %746 = vadd.xlane.f32.xlu0 %v745
    %v747 = vpop.xlane.xlu0 %746
    %v748 = vrcp.pop %v744
    %v749 = vrcp.pop %v747
    %v750 = vmul.f32 %v739, %v748
    %v751 = vmul.f32 %v741, %v749
    %v753 = vsel %vm122, %v750, 0
    %v756 = vsel %vm122, %v751, 0
    %v759 = vsel %vm129, %v693, 0
    %761 = vmatpush.msra.mxu0 0.0
    %762 = vmatpush.msra.mxu0 0.0
    %763 = vmatpush.msra.mxu0 0.0
    %764 = vmatpush.msra.mxu0 0.0
    %765 = vmatpush.msra.mxu0 0.0
    %766 = vmatpush.msra.mxu0 0.0
    %767 = vmatpush.msra.mxu0 0.0
    %768 = vmatpush.msra.mxu0 0.0
    %769 = vmatpush.msra.mxu0 0.0
    %770 = vmatpush.msra.mxu0 0.0
    %771 = vmatpush.msra.mxu0 0.0
    %772 = vmatpush.msra.mxu0 0.0
    %773 = vmatpush.msra.mxu0 0.0
    %774 = vmatpush.msra.mxu0 0.0
    %775 = vmatpush.msra.mxu0 %v759
    %776 = vmatpush.msra.mxu0 %v690
    %777 = vmatmul.f32.gmra.mxu0 %v753
    %v778 = vpop.f32.mrf.mxu0
    %v779 = vadd.f32 0.0, %v778
    %780 = vmatmul.f32.gmra.mxu0 %v756
    %v781 = vpop.f32.mrf.mxu0
    %v782 = vadd.f32 0.0, %v781
    %783 = vdwg.mxu0
    %s784 = scalar_lea.vmem %s9, 16
    %v785 = vld [vmem:[%s784] sm:$0xff]
    %v787 = vsel %vm256, %v779, 0
    %v790 = vsel %vm256, %v782, 0
    %792 = vmatpush.msra.mxu0 0.0
    %793 = vmatpush.msra.mxu0 0.0
    %794 = vmatpush.msra.mxu0 0.0
    %795 = vmatpush.msra.mxu0 0.0
    %796 = vmatpush.msra.mxu0 0.0
    %797 = vmatpush.msra.mxu0 0.0
    %798 = vmatpush.msra.mxu0 0.0
    %799 = vmatpush.msra.mxu0 0.0
    %800 = vmatpush.msra.mxu0 0.0
    %801 = vmatpush.msra.mxu0 0.0
    %802 = vmatpush.msra.mxu0 0.0
    %803 = vmatpush.msra.mxu0 0.0
    %804 = vmatpush.msra.mxu0 0.0
    %805 = vmatpush.msra.mxu0 0.0
    %806 = vmatpush.msra.mxu0 0.0
    %807 = vmatpush.msra.mxu0 %v785
    %808 = vmatmul.f32.gmra.mxu0 %v787
    %v809 = vpop.f32.mrf.mxu0
    %v810 = vadd.f32 0.0, %v809
    %811 = vmatmul.f32.gmra.mxu0 %v790
    %v812 = vpop.f32.mrf.mxu0
    %v813 = vadd.f32 0.0, %v812
    %814 = vdwg.mxu0
    %v815 = vadd.f32 %v591, %v810
    %v816 = vadd.f32 %v594, %v813
    %s817 = scalar_lea.vmem %s3, 96
    %v818 = vld [vmem:[%s817] sm:$0xff]
    %v819 = vld [vmem:[%s817 + $0x8] sm:$0xff]
    %v820 = vld [vmem:[%s817 + $0x10] sm:$0xff]
    %v821 = vld [vmem:[%s817 + $0x18] sm:$0xff]
    %s822 = scalar_lea.vmem %s4, 3
    %v823 = vld [vmem:[%s822] sm:$0x1]
    %v825 = vperm.slane %v823, 0
    %827 = vmatpush.msra.mxu0 0.0
    %828 = vmatpush.msra.mxu0 0.0
    %829 = vmatpush.msra.mxu0 0.0
    %830 = vmatpush.msra.mxu0 0.0
    %831 = vmatpush.msra.mxu0 0.0
    %832 = vmatpush.msra.mxu0 0.0
    %833 = vmatpush.msra.mxu0 0.0
    %834 = vmatpush.msra.mxu0 0.0
    %835 = vmatpush.msra.mxu0 0.0
    %836 = vmatpush.msra.mxu0 0.0
    %837 = vmatpush.msra.mxu0 0.0
    %838 = vmatpush.msra.mxu0 0.0
    %839 = vmatpush.msra.mxu0 %v821
    %840 = vmatpush.msra.mxu0 %v820
    %841 = vmatpush.msra.mxu0 %v819
    %842 = vmatpush.msra.mxu0 %v818
    %843 = vmatmul.f32.gmra.mxu0 %v166
    %v844 = vpop.f32.mrf.mxu0
    %v845 = vadd.f32 %v825, %v844
    %846 = vmatmul.f32.gmra.mxu0 %v169
    %v847 = vpop.f32.mrf.mxu0
    %v848 = vadd.f32 %v825, %v847
    %849 = vdwg.mxu0
    %s850 = scalar_lea.vmem %s5, 96
    %v851 = vld [vmem:[%s850] sm:$0xff]
    %v852 = vld [vmem:[%s850 + $0x8] sm:$0xff]
    %v853 = vld [vmem:[%s850 + $0x10] sm:$0xff]
    %v854 = vld [vmem:[%s850 + $0x18] sm:$0xff]
    %s855 = scalar_lea.vmem %s6, 3
    %v856 = vld [vmem:[%s855] sm:$0x1]
    %v858 = vperm.slane %v856, 0
    %860 = vmatpush.msra.mxu0 0.0
    %861 = vmatpush.msra.mxu0 0.0
    %862 = vmatpush.msra.mxu0 0.0
    %863 = vmatpush.msra.mxu0 0.0
    %864 = vmatpush.msra.mxu0 0.0
    %865 = vmatpush.msra.mxu0 0.0
    %866 = vmatpush.msra.mxu0 0.0
    %867 = vmatpush.msra.mxu0 0.0
    %868 = vmatpush.msra.mxu0 0.0
    %869 = vmatpush.msra.mxu0 0.0
    %870 = vmatpush.msra.mxu0 0.0
    %871 = vmatpush.msra.mxu0 0.0
    %872 = vmatpush.msra.mxu0 %v854
    %873 = vmatpush.msra.mxu0 %v853
    %874 = vmatpush.msra.mxu0 %v852
    %875 = vmatpush.msra.mxu0 %v851
    %876 = vmatmul.f32.gmra.mxu0 %v166
    %v877 = vpop.f32.mrf.mxu0
    %v878 = vadd.f32 %v858, %v877
    %879 = vmatmul.f32.gmra.mxu0 %v169
    %v880 = vpop.f32.mrf.mxu0
    %v881 = vadd.f32 %v858, %v880
    %882 = vdwg.mxu0
    %s883 = scalar_lea.vmem %s7, 96
    %v884 = vld [vmem:[%s883] sm:$0xff]
    %v885 = vld [vmem:[%s883 + $0x8] sm:$0xff]
    %v886 = vld [vmem:[%s883 + $0x10] sm:$0xff]
    %v887 = vld [vmem:[%s883 + $0x18] sm:$0xff]
    %s888 = scalar_lea.vmem %s8, 3
    %v889 = vld [vmem:[%s888] sm:$0x1]
    %v891 = vperm.slane %v889, 0
    %893 = vmatpush.msra.mxu0 0.0
    %894 = vmatpush.msra.mxu0 0.0
    %895 = vmatpush.msra.mxu0 0.0
    %896 = vmatpush.msra.mxu0 0.0
    %897 = vmatpush.msra.mxu0 0.0
    %898 = vmatpush.msra.mxu0 0.0
    %899 = vmatpush.msra.mxu0 0.0
    %900 = vmatpush.msra.mxu0 0.0
    %901 = vmatpush.msra.mxu0 0.0
    %902 = vmatpush.msra.mxu0 0.0
    %903 = vmatpush.msra.mxu0 0.0
    %904 = vmatpush.msra.mxu0 0.0
    %905 = vmatpush.msra.mxu0 %v887
    %906 = vmatpush.msra.mxu0 %v886
    %907 = vmatpush.msra.mxu0 %v885
    %908 = vmatpush.msra.mxu0 %v884
    %909 = vmatmul.f32.gmra.mxu0 %v166
    %v910 = vpop.f32.mrf.mxu0
    %v911 = vadd.f32 %v891, %v910
    %912 = vmatmul.f32.gmra.mxu0 %v169
    %v913 = vpop.f32.mrf.mxu0
    %v914 = vadd.f32 %v891, %v913
    %915 = vdwg.mxu0
    %v917 = vsel %vm256, %v845, 0
    %v920 = vsel %vm256, %v848, 0
    %v923 = vsel %vm256, %v878, 0
    %v926 = vsel %vm256, %v881, 0
    %928 = vmatpush.xpose.msra.mxu0 0.0
    %929 = vmatpush.xpose.msra.mxu0 0.0
    %930 = vmatpush.xpose.msra.mxu0 0.0
    %931 = vmatpush.xpose.msra.mxu0 0.0
    %932 = vmatpush.xpose.msra.mxu0 0.0
    %933 = vmatpush.xpose.msra.mxu0 0.0
    %934 = vmatpush.xpose.msra.mxu0 0.0
    %935 = vmatpush.xpose.msra.mxu0 0.0
    %936 = vmatpush.xpose.msra.mxu0 0.0
    %937 = vmatpush.xpose.msra.mxu0 0.0
    %938 = vmatpush.xpose.msra.mxu0 0.0
    %939 = vmatpush.xpose.msra.mxu0 0.0
    %940 = vmatpush.xpose.msra.mxu0 0.0
    %941 = vmatpush.xpose.msra.mxu0 0.0
    %942 = vmatpush.xpose.msra.mxu0 %v926
    %943 = vmatpush.xpose.msra.mxu0 %v923
    %944 = vmatmul.f32.gmra.mxu0 %v917
    %v945 = vpop.f32.mrf.mxu0
    %v946 = vadd.f32 %v112, %v945
    %947 = vmatmul.f32.gmra.mxu0 %v920
    %v948 = vpop.f32.mrf.mxu0
    %v949 = vadd.f32 %v113, %v948
    %950 = vdwg.mxu0
    %v951 = vsel %vm122, %v946, -inf
    %952 = vmax.xlane.f32.xlu0 %v951
    %v953 = vpop.xlane.xlu0 %952
    %v954 = vsel %vm295, %v949, -inf
    %955 = vmax.xlane.f32.xlu0 %v954
    %v956 = vpop.xlane.xlu0 %955
    %v957 = vsub.f32 %v946, %v953
    %v958 = vsub.f32 %v949, %v956
    %v959 = vmul.f32 %v957, 1.442695
    %v960 = vpow.pop %v959
    %v961 = vmul.f32 %v958, 1.442695
    %v962 = vpow.pop %v961
    %v963 = vsel %vm122, %v960, 0.0
    %964 = vadd.xlane.f32.xlu0 %v963
    %v965 = vpop.xlane.xlu0 %964
    %v966 = vsel %vm295, %v962, 0.0
    %967 = vadd.xlane.f32.xlu0 %v966
    %v968 = vpop.xlane.xlu0 %967
    %v969 = vrcp.pop %v965
    %v970 = vrcp.pop %v968
    %v971 = vmul.f32 %v960, %v969
    %v972 = vmul.f32 %v962, %v970
    %v974 = vsel %vm122, %v971, 0
    %v977 = vsel %vm122, %v972, 0
    %v980 = vsel %vm129, %v914, 0
    %982 = vmatpush.msra.mxu0 0.0
    %983 = vmatpush.msra.mxu0 0.0
    %984 = vmatpush.msra.mxu0 0.0
    %985 = vmatpush.msra.mxu0 0.0
    %986 = vmatpush.msra.mxu0 0.0
    %987 = vmatpush.msra.mxu0 0.0
    %988 = vmatpush.msra.mxu0 0.0
    %989 = vmatpush.msra.mxu0 0.0
    %990 = vmatpush.msra.mxu0 0.0
    %991 = vmatpush.msra.mxu0 0.0
    %992 = vmatpush.msra.mxu0 0.0
    %993 = vmatpush.msra.mxu0 0.0
    %994 = vmatpush.msra.mxu0 0.0
    %995 = vmatpush.msra.mxu0 0.0
    %996 = vmatpush.msra.mxu0 %v980
    %997 = vmatpush.msra.mxu0 %v911
    %998 = vmatmul.f32.gmra.mxu0 %v974
    %v999 = vpop.f32.mrf.mxu0
    %v1000 = vadd.f32 0.0, %v999
    %1001 = vmatmul.f32.gmra.mxu0 %v977
    %v1002 = vpop.f32.mrf.mxu0
    %v1003 = vadd.f32 0.0, %v1002
    %1004 = vdwg.mxu0
    %s1005 = scalar_lea.vmem %s9, 24
    %v1006 = vld [vmem:[%s1005] sm:$0xff]
    %v1008 = vsel %vm256, %v1000, 0
    %v1011 = vsel %vm256, %v1003, 0
    %1013 = vmatpush.msra.mxu0 0.0
    %1014 = vmatpush.msra.mxu0 0.0
    %1015 = vmatpush.msra.mxu0 0.0
    %1016 = vmatpush.msra.mxu0 0.0
    %1017 = vmatpush.msra.mxu0 0.0
    %1018 = vmatpush.msra.mxu0 0.0
    %1019 = vmatpush.msra.mxu0 0.0
    %1020 = vmatpush.msra.mxu0 0.0
    %1021 = vmatpush.msra.mxu0 0.0
    %1022 = vmatpush.msra.mxu0 0.0
    %1023 = vmatpush.msra.mxu0 0.0
    %1024 = vmatpush.msra.mxu0 0.0
    %1025 = vmatpush.msra.mxu0 0.0
    %1026 = vmatpush.msra.mxu0 0.0
    %1027 = vmatpush.msra.mxu0 0.0
    %1028 = vmatpush.msra.mxu0 %v1006
    %1029 = vmatmul.f32.gmra.mxu0 %v1008
    %v1030 = vpop.f32.mrf.mxu0
    %v1031 = vadd.f32 0.0, %v1030
    %1032 = vmatmul.f32.gmra.mxu0 %v1011
    %v1033 = vpop.f32.mrf.mxu0
    %v1034 = vadd.f32 0.0, %v1033
    %1035 = vdwg.mxu0
    %v1036 = vadd.f32 %v815, %v1031
    %v1037 = vadd.f32 %v816, %v1034
    %v1038 = vld [vmem:[%s10] sm:$0x1]
    %v1040 = vperm.slane %v1038, 0
    %v1042 = vadd.f32 %v1036, %v1040
    %v1043 = vadd.f32 %v1037, %v1040
    %v1044 = vadd.f32 %v151, %v1042
    %v1045 = vadd.f32 %v154, %v1043
    %v1046 = vld [vmem:[%s11] sm:$0x1]
    %v1047 = vld [vmem:[%s12] sm:$0x1]
    %v1048 = vsel %vm164, %v1044, 0.0
    %1049 = vadd.xlane.f32.xlu0 %v1048
    %v1050 = vpop.xlane.xlu0 %1049
    %vm1051 = vcmask 257024
    %v1052 = vsel %vm1051, %v1045, 0.0
    %1053 = vadd.xlane.f32.xlu0 %v1052
    %v1054 = vpop.xlane.xlu0 %1053
    %v1055 = vrcp.pop 32.0
    %v1056 = vmul.f32 32.0, %v1055
    %v1057 = vsub.f32 1.0, %v1056
    %v1058 = vmul.f32 %v1055, %v1057
    %v1059 = vadd.f32 %v1055, %v1058
    %vm1060 = vweird.f32 %v1055
    %v1061 = vsel %vm1060, %v1055, %v1059
    %v1062 = vmul.f32 %v1050, %v1061
    %v1063 = vmul.f32 %v1054, %v1061
    %v1064 = vmul.f32 %v1044, %v1044
    %v1065 = vmul.f32 %v1045, %v1045
    %v1066 = vsel %vm164, %v1064, 0.0
    %1067 = vadd.xlane.f32.xlu0 %v1066
    %v1068 = vpop.xlane.xlu0 %1067
    %v1069 = vsel %vm1051, %v1065, 0.0
    %1070 = vadd.xlane.f32.xlu0 %v1069
    %v1071 = vpop.xlane.xlu0 %1070
    %v1072 = vmul.f32 %v1068, %v1061
    %v1073 = vmul.f32 %v1071, %v1061
    %v1074 = vmul.f32 %v1062, %v1062
    %v1075 = vmul.f32 %v1063, %v1063
    %v1076 = vsub.f32 %v1072, %v1074
    %v1077 = vsub.f32 %v1073, %v1075
    %v1078 = vsub.f32 %v1044, %v1062
    %v1079 = vsub.f32 %v1045, %v1063
    %v1080 = vadd.f32 %v1076, 1e-05
    %v1081 = vadd.f32 %v1077, 1e-05
    %v1082 = vrsqrt.pop %v1080
    %v1083 = vmul.f32 %v1082, %v1080
    %v1084 = vmul.f32 %v1083, %v1082
    %v1085 = vmul.f32 0.5, %v1084
    %v1086 = vsub.f32 1.5, %v1085
    %v1087 = vmul.f32 %v1082, %v1086
    %vm1088 = vweird.f32 %v1080
    %vm1089 = vweird.f32 %v1082
    %vm1090 = vmor %vm1088, %vm1089
    %v1091 = vsel %vm1090, %v1082, %v1087
    %v1092 = vrsqrt.pop %v1081
    %v1093 = vmul.f32 %v1092, %v1081
    %v1094 = vmul.f32 %v1093, %v1092
    %v1095 = vmul.f32 0.5, %v1094
    %v1096 = vsub.f32 1.5, %v1095
    %v1097 = vmul.f32 %v1092, %v1096
    %vm1098 = vweird.f32 %v1081
    %vm1099 = vweird.f32 %v1092
    %vm1100 = vmor %vm1098, %vm1099
    %v1101 = vsel %vm1100, %v1092, %v1097
    %v1102 = vmul.f32 %v1078, %v1091
    %v1103 = vmul.f32 %v1079, %v1101
    %v1105 = vperm.slane %v1046, 0
    %v1107 = vmul.f32 %v1102, %v1105
    %v1108 = vmul.f32 %v1103, %v1105
    %v1110 = vperm.slane %v1047, 0
    %v1112 = vadd.f32 %v1107, %v1110
    %v1113 = vadd.f32 %v1108, %v1110
    %v1114 = vld [vmem:[%s13] sm:$0xff]
    %v1115 = vld [vmem:[%s13 + $0x8] sm:$0xff]
    %v1116 = vld [vmem:[%s13 + $0x10] sm:$0xff]
    %v1117 = vld [vmem:[%s13 + $0x18] sm:$0xff]
    %v1118 = vld [vmem:[%s14] sm:$0x1]
    %v1120 = vperm.slane %v1118, 0
    %v1123 = vsel %vm164, %v1112, 0
    %v1126 = vsel %vm164, %v1113, 0
    %1128 = vmatpush.msra.mxu0 0.0
    %1129 = vmatpush.msra.mxu0 0.0
    %1130 = vmatpush.msra.mxu0 0.0
    %1131 = vmatpush.msra.mxu0 0.0
    %1132 = vmatpush.msra.mxu0 0.0
    %1133 = vmatpush.msra.mxu0 0.0
    %1134 = vmatpush.msra.mxu0 0.0
    %1135 = vmatpush.msra.mxu0 0.0
    %1136 = vmatpush.msra.mxu0 0.0
    %1137 = vmatpush.msra.mxu0 0.0
    %1138 = vmatpush.msra.mxu0 0.0
    %1139 = vmatpush.msra.mxu0 0.0
    %1140 = vmatpush.msra.mxu0 %v1117
    %1141 = vmatpush.msra.mxu0 %v1116
    %1142 = vmatpush.msra.mxu0 %v1115
    %1143 = vmatpush.msra.mxu0 %v1114
    %1144 = vmatmul.f32.gmra.mxu0 %v1123
    %v1145 = vpop.f32.mrf.mxu0
    %v1146 = vadd.f32 %v1120, %v1145
    %1147 = vmatmul.f32.gmra.mxu0 %v1126
    %v1148 = vpop.f32.mrf.mxu0
    %v1149 = vadd.f32 %v1120, %v1148
    %1150 = vdwg.mxu0
    %v1151 = vmax.f32 %v1146, 0.0
    %v1152 = vmax.f32 %v1149, 0.0
    %v1153 = vld [vmem:[%s15] sm:$0xff]
    %v1154 = vld [vmem:[%s15 + $0x8] sm:$0xff]
    %v1155 = vld [vmem:[%s15 + $0x10] sm:$0xff]
    %v1156 = vld [vmem:[%s15 + $0x18] sm:$0xff]
    %v1157 = vld [vmem:[%s15 + $0x20] sm:$0xff]
    %v1158 = vld [vmem:[%s15 + $0x28] sm:$0xff]
    %v1159 = vld [vmem:[%s15 + $0x30] sm:$0xff]
    %v1160 = vld [vmem:[%s15 + $0x38] sm:$0xff]
    %v1161 = vld [vmem:[%s16] sm:$0x1]
    %v1163 = vperm.slane %v1161, 0
    %vm1165 = vcmask 523264
    %v1167 = vsel %vm1165, %v1151, 0
    %v1170 = vsel %vm1165, %v1152, 0
    %1172 = vmatpush.msra.mxu0 0.0
    %1173 = vmatpush.msra.mxu0 0.0
    %1174 = vmatpush.msra.mxu0 0.0
    %1175 = vmatpush.msra.mxu0 0.0
    %1176 = vmatpush.msra.mxu0 0.0
    %1177 = vmatpush.msra.mxu0 0.0
    %1178 = vmatpush.msra.mxu0 0.0
    %1179 = vmatpush.msra.mxu0 0.0
    %1180 = vmatpush.msra.mxu0 %v1160
    %1181 = vmatpush.msra.mxu0 %v1159
    %1182 = vmatpush.msra.mxu0 %v1158
    %1183 = vmatpush.msra.mxu0 %v1157
    %1184 = vmatpush.msra.mxu0 %v1156
    %1185 = vmatpush.msra.mxu0 %v1155
    %1186 = vmatpush.msra.mxu0 %v1154
    %1187 = vmatpush.msra.mxu0 %v1153
    %1188 = vmatmul.f32.gmra.mxu0 %v1167
    %v1189 = vpop.f32.mrf.mxu0
    %v1190 = vadd.f32 %v1163, %v1189
    %1191 = vmatmul.f32.gmra.mxu0 %v1170
    %v1192 = vpop.f32.mrf.mxu0
    %v1193 = vadd.f32 %v1163, %v1192
    %1194 = vdwg.mxu0
    %v1195 = vadd.f32 %v1112, %v1190
    %v1196 = vadd.f32 %v1113, %v1193
    %v1197 = vld [vmem:[%s17] sm:$0x1]
    %v1198 = vld [vmem:[%s18] sm:$0x1]
    %v1199 = vsel %vm164, %v1195, 0.0
    %1200 = vadd.xlane.f32.xlu0 %v1199
    %v1201 = vpop.xlane.xlu0 %1200
    %v1202 = vsel %vm1051, %v1196, 0.0
    %1203 = vadd.xlane.f32.xlu0 %v1202
    %v1204 = vpop.xlane.xlu0 %1203
    %v1205 = vmul.f32 %v1201, %v1061
    %v1206 = vmul.f32 %v1204, %v1061
    %v1207 = vmul.f32 %v1195, %v1195
    %v1208 = vmul.f32 %v1196, %v1196
    %v1209 = vsel %vm164, %v1207, 0.0
    %1210 = vadd.xlane.f32.xlu0 %v1209
    %v1211 = vpop.xlane.xlu0 %1210
    %v1212 = vsel %vm1051, %v1208, 0.0
    %1213 = vadd.xlane.f32.xlu0 %v1212
    %v1214 = vpop.xlane.xlu0 %1213
    %v1215 = vmul.f32 %v1211, %v1061
    %v1216 = vmul.f32 %v1214, %v1061
    %v1217 = vmul.f32 %v1205, %v1205
    %v1218 = vmul.f32 %v1206, %v1206
    %v1219 = vsub.f32 %v1215, %v1217
    %v1220 = vsub.f32 %v1216, %v1218
    %v1221 = vsub.f32 %v1195, %v1205
    %v1222 = vsub.f32 %v1196, %v1206
    %v1223 = vadd.f32 %v1219, 1e-05
    %v1224 = vadd.f32 %v1220, 1e-05
    %v1225 = vrsqrt.pop %v1223
    %v1226 = vmul.f32 %v1225, %v1223
    %v1227 = vmul.f32 %v1226, %v1225
    %v1228 = vmul.f32 0.5, %v1227
    %v1229 = vsub.f32 1.5, %v1228
    %v1230 = vmul.f32 %v1225, %v1229
    %vm1231 = vweird.f32 %v1223
    %vm1232 = vweird.f32 %v1225
    %vm1233 = vmor %vm1231, %vm1232
    %v1234 = vsel %vm1233, %v1225, %v1230
    %v1235 = vrsqrt.pop %v1224
    %v1236 = vmul.f32 %v1235, %v1224
    %v1237 = vmul.f32 %v1236, %v1235
    %v1238 = vmul.f32 0.5, %v1237
    %v1239 = vsub.f32 1.5, %v1238
    %v1240 = vmul.f32 %v1235, %v1239
    %vm1241 = vweird.f32 %v1224
    %vm1242 = vweird.f32 %v1235
    %vm1243 = vmor %vm1241, %vm1242
    %v1244 = vsel %vm1243, %v1235, %v1240
    %v1245 = vmul.f32 %v1221, %v1234
    %v1246 = vmul.f32 %v1222, %v1244
    %v1248 = vperm.slane %v1197, 0
    %v1250 = vmul.f32 %v1245, %v1248
    %v1251 = vmul.f32 %v1246, %v1248
    %v1253 = vperm.slane %v1198, 0
    %v1255 = vadd.f32 %v1250, %v1253
    %v1256 = vadd.f32 %v1251, %v1253
    %s1257 = scalar_lea.vmem %s3, 128
    %v1258 = vld [vmem:[%s1257] sm:$0xff]
    %v1259 = vld [vmem:[%s1257 + $0x8] sm:$0xff]
    %v1260 = vld [vmem:[%s1257 + $0x10] sm:$0xff]
    %v1261 = vld [vmem:[%s1257 + $0x18] sm:$0xff]
    %s1262 = scalar_lea.vmem %s4, 4
    %v1263 = vld [vmem:[%s1262] sm:$0x1]
    %v1265 = vperm.slane %v1263, 0
    %v1268 = vsel %vm164, %v1255, 0
    %v1271 = vsel %vm164, %v1256, 0
    %1273 = vmatpush.msra.mxu0 0.0
    %1274 = vmatpush.msra.mxu0 0.0
    %1275 = vmatpush.msra.mxu0 0.0
    %1276 = vmatpush.msra.mxu0 0.0
    %1277 = vmatpush.msra.mxu0 0.0
    %1278 = vmatpush.msra.mxu0 0.0
    %1279 = vmatpush.msra.mxu0 0.0
    %1280 = vmatpush.msra.mxu0 0.0
    %1281 = vmatpush.msra.mxu0 0.0
    %1282 = vmatpush.msra.mxu0 0.0
    %1283 = vmatpush.msra.mxu0 0.0
    %1284 = vmatpush.msra.mxu0 0.0
    %1285 = vmatpush.msra.mxu0 %v1261
    %1286 = vmatpush.msra.mxu0 %v1260
    %1287 = vmatpush.msra.mxu0 %v1259
    %1288 = vmatpush.msra.mxu0 %v1258
    %1289 = vmatmul.f32.gmra.mxu0 %v1268
    %v1290 = vpop.f32.mrf.mxu0
    %v1291 = vadd.f32 %v1265, %v1290
    %1292 = vmatmul.f32.gmra.mxu0 %v1271
    %v1293 = vpop.f32.mrf.mxu0
    %v1294 = vadd.f32 %v1265, %v1293
    %1295 = vdwg.mxu0
    %s1296 = scalar_lea.vmem %s5, 128
    %v1297 = vld [vmem:[%s1296] sm:$0xff]
    %v1298 = vld [vmem:[%s1296 + $0x8] sm:$0xff]
    %v1299 = vld [vmem:[%s1296 + $0x10] sm:$0xff]
    %v1300 = vld [vmem:[%s1296 + $0x18] sm:$0xff]
    %s1301 = scalar_lea.vmem %s6, 4
    %v1302 = vld [vmem:[%s1301] sm:$0x1]
    %v1304 = vperm.slane %v1302, 0
    %1306 = vmatpush.msra.mxu0 0.0
    %1307 = vmatpush.msra.mxu0 0.0
    %1308 = vmatpush.msra.mxu0 0.0
    %1309 = vmatpush.msra.mxu0 0.0
    %1310 = vmatpush.msra.mxu0 0.0
    %1311 = vmatpush.msra.mxu0 0.0
    %1312 = vmatpush.msra.mxu0 0.0
    %1313 = vmatpush.msra.mxu0 0.0
    %1314 = vmatpush.msra.mxu0 0.0
    %1315 = vmatpush.msra.mxu0 0.0
    %1316 = vmatpush.msra.mxu0 0.0
    %1317 = vmatpush.msra.mxu0 0.0
    %1318 = vmatpush.msra.mxu0 %v1300
    %1319 = vmatpush.msra.mxu0 %v1299
    %1320 = vmatpush.msra.mxu0 %v1298
    %1321 = vmatpush.msra.mxu0 %v1297
    %1322 = vmatmul.f32.gmra.mxu0 %v1268
    %v1323 = vpop.f32.mrf.mxu0
    %v1324 = vadd.f32 %v1304, %v1323
    %1325 = vmatmul.f32.gmra.mxu0 %v1271
    %v1326 = vpop.f32.mrf.mxu0
    %v1327 = vadd.f32 %v1304, %v1326
    %1328 = vdwg.mxu0
    %s1329 = scalar_lea.vmem %s7, 128
    %v1330 = vld [vmem:[%s1329] sm:$0xff]
    %v1331 = vld [vmem:[%s1329 + $0x8] sm:$0xff]
    %v1332 = vld [vmem:[%s1329 + $0x10] sm:$0xff]
    %v1333 = vld [vmem:[%s1329 + $0x18] sm:$0xff]
    %s1334 = scalar_lea.vmem %s8, 4
    %v1335 = vld [vmem:[%s1334] sm:$0x1]
    %v1337 = vperm.slane %v1335, 0
    %1339 = vmatpush.msra.mxu0 0.0
    %1340 = vmatpush.msra.mxu0 0.0
    %1341 = vmatpush.msra.mxu0 0.0
    %1342 = vmatpush.msra.mxu0 0.0
    %1343 = vmatpush.msra.mxu0 0.0
    %1344 = vmatpush.msra.mxu0 0.0
    %1345 = vmatpush.msra.mxu0 0.0
    %1346 = vmatpush.msra.mxu0 0.0
    %1347 = vmatpush.msra.mxu0 0.0
    %1348 = vmatpush.msra.mxu0 0.0
    %1349 = vmatpush.msra.mxu0 0.0
    %1350 = vmatpush.msra.mxu0 0.0
    %1351 = vmatpush.msra.mxu0 %v1333
    %1352 = vmatpush.msra.mxu0 %v1332
    %1353 = vmatpush.msra.mxu0 %v1331
    %1354 = vmatpush.msra.mxu0 %v1330
    %1355 = vmatmul.f32.gmra.mxu0 %v1268
    %v1356 = vpop.f32.mrf.mxu0
    %v1357 = vadd.f32 %v1337, %v1356
    %1358 = vmatmul.f32.gmra.mxu0 %v1271
    %v1359 = vpop.f32.mrf.mxu0
    %v1360 = vadd.f32 %v1337, %v1359
    %1361 = vdwg.mxu0
    %v1363 = vsel %vm256, %v1291, 0
    %v1366 = vsel %vm256, %v1294, 0
    %v1369 = vsel %vm256, %v1324, 0
    %v1372 = vsel %vm256, %v1327, 0
    %1374 = vmatpush.xpose.msra.mxu0 0.0
    %1375 = vmatpush.xpose.msra.mxu0 0.0
    %1376 = vmatpush.xpose.msra.mxu0 0.0
    %1377 = vmatpush.xpose.msra.mxu0 0.0
    %1378 = vmatpush.xpose.msra.mxu0 0.0
    %1379 = vmatpush.xpose.msra.mxu0 0.0
    %1380 = vmatpush.xpose.msra.mxu0 0.0
    %1381 = vmatpush.xpose.msra.mxu0 0.0
    %1382 = vmatpush.xpose.msra.mxu0 0.0
    %1383 = vmatpush.xpose.msra.mxu0 0.0
    %1384 = vmatpush.xpose.msra.mxu0 0.0
    %1385 = vmatpush.xpose.msra.mxu0 0.0
    %1386 = vmatpush.xpose.msra.mxu0 0.0
    %1387 = vmatpush.xpose.msra.mxu0 0.0
    %1388 = vmatpush.xpose.msra.mxu0 %v1372
    %1389 = vmatpush.xpose.msra.mxu0 %v1369
    %1390 = vmatmul.f32.gmra.mxu0 %v1363
    %v1391 = vpop.f32.mrf.mxu0
    %v1392 = vadd.f32 %v112, %v1391
    %1393 = vmatmul.f32.gmra.mxu0 %v1366
    %v1394 = vpop.f32.mrf.mxu0
    %v1395 = vadd.f32 %v113, %v1394
    %1396 = vdwg.mxu0
    %v1397 = vsel %vm122, %v1392, -inf
    %1398 = vmax.xlane.f32.xlu0 %v1397
    %v1399 = vpop.xlane.xlu0 %1398
    %v1400 = vsel %vm295, %v1395, -inf
    %1401 = vmax.xlane.f32.xlu0 %v1400
    %v1402 = vpop.xlane.xlu0 %1401
    %v1403 = vsub.f32 %v1392, %v1399
    %v1404 = vsub.f32 %v1395, %v1402
    %v1405 = vmul.f32 %v1403, 1.442695
    %v1406 = vpow.pop %v1405
    %v1407 = vmul.f32 %v1404, 1.442695
    %v1408 = vpow.pop %v1407
    %v1409 = vsel %vm122, %v1406, 0.0
    %1410 = vadd.xlane.f32.xlu0 %v1409
    %v1411 = vpop.xlane.xlu0 %1410
    %v1412 = vsel %vm295, %v1408, 0.0
    %1413 = vadd.xlane.f32.xlu0 %v1412
    %v1414 = vpop.xlane.xlu0 %1413
    %v1415 = vrcp.pop %v1411
    %v1416 = vrcp.pop %v1414
    %v1417 = vmul.f32 %v1406, %v1415
    %v1418 = vmul.f32 %v1408, %v1416
    %v1420 = vsel %vm122, %v1417, 0
    %v1423 = vsel %vm122, %v1418, 0
    %v1426 = vsel %vm129, %v1360, 0
    %1428 = vmatpush.msra.mxu0 0.0
    %1429 = vmatpush.msra.mxu0 0.0
    %1430 = vmatpush.msra.mxu0 0.0
    %1431 = vmatpush.msra.mxu0 0.0
    %1432 = vmatpush.msra.mxu0 0.0
    %1433 = vmatpush.msra.mxu0 0.0
    %1434 = vmatpush.msra.mxu0 0.0
    %1435 = vmatpush.msra.mxu0 0.0
    %1436 = vmatpush.msra.mxu0 0.0
    %1437 = vmatpush.msra.mxu0 0.0
    %1438 = vmatpush.msra.mxu0 0.0
    %1439 = vmatpush.msra.mxu0 0.0
    %1440 = vmatpush.msra.mxu0 0.0
    %1441 = vmatpush.msra.mxu0 0.0
    %1442 = vmatpush.msra.mxu0 %v1426
    %1443 = vmatpush.msra.mxu0 %v1357
    %1444 = vmatmul.f32.gmra.mxu0 %v1420
    %v1445 = vpop.f32.mrf.mxu0
    %v1446 = vadd.f32 0.0, %v1445
    %1447 = vmatmul.f32.gmra.mxu0 %v1423
    %v1448 = vpop.f32.mrf.mxu0
    %v1449 = vadd.f32 0.0, %v1448
    %1450 = vdwg.mxu0
    %s1451 = scalar_lea.vmem %s9, 32
    %v1452 = vld [vmem:[%s1451] sm:$0xff]
    %s1453 = scalar_lea.vmem %s3, 160
    %v1454 = vld [vmem:[%s1453] sm:$0xff]
    %v1455 = vld [vmem:[%s1453 + $0x8] sm:$0xff]
    %v1456 = vld [vmem:[%s1453 + $0x10] sm:$0xff]
    %v1457 = vld [vmem:[%s1453 + $0x18] sm:$0xff]
    %s1458 = scalar_lea.vmem %s4, 5
    %v1459 = vld [vmem:[%s1458] sm:$0x1]
    %v1461 = vperm.slane %v1459, 0
    %1463 = vmatpush.msra.mxu0 0.0
    %1464 = vmatpush.msra.mxu0 0.0
    %1465 = vmatpush.msra.mxu0 0.0
    %1466 = vmatpush.msra.mxu0 0.0
    %1467 = vmatpush.msra.mxu0 0.0
    %1468 = vmatpush.msra.mxu0 0.0
    %1469 = vmatpush.msra.mxu0 0.0
    %1470 = vmatpush.msra.mxu0 0.0
    %1471 = vmatpush.msra.mxu0 0.0
    %1472 = vmatpush.msra.mxu0 0.0
    %1473 = vmatpush.msra.mxu0 0.0
    %1474 = vmatpush.msra.mxu0 0.0
    %1475 = vmatpush.msra.mxu0 %v1457
    %1476 = vmatpush.msra.mxu0 %v1456
    %1477 = vmatpush.msra.mxu0 %v1455
    %1478 = vmatpush.msra.mxu0 %v1454
    %1479 = vmatmul.f32.gmra.mxu0 %v1268
    %v1480 = vpop.f32.mrf.mxu0
    %v1481 = vadd.f32 %v1461, %v1480
    %1482 = vmatmul.f32.gmra.mxu0 %v1271
    %v1483 = vpop.f32.mrf.mxu0
    %v1484 = vadd.f32 %v1461, %v1483
    %1485 = vdwg.mxu0
    %s1486 = scalar_lea.vmem %s5, 160
    %v1487 = vld [vmem:[%s1486] sm:$0xff]
    %v1488 = vld [vmem:[%s1486 + $0x8] sm:$0xff]
    %v1489 = vld [vmem:[%s1486 + $0x10] sm:$0xff]
    %v1490 = vld [vmem:[%s1486 + $0x18] sm:$0xff]
    %s1491 = scalar_lea.vmem %s6, 5
    %v1492 = vld [vmem:[%s1491] sm:$0x1]
    %v1494 = vperm.slane %v1492, 0
    %1496 = vmatpush.msra.mxu0 0.0
    %1497 = vmatpush.msra.mxu0 0.0
    %1498 = vmatpush.msra.mxu0 0.0
    %1499 = vmatpush.msra.mxu0 0.0
    %1500 = vmatpush.msra.mxu0 0.0
    %1501 = vmatpush.msra.mxu0 0.0
    %1502 = vmatpush.msra.mxu0 0.0
    %1503 = vmatpush.msra.mxu0 0.0
    %1504 = vmatpush.msra.mxu0 0.0
    %1505 = vmatpush.msra.mxu0 0.0
    %1506 = vmatpush.msra.mxu0 0.0
    %1507 = vmatpush.msra.mxu0 0.0
    %1508 = vmatpush.msra.mxu0 %v1490
    %1509 = vmatpush.msra.mxu0 %v1489
    %1510 = vmatpush.msra.mxu0 %v1488
    %1511 = vmatpush.msra.mxu0 %v1487
    %1512 = vmatmul.f32.gmra.mxu0 %v1268
    %v1513 = vpop.f32.mrf.mxu0
    %v1514 = vadd.f32 %v1494, %v1513
    %1515 = vmatmul.f32.gmra.mxu0 %v1271
    %v1516 = vpop.f32.mrf.mxu0
    %v1517 = vadd.f32 %v1494, %v1516
    %1518 = vdwg.mxu0
    %s1519 = scalar_lea.vmem %s7, 160
    %v1520 = vld [vmem:[%s1519] sm:$0xff]
    %v1521 = vld [vmem:[%s1519 + $0x8] sm:$0xff]
    %v1522 = vld [vmem:[%s1519 + $0x10] sm:$0xff]
    %v1523 = vld [vmem:[%s1519 + $0x18] sm:$0xff]
    %s1524 = scalar_lea.vmem %s8, 5
    %v1525 = vld [vmem:[%s1524] sm:$0x1]
    %v1527 = vperm.slane %v1525, 0
    %1529 = vmatpush.msra.mxu0 0.0
    %1530 = vmatpush.msra.mxu0 0.0
    %1531 = vmatpush.msra.mxu0 0.0
    %1532 = vmatpush.msra.mxu0 0.0
    %1533 = vmatpush.msra.mxu0 0.0
    %1534 = vmatpush.msra.mxu0 0.0
    %1535 = vmatpush.msra.mxu0 0.0
    %1536 = vmatpush.msra.mxu0 0.0
    %1537 = vmatpush.msra.mxu0 0.0
    %1538 = vmatpush.msra.mxu0 0.0
    %1539 = vmatpush.msra.mxu0 0.0
    %1540 = vmatpush.msra.mxu0 0.0
    %1541 = vmatpush.msra.mxu0 %v1523
    %1542 = vmatpush.msra.mxu0 %v1522
    %1543 = vmatpush.msra.mxu0 %v1521
    %1544 = vmatpush.msra.mxu0 %v1520
    %1545 = vmatmul.f32.gmra.mxu0 %v1268
    %v1546 = vpop.f32.mrf.mxu0
    %v1547 = vadd.f32 %v1527, %v1546
    %1548 = vmatmul.f32.gmra.mxu0 %v1271
    %v1549 = vpop.f32.mrf.mxu0
    %v1550 = vadd.f32 %v1527, %v1549
    %1551 = vdwg.mxu0
    %v1553 = vsel %vm256, %v1481, 0
    %v1556 = vsel %vm256, %v1484, 0
    %v1559 = vsel %vm256, %v1514, 0
    %v1562 = vsel %vm256, %v1517, 0
    %1564 = vmatpush.xpose.msra.mxu0 0.0
    %1565 = vmatpush.xpose.msra.mxu0 0.0
    %1566 = vmatpush.xpose.msra.mxu0 0.0
    %1567 = vmatpush.xpose.msra.mxu0 0.0
    %1568 = vmatpush.xpose.msra.mxu0 0.0
    %1569 = vmatpush.xpose.msra.mxu0 0.0
    %1570 = vmatpush.xpose.msra.mxu0 0.0
    %1571 = vmatpush.xpose.msra.mxu0 0.0
    %1572 = vmatpush.xpose.msra.mxu0 0.0
    %1573 = vmatpush.xpose.msra.mxu0 0.0
    %1574 = vmatpush.xpose.msra.mxu0 0.0
    %1575 = vmatpush.xpose.msra.mxu0 0.0
    %1576 = vmatpush.xpose.msra.mxu0 0.0
    %1577 = vmatpush.xpose.msra.mxu0 0.0
    %1578 = vmatpush.xpose.msra.mxu0 %v1562
    %1579 = vmatpush.xpose.msra.mxu0 %v1559
    %1580 = vmatmul.f32.gmra.mxu0 %v1553
    %v1581 = vpop.f32.mrf.mxu0
    %v1582 = vadd.f32 %v112, %v1581
    %1583 = vmatmul.f32.gmra.mxu0 %v1556
    %v1584 = vpop.f32.mrf.mxu0
    %v1585 = vadd.f32 %v113, %v1584
    %1586 = vdwg.mxu0
    %v1587 = vsel %vm122, %v1582, -inf
    %1588 = vmax.xlane.f32.xlu0 %v1587
    %v1589 = vpop.xlane.xlu0 %1588
    %v1590 = vsel %vm295, %v1585, -inf
    %1591 = vmax.xlane.f32.xlu0 %v1590
    %v1592 = vpop.xlane.xlu0 %1591
    %v1593 = vsub.f32 %v1582, %v1589
    %v1594 = vsub.f32 %v1585, %v1592
    %v1595 = vmul.f32 %v1593, 1.442695
    %v1596 = vpow.pop %v1595
    %v1597 = vmul.f32 %v1594, 1.442695
    %v1598 = vpow.pop %v1597
    %v1599 = vsel %vm122, %v1596, 0.0
    %1600 = vadd.xlane.f32.xlu0 %v1599
    %v1601 = vpop.xlane.xlu0 %1600
    %v1602 = vsel %vm295, %v1598, 0.0
    %1603 = vadd.xlane.f32.xlu0 %v1602
    %v1604 = vpop.xlane.xlu0 %1603
    %v1605 = vrcp.pop %v1601
    %v1606 = vrcp.pop %v1604
    %v1607 = vmul.f32 %v1596, %v1605
    %v1608 = vmul.f32 %v1598, %v1606
    %v1610 = vsel %vm122, %v1607, 0
    %v1613 = vsel %vm122, %v1608, 0
    %v1616 = vsel %vm129, %v1550, 0
    %1618 = vmatpush.msra.mxu0 0.0
    %1619 = vmatpush.msra.mxu0 0.0
    %1620 = vmatpush.msra.mxu0 0.0
    %1621 = vmatpush.msra.mxu0 0.0
    %1622 = vmatpush.msra.mxu0 0.0
    %1623 = vmatpush.msra.mxu0 0.0
    %1624 = vmatpush.msra.mxu0 0.0
    %1625 = vmatpush.msra.mxu0 0.0
    %1626 = vmatpush.msra.mxu0 0.0
    %1627 = vmatpush.msra.mxu0 0.0
    %1628 = vmatpush.msra.mxu0 0.0
    %1629 = vmatpush.msra.mxu0 0.0
    %1630 = vmatpush.msra.mxu0 0.0
    %1631 = vmatpush.msra.mxu0 0.0
    %1632 = vmatpush.msra.mxu0 %v1616
    %1633 = vmatpush.msra.mxu0 %v1547
    %1634 = vmatmul.f32.gmra.mxu0 %v1610
    %v1635 = vpop.f32.mrf.mxu0
    %v1636 = vadd.f32 0.0, %v1635
    %1637 = vmatmul.f32.gmra.mxu0 %v1613
    %v1638 = vpop.f32.mrf.mxu0
    %v1639 = vadd.f32 0.0, %v1638
    %1640 = vdwg.mxu0
    %s1641 = scalar_lea.vmem %s9, 40
    %v1642 = vld [vmem:[%s1641] sm:$0xff]
    %v1644 = vsel %vm256, %v1636, 0
    %v1647 = vsel %vm256, %v1639, 0
    %1649 = vmatpush.msra.mxu0 0.0
    %1650 = vmatpush.msra.mxu0 0.0
    %1651 = vmatpush.msra.mxu0 0.0
    %1652 = vmatpush.msra.mxu0 0.0
    %1653 = vmatpush.msra.mxu0 0.0
    %1654 = vmatpush.msra.mxu0 0.0
    %1655 = vmatpush.msra.mxu0 0.0
    %1656 = vmatpush.msra.mxu0 0.0
    %1657 = vmatpush.msra.mxu0 0.0
    %1658 = vmatpush.msra.mxu0 0.0
    %1659 = vmatpush.msra.mxu0 0.0
    %1660 = vmatpush.msra.mxu0 0.0
    %1661 = vmatpush.msra.mxu0 0.0
    %1662 = vmatpush.msra.mxu0 0.0
    %1663 = vmatpush.msra.mxu0 0.0
    %1664 = vmatpush.msra.mxu0 %v1642
    %1665 = vmatmul.f32.gmra.mxu0 %v1644
    %v1666 = vpop.f32.mrf.mxu0
    %v1667 = vadd.f32 0.0, %v1666
    %1668 = vmatmul.f32.gmra.mxu0 %v1647
    %v1669 = vpop.f32.mrf.mxu0
    %v1670 = vadd.f32 0.0, %v1669
    %1671 = vdwg.mxu0
    %v1673 = vsel %vm256, %v1446, 0
    %v1676 = vsel %vm256, %v1449, 0
    %1678 = vmatpush.msra.mxu0 0.0
    %1679 = vmatpush.msra.mxu0 0.0
    %1680 = vmatpush.msra.mxu0 0.0
    %1681 = vmatpush.msra.mxu0 0.0
    %1682 = vmatpush.msra.mxu0 0.0
    %1683 = vmatpush.msra.mxu0 0.0
    %1684 = vmatpush.msra.mxu0 0.0
    %1685 = vmatpush.msra.mxu0 0.0
    %1686 = vmatpush.msra.mxu0 0.0
    %1687 = vmatpush.msra.mxu0 0.0
    %1688 = vmatpush.msra.mxu0 0.0
    %1689 = vmatpush.msra.mxu0 0.0
    %1690 = vmatpush.msra.mxu0 0.0
    %1691 = vmatpush.msra.mxu0 0.0
    %1692 = vmatpush.msra.mxu0 0.0
    %1693 = vmatpush.msra.mxu0 %v1452
    %1694 = vmatmul.f32.gmra.mxu0 %v1673
    %v1695 = vpop.f32.mrf.mxu0
    %v1696 = vadd.f32 %v1667, %v1695
    %1697 = vmatmul.f32.gmra.mxu0 %v1676
    %v1698 = vpop.f32.mrf.mxu0
    %v1699 = vadd.f32 %v1670, %v1698
    %1700 = vdwg.mxu0
    %s1701 = scalar_lea.vmem %s3, 192
    %v1702 = vld [vmem:[%s1701] sm:$0xff]
    %v1703 = vld [vmem:[%s1701 + $0x8] sm:$0xff]
    %v1704 = vld [vmem:[%s1701 + $0x10] sm:$0xff]
    %v1705 = vld [vmem:[%s1701 + $0x18] sm:$0xff]
    %s1706 = scalar_lea.vmem %s4, 6
    %v1707 = vld [vmem:[%s1706] sm:$0x1]
    %v1709 = vperm.slane %v1707, 0
    %1711 = vmatpush.msra.mxu0 0.0
    %1712 = vmatpush.msra.mxu0 0.0
    %1713 = vmatpush.msra.mxu0 0.0
    %1714 = vmatpush.msra.mxu0 0.0
    %1715 = vmatpush.msra.mxu0 0.0
    %1716 = vmatpush.msra.mxu0 0.0
    %1717 = vmatpush.msra.mxu0 0.0
    %1718 = vmatpush.msra.mxu0 0.0
    %1719 = vmatpush.msra.mxu0 0.0
    %1720 = vmatpush.msra.mxu0 0.0
    %1721 = vmatpush.msra.mxu0 0.0
    %1722 = vmatpush.msra.mxu0 0.0
    %1723 = vmatpush.msra.mxu0 %v1705
    %1724 = vmatpush.msra.mxu0 %v1704
    %1725 = vmatpush.msra.mxu0 %v1703
    %1726 = vmatpush.msra.mxu0 %v1702
    %1727 = vmatmul.f32.gmra.mxu0 %v1268
    %v1728 = vpop.f32.mrf.mxu0
    %v1729 = vadd.f32 %v1709, %v1728
    %1730 = vmatmul.f32.gmra.mxu0 %v1271
    %v1731 = vpop.f32.mrf.mxu0
    %v1732 = vadd.f32 %v1709, %v1731
    %1733 = vdwg.mxu0
    %s1734 = scalar_lea.vmem %s5, 192
    %v1735 = vld [vmem:[%s1734] sm:$0xff]
    %v1736 = vld [vmem:[%s1734 + $0x8] sm:$0xff]
    %v1737 = vld [vmem:[%s1734 + $0x10] sm:$0xff]
    %v1738 = vld [vmem:[%s1734 + $0x18] sm:$0xff]
    %s1739 = scalar_lea.vmem %s6, 6
    %v1740 = vld [vmem:[%s1739] sm:$0x1]
    %v1742 = vperm.slane %v1740, 0
    %1744 = vmatpush.msra.mxu0 0.0
    %1745 = vmatpush.msra.mxu0 0.0
    %1746 = vmatpush.msra.mxu0 0.0
    %1747 = vmatpush.msra.mxu0 0.0
    %1748 = vmatpush.msra.mxu0 0.0
    %1749 = vmatpush.msra.mxu0 0.0
    %1750 = vmatpush.msra.mxu0 0.0
    %1751 = vmatpush.msra.mxu0 0.0
    %1752 = vmatpush.msra.mxu0 0.0
    %1753 = vmatpush.msra.mxu0 0.0
    %1754 = vmatpush.msra.mxu0 0.0
    %1755 = vmatpush.msra.mxu0 0.0
    %1756 = vmatpush.msra.mxu0 %v1738
    %1757 = vmatpush.msra.mxu0 %v1737
    %1758 = vmatpush.msra.mxu0 %v1736
    %1759 = vmatpush.msra.mxu0 %v1735
    %1760 = vmatmul.f32.gmra.mxu0 %v1268
    %v1761 = vpop.f32.mrf.mxu0
    %v1762 = vadd.f32 %v1742, %v1761
    %1763 = vmatmul.f32.gmra.mxu0 %v1271
    %v1764 = vpop.f32.mrf.mxu0
    %v1765 = vadd.f32 %v1742, %v1764
    %1766 = vdwg.mxu0
    %s1767 = scalar_lea.vmem %s7, 192
    %v1768 = vld [vmem:[%s1767] sm:$0xff]
    %v1769 = vld [vmem:[%s1767 + $0x8] sm:$0xff]
    %v1770 = vld [vmem:[%s1767 + $0x10] sm:$0xff]
    %v1771 = vld [vmem:[%s1767 + $0x18] sm:$0xff]
    %s1772 = scalar_lea.vmem %s8, 6
    %v1773 = vld [vmem:[%s1772] sm:$0x1]
    %v1775 = vperm.slane %v1773, 0
    %1777 = vmatpush.msra.mxu0 0.0
    %1778 = vmatpush.msra.mxu0 0.0
    %1779 = vmatpush.msra.mxu0 0.0
    %1780 = vmatpush.msra.mxu0 0.0
    %1781 = vmatpush.msra.mxu0 0.0
    %1782 = vmatpush.msra.mxu0 0.0
    %1783 = vmatpush.msra.mxu0 0.0
    %1784 = vmatpush.msra.mxu0 0.0
    %1785 = vmatpush.msra.mxu0 0.0
    %1786 = vmatpush.msra.mxu0 0.0
    %1787 = vmatpush.msra.mxu0 0.0
    %1788 = vmatpush.msra.mxu0 0.0
    %1789 = vmatpush.msra.mxu0 %v1771
    %1790 = vmatpush.msra.mxu0 %v1770
    %1791 = vmatpush.msra.mxu0 %v1769
    %1792 = vmatpush.msra.mxu0 %v1768
    %1793 = vmatmul.f32.gmra.mxu0 %v1268
    %v1794 = vpop.f32.mrf.mxu0
    %v1795 = vadd.f32 %v1775, %v1794
    %1796 = vmatmul.f32.gmra.mxu0 %v1271
    %v1797 = vpop.f32.mrf.mxu0
    %v1798 = vadd.f32 %v1775, %v1797
    %1799 = vdwg.mxu0
    %v1801 = vsel %vm256, %v1729, 0
    %v1804 = vsel %vm256, %v1732, 0
    %v1807 = vsel %vm256, %v1762, 0
    %v1810 = vsel %vm256, %v1765, 0
    %1812 = vmatpush.xpose.msra.mxu0 0.0
    %1813 = vmatpush.xpose.msra.mxu0 0.0
    %1814 = vmatpush.xpose.msra.mxu0 0.0
    %1815 = vmatpush.xpose.msra.mxu0 0.0
    %1816 = vmatpush.xpose.msra.mxu0 0.0
    %1817 = vmatpush.xpose.msra.mxu0 0.0
    %1818 = vmatpush.xpose.msra.mxu0 0.0
    %1819 = vmatpush.xpose.msra.mxu0 0.0
    %1820 = vmatpush.xpose.msra.mxu0 0.0
    %1821 = vmatpush.xpose.msra.mxu0 0.0
    %1822 = vmatpush.xpose.msra.mxu0 0.0
    %1823 = vmatpush.xpose.msra.mxu0 0.0
    %1824 = vmatpush.xpose.msra.mxu0 0.0
    %1825 = vmatpush.xpose.msra.mxu0 0.0
    %1826 = vmatpush.xpose.msra.mxu0 %v1810
    %1827 = vmatpush.xpose.msra.mxu0 %v1807
    %1828 = vmatmul.f32.gmra.mxu0 %v1801
    %v1829 = vpop.f32.mrf.mxu0
    %v1830 = vadd.f32 %v112, %v1829
    %1831 = vmatmul.f32.gmra.mxu0 %v1804
    %v1832 = vpop.f32.mrf.mxu0
    %v1833 = vadd.f32 %v113, %v1832
    %1834 = vdwg.mxu0
    %v1835 = vsel %vm122, %v1830, -inf
    %1836 = vmax.xlane.f32.xlu0 %v1835
    %v1837 = vpop.xlane.xlu0 %1836
    %v1838 = vsel %vm295, %v1833, -inf
    %1839 = vmax.xlane.f32.xlu0 %v1838
    %v1840 = vpop.xlane.xlu0 %1839
    %v1841 = vsub.f32 %v1830, %v1837
    %v1842 = vsub.f32 %v1833, %v1840
    %v1843 = vmul.f32 %v1841, 1.442695
    %v1844 = vpow.pop %v1843
    %v1845 = vmul.f32 %v1842, 1.442695
    %v1846 = vpow.pop %v1845
    %v1847 = vsel %vm122, %v1844, 0.0
    %1848 = vadd.xlane.f32.xlu0 %v1847
    %v1849 = vpop.xlane.xlu0 %1848
    %v1850 = vsel %vm295, %v1846, 0.0
    %1851 = vadd.xlane.f32.xlu0 %v1850
    %v1852 = vpop.xlane.xlu0 %1851
    %v1853 = vrcp.pop %v1849
    %v1854 = vrcp.pop %v1852
    %v1855 = vmul.f32 %v1844, %v1853
    %v1856 = vmul.f32 %v1846, %v1854
    %v1858 = vsel %vm122, %v1855, 0
    %v1861 = vsel %vm122, %v1856, 0
    %v1864 = vsel %vm129, %v1798, 0
    %1866 = vmatpush.msra.mxu0 0.0
    %1867 = vmatpush.msra.mxu0 0.0
    %1868 = vmatpush.msra.mxu0 0.0
    %1869 = vmatpush.msra.mxu0 0.0
    %1870 = vmatpush.msra.mxu0 0.0
    %1871 = vmatpush.msra.mxu0 0.0
    %1872 = vmatpush.msra.mxu0 0.0
    %1873 = vmatpush.msra.mxu0 0.0
    %1874 = vmatpush.msra.mxu0 0.0
    %1875 = vmatpush.msra.mxu0 0.0
    %1876 = vmatpush.msra.mxu0 0.0
    %1877 = vmatpush.msra.mxu0 0.0
    %1878 = vmatpush.msra.mxu0 0.0
    %1879 = vmatpush.msra.mxu0 0.0
    %1880 = vmatpush.msra.mxu0 %v1864
    %1881 = vmatpush.msra.mxu0 %v1795
    %1882 = vmatmul.f32.gmra.mxu0 %v1858
    %v1883 = vpop.f32.mrf.mxu0
    %v1884 = vadd.f32 0.0, %v1883
    %1885 = vmatmul.f32.gmra.mxu0 %v1861
    %v1886 = vpop.f32.mrf.mxu0
    %v1887 = vadd.f32 0.0, %v1886
    %1888 = vdwg.mxu0
    %s1889 = scalar_lea.vmem %s9, 48
    %v1890 = vld [vmem:[%s1889] sm:$0xff]
    %v1892 = vsel %vm256, %v1884, 0
    %v1895 = vsel %vm256, %v1887, 0
    %1897 = vmatpush.msra.mxu0 0.0
    %1898 = vmatpush.msra.mxu0 0.0
    %1899 = vmatpush.msra.mxu0 0.0
    %1900 = vmatpush.msra.mxu0 0.0
    %1901 = vmatpush.msra.mxu0 0.0
    %1902 = vmatpush.msra.mxu0 0.0
    %1903 = vmatpush.msra.mxu0 0.0
    %1904 = vmatpush.msra.mxu0 0.0
    %1905 = vmatpush.msra.mxu0 0.0
    %1906 = vmatpush.msra.mxu0 0.0
    %1907 = vmatpush.msra.mxu0 0.0
    %1908 = vmatpush.msra.mxu0 0.0
    %1909 = vmatpush.msra.mxu0 0.0
    %1910 = vmatpush.msra.mxu0 0.0
    %1911 = vmatpush.msra.mxu0 0.0
    %1912 = vmatpush.msra.mxu0 %v1890
    %1913 = vmatmul.f32.gmra.mxu0 %v1892
    %v1914 = vpop.f32.mrf.mxu0
    %v1915 = vadd.f32 0.0, %v1914
    %1916 = vmatmul.f32.gmra.mxu0 %v1895
    %v1917 = vpop.f32.mrf.mxu0
    %v1918 = vadd.f32 0.0, %v1917
    %1919 = vdwg.mxu0
    %v1920 = vadd.f32 %v1696, %v1915
    %v1921 = vadd.f32 %v1699, %v1918
    %s1922 = scalar_lea.vmem %s3, 224
    %v1923 = vld [vmem:[%s1922] sm:$0xff]
    %v1924 = vld [vmem:[%s1922 + $0x8] sm:$0xff]
    %v1925 = vld [vmem:[%s1922 + $0x10] sm:$0xff]
    %v1926 = vld [vmem:[%s1922 + $0x18] sm:$0xff]
    %s1927 = scalar_lea.vmem %s4, 7
    %v1928 = vld [vmem:[%s1927] sm:$0x1]
    %v1930 = vperm.slane %v1928, 0
    %1932 = vmatpush.msra.mxu0 0.0
    %1933 = vmatpush.msra.mxu0 0.0
    %1934 = vmatpush.msra.mxu0 0.0
    %1935 = vmatpush.msra.mxu0 0.0
    %1936 = vmatpush.msra.mxu0 0.0
    %1937 = vmatpush.msra.mxu0 0.0
    %1938 = vmatpush.msra.mxu0 0.0
    %1939 = vmatpush.msra.mxu0 0.0
    %1940 = vmatpush.msra.mxu0 0.0
    %1941 = vmatpush.msra.mxu0 0.0
    %1942 = vmatpush.msra.mxu0 0.0
    %1943 = vmatpush.msra.mxu0 0.0
    %1944 = vmatpush.msra.mxu0 %v1926
    %1945 = vmatpush.msra.mxu0 %v1925
    %1946 = vmatpush.msra.mxu0 %v1924
    %1947 = vmatpush.msra.mxu0 %v1923
    %1948 = vmatmul.f32.gmra.mxu0 %v1268
    %v1949 = vpop.f32.mrf.mxu0
    %v1950 = vadd.f32 %v1930, %v1949
    %1951 = vmatmul.f32.gmra.mxu0 %v1271
    %v1952 = vpop.f32.mrf.mxu0
    %v1953 = vadd.f32 %v1930, %v1952
    %1954 = vdwg.mxu0
    %s1955 = scalar_lea.vmem %s5, 224
    %v1956 = vld [vmem:[%s1955] sm:$0xff]
    %v1957 = vld [vmem:[%s1955 + $0x8] sm:$0xff]
    %v1958 = vld [vmem:[%s1955 + $0x10] sm:$0xff]
    %v1959 = vld [vmem:[%s1955 + $0x18] sm:$0xff]
    %s1960 = scalar_lea.vmem %s6, 7
    %v1961 = vld [vmem:[%s1960] sm:$0x1]
    %v1963 = vperm.slane %v1961, 0
    %1965 = vmatpush.msra.mxu0 0.0
    %1966 = vmatpush.msra.mxu0 0.0
    %1967 = vmatpush.msra.mxu0 0.0
    %1968 = vmatpush.msra.mxu0 0.0
    %1969 = vmatpush.msra.mxu0 0.0
    %1970 = vmatpush.msra.mxu0 0.0
    %1971 = vmatpush.msra.mxu0 0.0
    %1972 = vmatpush.msra.mxu0 0.0
    %1973 = vmatpush.msra.mxu0 0.0
    %1974 = vmatpush.msra.mxu0 0.0
    %1975 = vmatpush.msra.mxu0 0.0
    %1976 = vmatpush.msra.mxu0 0.0
    %1977 = vmatpush.msra.mxu0 %v1959
    %1978 = vmatpush.msra.mxu0 %v1958
    %1979 = vmatpush.msra.mxu0 %v1957
    %1980 = vmatpush.msra.mxu0 %v1956
    %1981 = vmatmul.f32.gmra.mxu0 %v1268
    %v1982 = vpop.f32.mrf.mxu0
    %v1983 = vadd.f32 %v1963, %v1982
    %1984 = vmatmul.f32.gmra.mxu0 %v1271
    %v1985 = vpop.f32.mrf.mxu0
    %v1986 = vadd.f32 %v1963, %v1985
    %1987 = vdwg.mxu0
    %s1988 = scalar_lea.vmem %s7, 224
    %v1989 = vld [vmem:[%s1988] sm:$0xff]
    %v1990 = vld [vmem:[%s1988 + $0x8] sm:$0xff]
    %v1991 = vld [vmem:[%s1988 + $0x10] sm:$0xff]
    %v1992 = vld [vmem:[%s1988 + $0x18] sm:$0xff]
    %s1993 = scalar_lea.vmem %s8, 7
    %v1994 = vld [vmem:[%s1993] sm:$0x1]
    %v1996 = vperm.slane %v1994, 0
    %1998 = vmatpush.msra.mxu0 0.0
    %1999 = vmatpush.msra.mxu0 0.0
    %2000 = vmatpush.msra.mxu0 0.0
    %2001 = vmatpush.msra.mxu0 0.0
    %2002 = vmatpush.msra.mxu0 0.0
    %2003 = vmatpush.msra.mxu0 0.0
    %2004 = vmatpush.msra.mxu0 0.0
    %2005 = vmatpush.msra.mxu0 0.0
    %2006 = vmatpush.msra.mxu0 0.0
    %2007 = vmatpush.msra.mxu0 0.0
    %2008 = vmatpush.msra.mxu0 0.0
    %2009 = vmatpush.msra.mxu0 0.0
    %2010 = vmatpush.msra.mxu0 %v1992
    %2011 = vmatpush.msra.mxu0 %v1991
    %2012 = vmatpush.msra.mxu0 %v1990
    %2013 = vmatpush.msra.mxu0 %v1989
    %2014 = vmatmul.f32.gmra.mxu0 %v1268
    %v2015 = vpop.f32.mrf.mxu0
    %v2016 = vadd.f32 %v1996, %v2015
    %2017 = vmatmul.f32.gmra.mxu0 %v1271
    %v2018 = vpop.f32.mrf.mxu0
    %v2019 = vadd.f32 %v1996, %v2018
    %2020 = vdwg.mxu0
    %v2022 = vsel %vm256, %v1950, 0
    %v2025 = vsel %vm256, %v1953, 0
    %v2028 = vsel %vm256, %v1983, 0
    %v2031 = vsel %vm256, %v1986, 0
    %2033 = vmatpush.xpose.msra.mxu0 0.0
    %2034 = vmatpush.xpose.msra.mxu0 0.0
    %2035 = vmatpush.xpose.msra.mxu0 0.0
    %2036 = vmatpush.xpose.msra.mxu0 0.0
    %2037 = vmatpush.xpose.msra.mxu0 0.0
    %2038 = vmatpush.xpose.msra.mxu0 0.0
    %2039 = vmatpush.xpose.msra.mxu0 0.0
    %2040 = vmatpush.xpose.msra.mxu0 0.0
    %2041 = vmatpush.xpose.msra.mxu0 0.0
    %2042 = vmatpush.xpose.msra.mxu0 0.0
    %2043 = vmatpush.xpose.msra.mxu0 0.0
    %2044 = vmatpush.xpose.msra.mxu0 0.0
    %2045 = vmatpush.xpose.msra.mxu0 0.0
    %2046 = vmatpush.xpose.msra.mxu0 0.0
    %2047 = vmatpush.xpose.msra.mxu0 %v2031
    %2048 = vmatpush.xpose.msra.mxu0 %v2028
    %2049 = vmatmul.f32.gmra.mxu0 %v2022
    %v2050 = vpop.f32.mrf.mxu0
    %v2051 = vadd.f32 %v112, %v2050
    %2052 = vmatmul.f32.gmra.mxu0 %v2025
    %v2053 = vpop.f32.mrf.mxu0
    %v2054 = vadd.f32 %v113, %v2053
    %2055 = vdwg.mxu0
    %v2056 = vsel %vm122, %v2051, -inf
    %2057 = vmax.xlane.f32.xlu0 %v2056
    %v2058 = vpop.xlane.xlu0 %2057
    %v2059 = vsel %vm295, %v2054, -inf
    %2060 = vmax.xlane.f32.xlu0 %v2059
    %v2061 = vpop.xlane.xlu0 %2060
    %v2062 = vsub.f32 %v2051, %v2058
    %v2063 = vsub.f32 %v2054, %v2061
    %v2064 = vmul.f32 %v2062, 1.442695
    %v2065 = vpow.pop %v2064
    %v2066 = vmul.f32 %v2063, 1.442695
    %v2067 = vpow.pop %v2066
    %v2068 = vsel %vm122, %v2065, 0.0
    %2069 = vadd.xlane.f32.xlu0 %v2068
    %v2070 = vpop.xlane.xlu0 %2069
    %v2071 = vsel %vm295, %v2067, 0.0
    %2072 = vadd.xlane.f32.xlu0 %v2071
    %v2073 = vpop.xlane.xlu0 %2072
    %v2074 = vrcp.pop %v2070
    %v2075 = vrcp.pop %v2073
    %v2076 = vmul.f32 %v2065, %v2074
    %v2077 = vmul.f32 %v2067, %v2075
    %v2079 = vsel %vm122, %v2076, 0
    %v2082 = vsel %vm122, %v2077, 0
    %v2085 = vsel %vm129, %v2019, 0
    %2087 = vmatpush.msra.mxu0 0.0
    %2088 = vmatpush.msra.mxu0 0.0
    %2089 = vmatpush.msra.mxu0 0.0
    %2090 = vmatpush.msra.mxu0 0.0
    %2091 = vmatpush.msra.mxu0 0.0
    %2092 = vmatpush.msra.mxu0 0.0
    %2093 = vmatpush.msra.mxu0 0.0
    %2094 = vmatpush.msra.mxu0 0.0
    %2095 = vmatpush.msra.mxu0 0.0
    %2096 = vmatpush.msra.mxu0 0.0
    %2097 = vmatpush.msra.mxu0 0.0
    %2098 = vmatpush.msra.mxu0 0.0
    %2099 = vmatpush.msra.mxu0 0.0
    %2100 = vmatpush.msra.mxu0 0.0
    %2101 = vmatpush.msra.mxu0 %v2085
    %2102 = vmatpush.msra.mxu0 %v2016
    %2103 = vmatmul.f32.gmra.mxu0 %v2079
    %v2104 = vpop.f32.mrf.mxu0
    %v2105 = vadd.f32 0.0, %v2104
    %2106 = vmatmul.f32.gmra.mxu0 %v2082
    %v2107 = vpop.f32.mrf.mxu0
    %v2108 = vadd.f32 0.0, %v2107
    %2109 = vdwg.mxu0
    %s2110 = scalar_lea.vmem %s9, 56
    %v2111 = vld [vmem:[%s2110] sm:$0xff]
    %v2113 = vsel %vm256, %v2105, 0
    %v2116 = vsel %vm256, %v2108, 0
    %2118 = vmatpush.msra.mxu0 0.0
    %2119 = vmatpush.msra.mxu0 0.0
    %2120 = vmatpush.msra.mxu0 0.0
    %2121 = vmatpush.msra.mxu0 0.0
    %2122 = vmatpush.msra.mxu0 0.0
    %2123 = vmatpush.msra.mxu0 0.0
    %2124 = vmatpush.msra.mxu0 0.0
    %2125 = vmatpush.msra.mxu0 0.0
    %2126 = vmatpush.msra.mxu0 0.0
    %2127 = vmatpush.msra.mxu0 0.0
    %2128 = vmatpush.msra.mxu0 0.0
    %2129 = vmatpush.msra.mxu0 0.0
    %2130 = vmatpush.msra.mxu0 0.0
    %2131 = vmatpush.msra.mxu0 0.0
    %2132 = vmatpush.msra.mxu0 0.0
    %2133 = vmatpush.msra.mxu0 %v2111
    %2134 = vmatmul.f32.gmra.mxu0 %v2113
    %v2135 = vpop.f32.mrf.mxu0
    %v2136 = vadd.f32 0.0, %v2135
    %2137 = vmatmul.f32.gmra.mxu0 %v2116
    %v2138 = vpop.f32.mrf.mxu0
    %v2139 = vadd.f32 0.0, %v2138
    %2140 = vdwg.mxu0
    %v2141 = vadd.f32 %v1920, %v2136
    %v2142 = vadd.f32 %v1921, %v2139
    %s2143 = scalar_lea.vmem %s10, 1
    %v2144 = vld [vmem:[%s2143] sm:$0x1]
    %v2146 = vperm.slane %v2144, 0
    %v2148 = vadd.f32 %v2141, %v2146
    %v2149 = vadd.f32 %v2142, %v2146
    %v2150 = vadd.f32 %v1255, %v2148
    %v2151 = vadd.f32 %v1256, %v2149
    %s2152 = scalar_lea.vmem %s11, 1
    %v2153 = vld [vmem:[%s2152] sm:$0x1]
    %s2154 = scalar_lea.vmem %s12, 1
    %v2155 = vld [vmem:[%s2154] sm:$0x1]
    %v2156 = vsel %vm164, %v2150, 0.0
    %2157 = vadd.xlane.f32.xlu0 %v2156
    %v2158 = vpop.xlane.xlu0 %2157
    %v2159 = vsel %vm1051, %v2151, 0.0
    %2160 = vadd.xlane.f32.xlu0 %v2159
    %v2161 = vpop.xlane.xlu0 %2160
    %v2162 = vmul.f32 %v2158, %v1061
    %v2163 = vmul.f32 %v2161, %v1061
    %v2164 = vmul.f32 %v2150, %v2150
    %v2165 = vmul.f32 %v2151, %v2151
    %v2166 = vsel %vm164, %v2164, 0.0
    %2167 = vadd.xlane.f32.xlu0 %v2166
    %v2168 = vpop.xlane.xlu0 %2167
    %v2169 = vsel %vm1051, %v2165, 0.0
    %2170 = vadd.xlane.f32.xlu0 %v2169
    %v2171 = vpop.xlane.xlu0 %2170
    %v2172 = vmul.f32 %v2168, %v1061
    %v2173 = vmul.f32 %v2171, %v1061
    %v2174 = vmul.f32 %v2162, %v2162
    %v2175 = vmul.f32 %v2163, %v2163
    %v2176 = vsub.f32 %v2172, %v2174
    %v2177 = vsub.f32 %v2173, %v2175
    %v2178 = vsub.f32 %v2150, %v2162
    %v2179 = vsub.f32 %v2151, %v2163
    %v2180 = vadd.f32 %v2176, 1e-05
    %v2181 = vadd.f32 %v2177, 1e-05
    %v2182 = vrsqrt.pop %v2180
    %v2183 = vmul.f32 %v2182, %v2180
    %v2184 = vmul.f32 %v2183, %v2182
    %v2185 = vmul.f32 0.5, %v2184
    %v2186 = vsub.f32 1.5, %v2185
    %v2187 = vmul.f32 %v2182, %v2186
    %vm2188 = vweird.f32 %v2180
    %vm2189 = vweird.f32 %v2182
    %vm2190 = vmor %vm2188, %vm2189
    %v2191 = vsel %vm2190, %v2182, %v2187
    %v2192 = vrsqrt.pop %v2181
    %v2193 = vmul.f32 %v2192, %v2181
    %v2194 = vmul.f32 %v2193, %v2192
    %v2195 = vmul.f32 0.5, %v2194
    %v2196 = vsub.f32 1.5, %v2195
    %v2197 = vmul.f32 %v2192, %v2196
    %vm2198 = vweird.f32 %v2181
    %vm2199 = vweird.f32 %v2192
    %vm2200 = vmor %vm2198, %vm2199
    %v2201 = vsel %vm2200, %v2192, %v2197
    %v2202 = vmul.f32 %v2178, %v2191
    %v2203 = vmul.f32 %v2179, %v2201
    %v2205 = vperm.slane %v2153, 0
    %v2207 = vmul.f32 %v2202, %v2205
    %v2208 = vmul.f32 %v2203, %v2205
    %v2210 = vperm.slane %v2155, 0
    %v2212 = vadd.f32 %v2207, %v2210
    %v2213 = vadd.f32 %v2208, %v2210
    %s2214 = scalar_lea.vmem %s13, 32
    %v2215 = vld [vmem:[%s2214] sm:$0xff]
    %v2216 = vld [vmem:[%s2214 + $0x8] sm:$0xff]
    %v2217 = vld [vmem:[%s2214 + $0x10] sm:$0xff]
    %v2218 = vld [vmem:[%s2214 + $0x18] sm:$0xff]
    %s2219 = scalar_lea.vmem %s14, 1
    %v2220 = vld [vmem:[%s2219] sm:$0x1]
    %v2222 = vperm.slane %v2220, 0
    %v2225 = vsel %vm164, %v2212, 0
    %v2228 = vsel %vm164, %v2213, 0
    %2230 = vmatpush.msra.mxu0 0.0
    %2231 = vmatpush.msra.mxu0 0.0
    %2232 = vmatpush.msra.mxu0 0.0
    %2233 = vmatpush.msra.mxu0 0.0
    %2234 = vmatpush.msra.mxu0 0.0
    %2235 = vmatpush.msra.mxu0 0.0
    %2236 = vmatpush.msra.mxu0 0.0
    %2237 = vmatpush.msra.mxu0 0.0
    %2238 = vmatpush.msra.mxu0 0.0
    %2239 = vmatpush.msra.mxu0 0.0
    %2240 = vmatpush.msra.mxu0 0.0
    %2241 = vmatpush.msra.mxu0 0.0
    %2242 = vmatpush.msra.mxu0 %v2218
    %2243 = vmatpush.msra.mxu0 %v2217
    %2244 = vmatpush.msra.mxu0 %v2216
    %2245 = vmatpush.msra.mxu0 %v2215
    %2246 = vmatmul.f32.gmra.mxu0 %v2225
    %v2247 = vpop.f32.mrf.mxu0
    %v2248 = vadd.f32 %v2222, %v2247
    %2249 = vmatmul.f32.gmra.mxu0 %v2228
    %v2250 = vpop.f32.mrf.mxu0
    %v2251 = vadd.f32 %v2222, %v2250
    %2252 = vdwg.mxu0
    %v2253 = vmax.f32 %v2248, 0.0
    %v2254 = vmax.f32 %v2251, 0.0
    %s2255 = scalar_lea.vmem %s15, 64
    %v2256 = vld [vmem:[%s2255] sm:$0xff]
    %v2257 = vld [vmem:[%s2255 + $0x8] sm:$0xff]
    %v2258 = vld [vmem:[%s2255 + $0x10] sm:$0xff]
    %v2259 = vld [vmem:[%s2255 + $0x18] sm:$0xff]
    %v2260 = vld [vmem:[%s2255 + $0x20] sm:$0xff]
    %v2261 = vld [vmem:[%s2255 + $0x28] sm:$0xff]
    %v2262 = vld [vmem:[%s2255 + $0x30] sm:$0xff]
    %v2263 = vld [vmem:[%s2255 + $0x38] sm:$0xff]
    %s2264 = scalar_lea.vmem %s16, 1
    %v2265 = vld [vmem:[%s2264] sm:$0x1]
    %v2267 = vperm.slane %v2265, 0
    %v2270 = vsel %vm1165, %v2253, 0
    %v2273 = vsel %vm1165, %v2254, 0
    %2275 = vmatpush.msra.mxu0 0.0
    %2276 = vmatpush.msra.mxu0 0.0
    %2277 = vmatpush.msra.mxu0 0.0
    %2278 = vmatpush.msra.mxu0 0.0
    %2279 = vmatpush.msra.mxu0 0.0
    %2280 = vmatpush.msra.mxu0 0.0
    %2281 = vmatpush.msra.mxu0 0.0
    %2282 = vmatpush.msra.mxu0 0.0
    %2283 = vmatpush.msra.mxu0 %v2263
    %2284 = vmatpush.msra.mxu0 %v2262
    %2285 = vmatpush.msra.mxu0 %v2261
    %2286 = vmatpush.msra.mxu0 %v2260
    %2287 = vmatpush.msra.mxu0 %v2259
    %2288 = vmatpush.msra.mxu0 %v2258
    %2289 = vmatpush.msra.mxu0 %v2257
    %2290 = vmatpush.msra.mxu0 %v2256
    %2291 = vmatmul.f32.gmra.mxu0 %v2270
    %v2292 = vpop.f32.mrf.mxu0
    %v2293 = vadd.f32 %v2267, %v2292
    %2294 = vmatmul.f32.gmra.mxu0 %v2273
    %v2295 = vpop.f32.mrf.mxu0
    %v2296 = vadd.f32 %v2267, %v2295
    %2297 = vdwg.mxu0
    %v2298 = vadd.f32 %v2212, %v2293
    %v2299 = vadd.f32 %v2213, %v2296
    %s2300 = scalar_lea.vmem %s17, 1
    %v2301 = vld [vmem:[%s2300] sm:$0x1]
    %s2302 = scalar_lea.vmem %s18, 1
    %v2303 = vld [vmem:[%s2302] sm:$0x1]
    %v2304 = vsel %vm164, %v2298, 0.0
    %2305 = vadd.xlane.f32.xlu0 %v2304
    %v2306 = vpop.xlane.xlu0 %2305
    %v2307 = vsel %vm1051, %v2299, 0.0
    %2308 = vadd.xlane.f32.xlu0 %v2307
    %v2309 = vpop.xlane.xlu0 %2308
    %v2310 = vmul.f32 %v2306, %v1061
    %v2311 = vmul.f32 %v2309, %v1061
    %v2312 = vmul.f32 %v2298, %v2298
    %v2313 = vmul.f32 %v2299, %v2299
    %v2314 = vsel %vm164, %v2312, 0.0
    %2315 = vadd.xlane.f32.xlu0 %v2314
    %v2316 = vpop.xlane.xlu0 %2315
    %v2317 = vsel %vm1051, %v2313, 0.0
    %2318 = vadd.xlane.f32.xlu0 %v2317
    %v2319 = vpop.xlane.xlu0 %2318
    %v2320 = vmul.f32 %v2316, %v1061
    %v2321 = vmul.f32 %v2319, %v1061
    %v2322 = vmul.f32 %v2310, %v2310
    %v2323 = vmul.f32 %v2311, %v2311
    %v2324 = vsub.f32 %v2320, %v2322
    %v2325 = vsub.f32 %v2321, %v2323
    %v2326 = vsub.f32 %v2298, %v2310
    %v2327 = vsub.f32 %v2299, %v2311
    %v2328 = vadd.f32 %v2324, 1e-05
    %v2329 = vadd.f32 %v2325, 1e-05
    %v2330 = vrsqrt.pop %v2328
    %v2331 = vmul.f32 %v2330, %v2328
    %v2332 = vmul.f32 %v2331, %v2330
    %v2333 = vmul.f32 0.5, %v2332
    %v2334 = vsub.f32 1.5, %v2333
    %v2335 = vmul.f32 %v2330, %v2334
    %vm2336 = vweird.f32 %v2328
    %vm2337 = vweird.f32 %v2330
    %vm2338 = vmor %vm2336, %vm2337
    %v2339 = vsel %vm2338, %v2330, %v2335
    %v2340 = vrsqrt.pop %v2329
    %v2341 = vmul.f32 %v2340, %v2329
    %v2342 = vmul.f32 %v2341, %v2340
    %v2343 = vmul.f32 0.5, %v2342
    %v2344 = vsub.f32 1.5, %v2343
    %v2345 = vmul.f32 %v2340, %v2344
    %vm2346 = vweird.f32 %v2329
    %vm2347 = vweird.f32 %v2340
    %vm2348 = vmor %vm2346, %vm2347
    %v2349 = vsel %vm2348, %v2340, %v2345
    %v2350 = vmul.f32 %v2326, %v2339
    %v2351 = vmul.f32 %v2327, %v2349
    %v2353 = vperm.slane %v2301, 0
    %v2355 = vmul.f32 %v2350, %v2353
    %v2356 = vmul.f32 %v2351, %v2353
    %v2358 = vperm.slane %v2303, 0
    %v2360 = vadd.f32 %v2355, %v2358
    %v2361 = vadd.f32 %v2356, %v2358
    %v2362 = vld [vmem:[%s19] sm:$0xff]
    %v2363 = vld [vmem:[%s19 + $0x8] sm:$0xff]
    %v2364 = vld [vmem:[%s19 + $0x10] sm:$0xff]
    %v2365 = vld [vmem:[%s19 + $0x18] sm:$0xff]
    %s2366 = scalar_lea.vmem %s19, 32
    %v2367 = vld [vmem:[%s2366] sm:$0xff]
    %v2368 = vld [vmem:[%s2366 + $0x8] sm:$0xff]
    %v2369 = vld [vmem:[%s2366 + $0x10] sm:$0xff]
    %v2370 = vld [vmem:[%s2366 + $0x18] sm:$0xff]
    %v2372 = vrot.slane %v2360, 2
    %v2373 = vsel %vm164, %v2372, 0
    %2375 = vmatpush.msra.mxu0 0.0
    %2376 = vmatpush.msra.mxu0 0.0
    %2377 = vmatpush.msra.mxu0 0.0
    %2378 = vmatpush.msra.mxu0 0.0
    %2379 = vmatpush.msra.mxu0 0.0
    %2380 = vmatpush.msra.mxu0 0.0
    %2381 = vmatpush.msra.mxu0 0.0
    %2382 = vmatpush.msra.mxu0 0.0
    %2383 = vmatpush.msra.mxu0 0.0
    %2384 = vmatpush.msra.mxu0 0.0
    %2385 = vmatpush.msra.mxu0 0.0
    %2386 = vmatpush.msra.mxu0 0.0
    %2387 = vmatpush.msra.mxu0 %v2370
    %2388 = vmatpush.msra.mxu0 %v2369
    %2389 = vmatpush.msra.mxu0 %v2368
    %2390 = vmatpush.msra.mxu0 %v2367
    %2391 = vmatmul.f32.gmra.mxu0 %v2373
    %v2392 = vpop.f32.mrf.mxu0
    %v2393 = vadd.f32 0.0, %v2392
    %2394 = vdwg.mxu0
    %v2395 = vsel %vm164, %v2360, 0
    %2397 = vmatpush.msra.mxu0 0.0
    %2398 = vmatpush.msra.mxu0 0.0
    %2399 = vmatpush.msra.mxu0 0.0
    %2400 = vmatpush.msra.mxu0 0.0
    %2401 = vmatpush.msra.mxu0 0.0
    %2402 = vmatpush.msra.mxu0 0.0
    %2403 = vmatpush.msra.mxu0 0.0
    %2404 = vmatpush.msra.mxu0 0.0
    %2405 = vmatpush.msra.mxu0 0.0
    %2406 = vmatpush.msra.mxu0 0.0
    %2407 = vmatpush.msra.mxu0 0.0
    %2408 = vmatpush.msra.mxu0 0.0
    %2409 = vmatpush.msra.mxu0 %v2365
    %2410 = vmatpush.msra.mxu0 %v2364
    %2411 = vmatpush.msra.mxu0 %v2363
    %2412 = vmatpush.msra.mxu0 %v2362
    %2413 = vmatmul.f32.gmra.mxu0 %v2395
    %v2414 = vpop.f32.mrf.mxu0
    %v2415 = vadd.f32 %v2393, %v2414
    %2416 = vdwg.mxu0
    %s2417 = scalar_lea.vmem %s19, 64
    %v2418 = vld [vmem:[%s2417] sm:$0xff]
    %v2419 = vld [vmem:[%s2417 + $0x8] sm:$0xff]
    %v2420 = vld [vmem:[%s2417 + $0x10] sm:$0xff]
    %v2421 = vld [vmem:[%s2417 + $0x18] sm:$0xff]
    %v2422 = vrot.slane %v2360, 4
    %v2423 = vsel %vm164, %v2422, 0
    %2425 = vmatpush.msra.mxu0 0.0
    %2426 = vmatpush.msra.mxu0 0.0
    %2427 = vmatpush.msra.mxu0 0.0
    %2428 = vmatpush.msra.mxu0 0.0
    %2429 = vmatpush.msra.mxu0 0.0
    %2430 = vmatpush.msra.mxu0 0.0
    %2431 = vmatpush.msra.mxu0 0.0
    %2432 = vmatpush.msra.mxu0 0.0
    %2433 = vmatpush.msra.mxu0 0.0
    %2434 = vmatpush.msra.mxu0 0.0
    %2435 = vmatpush.msra.mxu0 0.0
    %2436 = vmatpush.msra.mxu0 0.0
    %2437 = vmatpush.msra.mxu0 %v2421
    %2438 = vmatpush.msra.mxu0 %v2420
    %2439 = vmatpush.msra.mxu0 %v2419
    %2440 = vmatpush.msra.mxu0 %v2418
    %2441 = vmatmul.f32.gmra.mxu0 %v2423
    %v2442 = vpop.f32.mrf.mxu0
    %v2443 = vadd.f32 0.0, %v2442
    %2444 = vdwg.mxu0
    %v2445 = vadd.f32 %v2415, %v2443
    %s2446 = scalar_lea.vmem %s19, 96
    %v2447 = vld [vmem:[%s2446] sm:$0xff]
    %v2448 = vld [vmem:[%s2446 + $0x8] sm:$0xff]
    %v2449 = vld [vmem:[%s2446 + $0x10] sm:$0xff]
    %v2450 = vld [vmem:[%s2446 + $0x18] sm:$0xff]
    %v2451 = vrot.slane %v2360, 6
    %v2452 = vsel %vm164, %v2451, 0
    %2454 = vmatpush.msra.mxu0 0.0
    %2455 = vmatpush.msra.mxu0 0.0
    %2456 = vmatpush.msra.mxu0 0.0
    %2457 = vmatpush.msra.mxu0 0.0
    %2458 = vmatpush.msra.mxu0 0.0
    %2459 = vmatpush.msra.mxu0 0.0
    %2460 = vmatpush.msra.mxu0 0.0
    %2461 = vmatpush.msra.mxu0 0.0
    %2462 = vmatpush.msra.mxu0 0.0
    %2463 = vmatpush.msra.mxu0 0.0
    %2464 = vmatpush.msra.mxu0 0.0
    %2465 = vmatpush.msra.mxu0 0.0
    %2466 = vmatpush.msra.mxu0 %v2450
    %2467 = vmatpush.msra.mxu0 %v2449
    %2468 = vmatpush.msra.mxu0 %v2448
    %2469 = vmatpush.msra.mxu0 %v2447
    %2470 = vmatmul.f32.gmra.mxu0 %v2452
    %v2471 = vpop.f32.mrf.mxu0
    %v2472 = vadd.f32 0.0, %v2471
    %2473 = vdwg.mxu0
    %v2474 = vadd.f32 %v2445, %v2472
    %s2475 = scalar_lea.vmem %s19, 128
    %v2476 = vld [vmem:[%s2475] sm:$0xff]
    %v2477 = vld [vmem:[%s2475 + $0x8] sm:$0xff]
    %v2478 = vld [vmem:[%s2475 + $0x10] sm:$0xff]
    %v2479 = vld [vmem:[%s2475 + $0x18] sm:$0xff]
    %v2481 = vsel %vm164, %v2361, 0
    %2483 = vmatpush.msra.mxu0 0.0
    %2484 = vmatpush.msra.mxu0 0.0
    %2485 = vmatpush.msra.mxu0 0.0
    %2486 = vmatpush.msra.mxu0 0.0
    %2487 = vmatpush.msra.mxu0 0.0
    %2488 = vmatpush.msra.mxu0 0.0
    %2489 = vmatpush.msra.mxu0 0.0
    %2490 = vmatpush.msra.mxu0 0.0
    %2491 = vmatpush.msra.mxu0 0.0
    %2492 = vmatpush.msra.mxu0 0.0
    %2493 = vmatpush.msra.mxu0 0.0
    %2494 = vmatpush.msra.mxu0 0.0
    %2495 = vmatpush.msra.mxu0 %v2479
    %2496 = vmatpush.msra.mxu0 %v2478
    %2497 = vmatpush.msra.mxu0 %v2477
    %2498 = vmatpush.msra.mxu0 %v2476
    %2499 = vmatmul.f32.gmra.mxu0 %v2481
    %v2500 = vpop.f32.mrf.mxu0
    %v2501 = vadd.f32 0.0, %v2500
    %2502 = vdwg.mxu0
    %v2503 = vadd.f32 %v2474, %v2501
    %s2504 = scalar_lea.vmem %s19, 160
    %v2505 = vld [vmem:[%s2504] sm:$0xff]
    %v2506 = vld [vmem:[%s2504 + $0x8] sm:$0xff]
    %v2507 = vld [vmem:[%s2504 + $0x10] sm:$0xff]
    %v2508 = vld [vmem:[%s2504 + $0x18] sm:$0xff]
    %v2509 = vrot.slane %v2361, 2
    %v2510 = vsel %vm164, %v2509, 0
    %2512 = vmatpush.msra.mxu0 0.0
    %2513 = vmatpush.msra.mxu0 0.0
    %2514 = vmatpush.msra.mxu0 0.0
    %2515 = vmatpush.msra.mxu0 0.0
    %2516 = vmatpush.msra.mxu0 0.0
    %2517 = vmatpush.msra.mxu0 0.0
    %2518 = vmatpush.msra.mxu0 0.0
    %2519 = vmatpush.msra.mxu0 0.0
    %2520 = vmatpush.msra.mxu0 0.0
    %2521 = vmatpush.msra.mxu0 0.0
    %2522 = vmatpush.msra.mxu0 0.0
    %2523 = vmatpush.msra.mxu0 0.0
    %2524 = vmatpush.msra.mxu0 %v2508
    %2525 = vmatpush.msra.mxu0 %v2507
    %2526 = vmatpush.msra.mxu0 %v2506
    %2527 = vmatpush.msra.mxu0 %v2505
    %2528 = vmatmul.f32.gmra.mxu0 %v2510
    %v2529 = vpop.f32.mrf.mxu0
    %v2530 = vadd.f32 0.0, %v2529
    %2531 = vdwg.mxu0
    %v2532 = vadd.f32 %v2503, %v2530
    %v2533 = vld [vmem:[%s20] sm:$0x1]
    %v2535 = vperm.slane %v2533, 0
    %v2537 = vadd.f32 %v2532, %v2535
    %2538 = vst [vmem:[#allocation2] sm:$0x3] %v2537
    // Predicated region
    $region86: #{stickman_forward.1} parent=1 // pred_check
      _
    $region87: #{stickman_forward.1} parent=1 // pred_check_branch
      %2540 = sbr.rel (0) target = $region89
    $region88: #{stickman_forward.1} parent=1 // pred_region
      %2542 = vsyncadd [#allocation3], 0
      %s2544 = sshll.u32 [#allocation2], 4
      %s2545 = int_to_ptr.vmem [resolvable:$true] %s2544
      %s2546 = sshll.u32 %s21, 4
      %s2547 = int_to_ptr.hbm [resolvable:$true] %s2546
      %2549 = dma.vmem_to_hbm [thread:$0]  %s2545, 32, %s2547, [#allocation3]
    $region89: #{stickman_forward.1} parent=1 // pred_fallthru
      _
    // Predicated region
    $region90: #{stickman_forward.1} parent=1 // pred_check
      _
    $region91: #{stickman_forward.1} parent=1 // pred_check_branch
      %2551 = sbr.rel (0) target = $region93
    $region92: #{stickman_forward.1} parent=1 // pred_region
      %2553 = dma.done [#allocation3], 32
    $region93: #{stickman_forward.1} parent=1 // pred_fallthru
      _
    %2554 = vsyncpa [#allocation3], 1

</llo_original>
